<compile_context>
chip_gen: v7x
topology: tpu7x:2x2x1
jax: 0.10.0
libtpu: 0.0.40
codegen_flags: <defaults>
</compile_context>

<pallas_src>
import jax
import jax.numpy as jnp
from jax.experimental import pallas as pl
from jax.experimental.pallas import tpu as pltpu


def logreg_kernel(x_ref, w_ref, b_ref, o_ref):
    # x_ref: (TB, D) VMEM   w_ref: (1, D) VMEM   b_ref: (1,) SMEM   o_ref: (1, TB) VMEM
    x = x_ref[...].astype(jnp.float32)
    w = w_ref[...].astype(jnp.float32)
    # Per-row dot product on the VPU (mul) + XLU (lane reduce); f32 accumulate.
    z = jnp.sum(x * w, axis=-1) + b_ref[0]                     # (TB,)
    # Lane-dense store: one (1, TB) row instead of a (TB, 1) masked-store column.
    o_ref[...] = jax.nn.sigmoid(z).reshape(1, -1).astype(o_ref.dtype)


def _pick_tile_b(batch, d_pad, itemsize, vmem_cap):
    """Pick the batch tile from *padded* VMEM bytes (lane dim = d_pad >= 128)."""
    bytes_per_row = d_pad * itemsize
    # ~4 MiB per x buffer; never let the two x buffers exceed ~half of physical VMEM.
    budget = min(4 << 20, max(vmem_cap // 4, 1 << 20))
    rows = budget // bytes_per_row
    # Multiple of 128 keeps the (1, tile_b) output block lane-aligned. Cap at 8192
    # so the (TB,) -> (1, TB) sublane->lane relayout stays a few dozen vregs.
    rows = max(128, min(int(rows), 8192))
    rows = (rows // 128) * 128

    b_ceil = pl.cdiv(batch, 128) * 128
    rows = min(rows, b_ceil)

    # Give the grid >= 2 steps (DMA/compute pipelining + both v7x TCs) only when
    # each half still moves a DMA-efficient tile (>= ~2 MiB padded). On v5e/v6e
    # (single TC) splitting a small batch is pure per-step overhead.
    half = max(128, (b_ceil // 2) // 128 * 128)
    if b_ceil >= 256 and half * bytes_per_row >= (2 << 20):
        rows = min(rows, half)
    return rows
    # TODO(synk): for extreme input_dim (>~16K f32 on v7x) even a 128-row tile
    # double-buffers past 64 MiB VMEM; that regime needs a D-reduction grid axis
    # with an f32 VMEM accumulator and pl.when init/finalize.


def logistic_regression(x, w, b, *, tile_b=None):
    """sigmoid(x @ w.T + b) with x:(B,D), w:(1,D) (nn.Linear layout), b:(1,).

    Pass x/w as bfloat16 when the producer can emit it to halve HBM traffic;
    the kernel accumulates in f32 either way.
    """
    B, D = x.shape
    assert w.shape == (1, D)
    b = jnp.asarray(b, jnp.float32).reshape(1)

    d_pad = pl.cdiv(D, 128) * 128                 # lane-padded width actually held in VMEM
    itemsize = jnp.dtype(x.dtype).itemsize
    try:
        vmem_cap = int(pltpu.get_tpu_info().vmem_capacity_bytes)
    except Exception:
        vmem_cap = 64 << 20                       # conservative: v7x per-TC physical VMEM

    if tile_b is None:
        tile_b = _pick_tile_b(B, d_pad, itemsize, vmem_cap)
    num_tiles = pl.cdiv(B, tile_b)                # ragged last block handled by Pallas masking

    # Explicit scoped-VMEM limit sized from the actual (padded) tile bytes:
    #   2 x-buffers + resident weight row (sublane-padded) + output tiles + headroom.
    needed = (2 * tile_b * d_pad * itemsize
              + 2 * 8 * d_pad * 4
              + 2 * tile_b * 4
              + (2 << 20))
    vmem_limit = int(min(max(needed, 32 << 20), max(vmem_cap - (8 << 20), 16 << 20)))

    out_row = pl.pallas_call(
        logreg_kernel,
        out_shape=jax.ShapeDtypeStruct((1, B), jnp.float32),
        grid_spec=pltpu.PrefetchScalarGridSpec(
            num_scalar_prefetch=0,
            grid=(num_tiles,),
            in_specs=[
                # x tile, auto-pipelined/double-buffered. (pl.Buffered(3) would add a
                # small win when VMEM allows; left at the default depth for portability.)
                pl.BlockSpec((tile_b, D), lambda i: (i, 0)),
                pl.BlockSpec((1, D), lambda i: (0, 0)),             # resident weight row
                pl.BlockSpec(memory_space=pltpu.MemorySpace.SMEM),  # bias scalar in SMEM
            ],
            out_specs=pl.BlockSpec((1, tile_b), lambda i: (0, i)),  # lane-dense output row
        ),
        compiler_params=pltpu.CompilerParams(
            dimension_semantics=("parallel",),    # batch tiles are independent (megacore)
            vmem_limit_bytes=vmem_limit,
        ),
    )(x, w, b)

    return out_row.reshape(B, 1)


if __name__ == "__main__":
    B, D = 512, 32  # batch=512, input_dim=32 (nn.Linear(32, 1))
    key = jax.random.PRNGKey(0)
    kx, kw, kb = jax.random.split(key, 3)

    x = jax.random.normal(kx, (B, D), dtype=jnp.float32)

    # nn.Linear(input_dim, 1) init: uniform(-1/sqrt(D), 1/sqrt(D)) for weight and bias
    bound = 1.0 / (D ** 0.5)
    w = jax.random.uniform(kw, (1, D), minval=-bound, maxval=bound, dtype=jnp.float32)
    b = jax.random.uniform(kb, (1,), minval=-bound, maxval=bound, dtype=jnp.float32)

    out = logistic_regression(x, w, b)
    out = jax.block_until_ready(out)

    ref = jax.nn.sigmoid(x @ w.T + b)
    assert out.shape == (B, 1)
    assert jnp.allclose(out, ref, atol=1e-5), "mismatch vs reference"

    # Ragged batch (no jnp.pad path): last block is partial, OOB lanes discarded.
    B2 = 300
    x2 = x[:B2]
    out2 = jax.block_until_ready(logistic_regression(x2, w, b))
    ref2 = jax.nn.sigmoid(x2 @ w.T + b)
    assert out2.shape == (B2, 1)
    assert jnp.allclose(out2, ref2, atol=1e-5), "mismatch vs reference (ragged batch)"

    print("KERNEL_OK")
</pallas_src>

<mosaic_0001>
module attributes {stable_mosaic.version = 11 : i64} {
  func.func @logreg_kernel(%arg0: i32, %arg1: memref<512x32xf32, #tpu.memory_space<vmem>>, %arg2: memref<1x32xf32, #tpu.memory_space<vmem>>, %arg3: memref<1xf32, #tpu.memory_space<smem>>, %arg4: memref<1x512xf32, #tpu.memory_space<vmem>>) attributes {dimension_semantics = [#tpu.dimension_semantics<parallel>], iteration_bounds = array<i64: 1>, scalar_prefetch = 0 : i64, scratch_operands = 0 : i64, tpu.core_type = #tpu.core_type<tc>, window_params = [{transform_indices = @transform_0, window_bounds = array<i64: 512, 32>}, {pipeline_mode = #tpu.pipeline_mode<synchronous>, transform_indices = @transform_1, window_bounds = array<i64: 1, 32>}, {transform_indices = @transform_2, window_bounds = array<i64: 1>}, {transform_indices = @transform_3, window_bounds = array<i64: 1, 512>}]} {
    %c0 = arith.constant 0 : index
    %c0_0 = arith.constant 0 : index
    %0 = vector.load %arg1[%c0, %c0_0] : memref<512x32xf32, #tpu.memory_space<vmem>>, vector<512x32xf32>
    %c0_1 = arith.constant 0 : index
    %c0_2 = arith.constant 0 : index
    %1 = vector.load %arg2[%c0_1, %c0_2] : memref<1x32xf32, #tpu.memory_space<vmem>>, vector<1x32xf32>
    %2 = vector.broadcast %1 : vector<1x32xf32> to vector<512x32xf32>
    %3 = arith.mulf %0, %2 : vector<512x32xf32>
    %cst = arith.constant dense<0.000000e+00> : vector<512xf32>
    %4 = vector.multi_reduction <add>, %3, %cst [1] : vector<512x32xf32> to vector<512xf32>
    %c0_3 = arith.constant 0 : index
    %5 = memref.load %arg3[%c0_3] : memref<1xf32, #tpu.memory_space<smem>>
    %6 = vector.broadcast %5 : f32 to vector<512xf32>
    %7 = arith.addf %4, %6 : vector<512xf32>
    %8 = arith.negf %7 : vector<512xf32>
    %9 = math.exp %8 : vector<512xf32>
    %cst_4 = arith.constant 1.000000e+00 : f32
    %10 = vector.broadcast %cst_4 : f32 to vector<512xf32>
    %11 = arith.addf %10, %9 : vector<512xf32>
    %12 = arith.divf %10, %11 : vector<512xf32>
    %13 = vector.shape_cast %12 : vector<512xf32> to vector<1x512xf32>
    %c0_5 = arith.constant 0 : index
    %c0_6 = arith.constant 0 : index
    %14 = vector.load %arg4[%c0_5, %c0_6] : memref<1x512xf32, #tpu.memory_space<vmem>>, vector<1x512xf32>
    tpu.vector_store %arg4[%c0_5, %c0_6], %13 {strides = array<i32>} : memref<1x512xf32, #tpu.memory_space<vmem>>, vector<1x512xf32>,
    return
  }
  func.func @transform_0(%arg0: i32) -> (i32, i32) {
    %c0_i32 = arith.constant 0 : i32
    %c0_i32_0 = arith.constant 0 : i32
    return %arg0, %c0_i32 : i32, i32
  }
  func.func @transform_1(%arg0: i32) -> (i32, i32) {
    %c0_i32 = arith.constant 0 : i32
    %c0_i32_0 = arith.constant 0 : i32
    %c0_i32_1 = arith.constant 0 : i32
    return %c0_i32, %c0_i32_0 : i32, i32
  }
  func.func @transform_2(%arg0: i32) -> i32 {
    %c0_i32 = arith.constant 0 : i32
    %c0_i32_0 = arith.constant 0 : i32
    return %c0_i32 : i32
  }
  func.func @transform_3(%arg0: i32) -> (i32, i32) {
    %c0_i32 = arith.constant 0 : i32
    %c0_i32_0 = arith.constant 0 : i32
    return %c0_i32, %arg0 : i32, i32
  }
}

</mosaic_0001>

<llo_original>
// kernel: tpu_custom_call.1
$region0: #{tpu_custom_call.1}
  #allocation0 [shape = 'u32[]', space=smem, size = 0x4, offset = 0x4, fixed_abs, tag = 'smem constant byte address 0x4 - core index']
  #allocation1 [shape = 'u32[144,128]{1,0:T(1,128)}', space=vmem, size = 0x12000, scoped, tag = 'internal scratch']
  #allocation2 [shape = 'f32[1]{0:T(128)S(6)}', space=smem, size = 0x200, scoped, tag = 'scoped memory for tpu_custom_call.1']
  %s0 = inlined_call_operand.vmem [shape: f32[512,32], index: 0, kind: input, shape index: {}]
  %s1 = inlined_call_operand.vmem [shape: f32[1,32], index: 1, kind: input, shape index: {}]
  %s2 = inlined_call_operand.<no memory space> [shape: f32[1], index: 2, kind: input, shape index: {}]
  %s3 = inlined_call_operand.hbm [shape: f32[1,512], index: 3, kind: output, shape index: {}]
  %s4 = sld [smem:[#allocation0]]
  $region22: #{tpu_custom_call.1} parent=0
    _
  %s6 = ssub.s32 1, %s4
  %s7 = scalar_select 0, %s6, %s4
  %8 = sst [smem:[#allocation2]] %s2
  $region1: #{tpu_custom_call.1} parent=0
    #allocation3 [shape = 'u8[2048]{0}', space=vmem, size = 0x800, scoped, tag = 'output window, operand 0, single buffered']
    #allocation4 [shape = 's32[1]{0}', space=sflag, size = 0x4, scoped, tag = 'scoped memory for tpu_custom_call.1']
    %9 = vsyncpa [#allocation4], 0
    // Predicated region
    $region2: #{tpu_custom_call.1} parent=1 // pred_check
      _
    $region3: #{tpu_custom_call.1} parent=1 // pred_check_branch
      %11 = sbr.rel (0) target = $region5
    $region4: #{tpu_custom_call.1} parent=1 // pred_region
      _
    $region5: #{tpu_custom_call.1} parent=1 // pred_fallthru
      _
    // Predicated region
    $region6: #{tpu_custom_call.1} parent=1 // pred_check
      _
    $region7: #{tpu_custom_call.1} parent=1 // pred_check_branch
      %13 = sbr.rel (0) target = $region9
    $region8: #{tpu_custom_call.1} parent=1 // pred_region
      _
    $region9: #{tpu_custom_call.1} parent=1 // pred_fallthru
      _
    // Predicated region
    $region10: #{tpu_custom_call.1} parent=1 // pred_check
      _
    $region11: #{tpu_custom_call.1} parent=1 // pred_check_branch
      %15 = sbr.rel (0) target = $region13
    $region12: #{tpu_custom_call.1} parent=1 // pred_region
      _
    $region13: #{tpu_custom_call.1} parent=1 // pred_fallthru
      _
    %v16 = vld [vmem:[%s0] sm:$0xff]
    %v17 = vld [vmem:[%s0 + $0x8] sm:$0xff]
    %v18 = vld [vmem:[%s0 + $0x10] sm:$0xff]
    %v19 = vld [vmem:[%s0 + $0x18] sm:$0xff]
    %v20 = vld [vmem:[%s0 + $0x20] sm:$0xff]
    %v21 = vld [vmem:[%s0 + $0x28] sm:$0xff]
    %v22 = vld [vmem:[%s0 + $0x30] sm:$0xff]
    %v23 = vld [vmem:[%s0 + $0x38] sm:$0xff]
    %v24 = vld [vmem:[%s0 + $0x40] sm:$0xff]
    %v25 = vld [vmem:[%s0 + $0x48] sm:$0xff]
    %v26 = vld [vmem:[%s0 + $0x50] sm:$0xff]
    %v27 = vld [vmem:[%s0 + $0x58] sm:$0xff]
    %v28 = vld [vmem:[%s0 + $0x60] sm:$0xff]
    %v29 = vld [vmem:[%s0 + $0x68] sm:$0xff]
    %v30 = vld [vmem:[%s0 + $0x70] sm:$0xff]
    %v31 = vld [vmem:[%s0 + $0x78] sm:$0xff]
    %v32 = vld [vmem:[%s0 + $0x80] sm:$0xff]
    %v33 = vld [vmem:[%s0 + $0x88] sm:$0xff]
    %v34 = vld [vmem:[%s0 + $0x90] sm:$0xff]
    %v35 = vld [vmem:[%s0 + $0x98] sm:$0xff]
    %v36 = vld [vmem:[%s0 + $0xa0] sm:$0xff]
    %v37 = vld [vmem:[%s0 + $0xa8] sm:$0xff]
    %v38 = vld [vmem:[%s0 + $0xb0] sm:$0xff]
    %v39 = vld [vmem:[%s0 + $0xb8] sm:$0xff]
    %v40 = vld [vmem:[%s0 + $0xc0] sm:$0xff]
    %v41 = vld [vmem:[%s0 + $0xc8] sm:$0xff]
    %v42 = vld [vmem:[%s0 + $0xd0] sm:$0xff]
    %v43 = vld [vmem:[%s0 + $0xd8] sm:$0xff]
    %v44 = vld [vmem:[%s0 + $0xe0] sm:$0xff]
    %v45 = vld [vmem:[%s0 + $0xe8] sm:$0xff]
    %v46 = vld [vmem:[%s0 + $0xf0] sm:$0xff]
    %v47 = vld [vmem:[%s0 + $0xf8] sm:$0xff]
    %v48 = vld [vmem:[%s0 + $0x100] sm:$0xff]
    %v49 = vld [vmem:[%s0 + $0x108] sm:$0xff]
    %v50 = vld [vmem:[%s0 + $0x110] sm:$0xff]
    %v51 = vld [vmem:[%s0 + $0x118] sm:$0xff]
    %v52 = vld [vmem:[%s0 + $0x120] sm:$0xff]
    %v53 = vld [vmem:[%s0 + $0x128] sm:$0xff]
    %v54 = vld [vmem:[%s0 + $0x130] sm:$0xff]
    %v55 = vld [vmem:[%s0 + $0x138] sm:$0xff]
    %v56 = vld [vmem:[%s0 + $0x140] sm:$0xff]
    %v57 = vld [vmem:[%s0 + $0x148] sm:$0xff]
    %v58 = vld [vmem:[%s0 + $0x150] sm:$0xff]
    %v59 = vld [vmem:[%s0 + $0x158] sm:$0xff]
    %v60 = vld [vmem:[%s0 + $0x160] sm:$0xff]
    %v61 = vld [vmem:[%s0 + $0x168] sm:$0xff]
    %v62 = vld [vmem:[%s0 + $0x170] sm:$0xff]
    %v63 = vld [vmem:[%s0 + $0x178] sm:$0xff]
    %v64 = vld [vmem:[%s0 + $0x180] sm:$0xff]
    %v65 = vld [vmem:[%s0 + $0x188] sm:$0xff]
    %v66 = vld [vmem:[%s0 + $0x190] sm:$0xff]
    %v67 = vld [vmem:[%s0 + $0x198] sm:$0xff]
    %v68 = vld [vmem:[%s0 + $0x1a0] sm:$0xff]
    %v69 = vld [vmem:[%s0 + $0x1a8] sm:$0xff]
    %v70 = vld [vmem:[%s0 + $0x1b0] sm:$0xff]
    %v71 = vld [vmem:[%s0 + $0x1b8] sm:$0xff]
    %v72 = vld [vmem:[%s0 + $0x1c0] sm:$0xff]
    %v73 = vld [vmem:[%s0 + $0x1c8] sm:$0xff]
    %v74 = vld [vmem:[%s0 + $0x1d0] sm:$0xff]
    %v75 = vld [vmem:[%s0 + $0x1d8] sm:$0xff]
    %v76 = vld [vmem:[%s0 + $0x1e0] sm:$0xff]
    %v77 = vld [vmem:[%s0 + $0x1e8] sm:$0xff]
    %v78 = vld [vmem:[%s0 + $0x1f0] sm:$0xff]
    %v79 = vld [vmem:[%s0 + $0x1f8] sm:$0xff]
    %v80 = vld [vmem:[%s1] sm:$0x1]
    %v82 = vlaneseq
    %v83 = vshrl.u32 %v82, 7
    %v84 = vsub.s32 0, %v83
    %v85 = vrot.slane %v80, %v84
    %v87 = vmul.f32 %v16, %v85
    %v88 = vmul.f32 %v17, %v85
    %v89 = vmul.f32 %v18, %v85
    %v90 = vmul.f32 %v19, %v85
    %v91 = vmul.f32 %v20, %v85
    %v92 = vmul.f32 %v21, %v85
    %v93 = vmul.f32 %v22, %v85
    %v94 = vmul.f32 %v23, %v85
    %v95 = vmul.f32 %v24, %v85
    %v96 = vmul.f32 %v25, %v85
    %v97 = vmul.f32 %v26, %v85
    %v98 = vmul.f32 %v27, %v85
    %v99 = vmul.f32 %v28, %v85
    %v100 = vmul.f32 %v29, %v85
    %v101 = vmul.f32 %v30, %v85
    %v102 = vmul.f32 %v31, %v85
    %v103 = vmul.f32 %v32, %v85
    %v104 = vmul.f32 %v33, %v85
    %v105 = vmul.f32 %v34, %v85
    %v106 = vmul.f32 %v35, %v85
    %v107 = vmul.f32 %v36, %v85
    %v108 = vmul.f32 %v37, %v85
    %v109 = vmul.f32 %v38, %v85
    %v110 = vmul.f32 %v39, %v85
    %v111 = vmul.f32 %v40, %v85
    %v112 = vmul.f32 %v41, %v85
    %v113 = vmul.f32 %v42, %v85
    %v114 = vmul.f32 %v43, %v85
    %v115 = vmul.f32 %v44, %v85
    %v116 = vmul.f32 %v45, %v85
    %v117 = vmul.f32 %v46, %v85
    %v118 = vmul.f32 %v47, %v85
    %v119 = vmul.f32 %v48, %v85
    %v120 = vmul.f32 %v49, %v85
    %v121 = vmul.f32 %v50, %v85
    %v122 = vmul.f32 %v51, %v85
    %v123 = vmul.f32 %v52, %v85
    %v124 = vmul.f32 %v53, %v85
    %v125 = vmul.f32 %v54, %v85
    %v126 = vmul.f32 %v55, %v85
    %v127 = vmul.f32 %v56, %v85
    %v128 = vmul.f32 %v57, %v85
    %v129 = vmul.f32 %v58, %v85
    %v130 = vmul.f32 %v59, %v85
    %v131 = vmul.f32 %v60, %v85
    %v132 = vmul.f32 %v61, %v85
    %v133 = vmul.f32 %v62, %v85
    %v134 = vmul.f32 %v63, %v85
    %v135 = vmul.f32 %v64, %v85
    %v136 = vmul.f32 %v65, %v85
    %v137 = vmul.f32 %v66, %v85
    %v138 = vmul.f32 %v67, %v85
    %v139 = vmul.f32 %v68, %v85
    %v140 = vmul.f32 %v69, %v85
    %v141 = vmul.f32 %v70, %v85
    %v142 = vmul.f32 %v71, %v85
    %v143 = vmul.f32 %v72, %v85
    %v144 = vmul.f32 %v73, %v85
    %v145 = vmul.f32 %v74, %v85
    %v146 = vmul.f32 %v75, %v85
    %v147 = vmul.f32 %v76, %v85
    %v148 = vmul.f32 %v77, %v85
    %v149 = vmul.f32 %v78, %v85
    %v150 = vmul.f32 %v79, %v85
    %vm151 = vcmask 261120
    %v152 = vsel %vm151, %v87, 0.0
    %153 = vadd.xlane.f32.xlu0 %v152
    %v154 = vpop.xlane.xlu0 %153
    %v155 = vsel %vm151, %v88, 0.0
    %156 = vadd.xlane.f32.xlu0 %v155
    %v157 = vpop.xlane.xlu0 %156
    %v158 = vsel %vm151, %v89, 0.0
    %159 = vadd.xlane.f32.xlu0 %v158
    %v160 = vpop.xlane.xlu0 %159
    %v161 = vsel %vm151, %v90, 0.0
    %162 = vadd.xlane.f32.xlu0 %v161
    %v163 = vpop.xlane.xlu0 %162
    %v164 = vsel %vm151, %v91, 0.0
    %165 = vadd.xlane.f32.xlu0 %v164
    %v166 = vpop.xlane.xlu0 %165
    %v167 = vsel %vm151, %v92, 0.0
    %168 = vadd.xlane.f32.xlu0 %v167
    %v169 = vpop.xlane.xlu0 %168
    %v170 = vsel %vm151, %v93, 0.0
    %171 = vadd.xlane.f32.xlu0 %v170
    %v172 = vpop.xlane.xlu0 %171
    %v173 = vsel %vm151, %v94, 0.0
    %174 = vadd.xlane.f32.xlu0 %v173
    %v175 = vpop.xlane.xlu0 %174
    %v176 = vsel %vm151, %v95, 0.0
    %177 = vadd.xlane.f32.xlu0 %v176
    %v178 = vpop.xlane.xlu0 %177
    %v179 = vsel %vm151, %v96, 0.0
    %180 = vadd.xlane.f32.xlu0 %v179
    %v181 = vpop.xlane.xlu0 %180
    %v182 = vsel %vm151, %v97, 0.0
    %183 = vadd.xlane.f32.xlu0 %v182
    %v184 = vpop.xlane.xlu0 %183
    %v185 = vsel %vm151, %v98, 0.0
    %186 = vadd.xlane.f32.xlu0 %v185
    %v187 = vpop.xlane.xlu0 %186
    %v188 = vsel %vm151, %v99, 0.0
    %189 = vadd.xlane.f32.xlu0 %v188
    %v190 = vpop.xlane.xlu0 %189
    %v191 = vsel %vm151, %v100, 0.0
    %192 = vadd.xlane.f32.xlu0 %v191
    %v193 = vpop.xlane.xlu0 %192
    %v194 = vsel %vm151, %v101, 0.0
    %195 = vadd.xlane.f32.xlu0 %v194
    %v196 = vpop.xlane.xlu0 %195
    %v197 = vsel %vm151, %v102, 0.0
    %198 = vadd.xlane.f32.xlu0 %v197
    %v199 = vpop.xlane.xlu0 %198
    %v200 = vsel %vm151, %v103, 0.0
    %201 = vadd.xlane.f32.xlu0 %v200
    %v202 = vpop.xlane.xlu0 %201
    %v203 = vsel %vm151, %v104, 0.0
    %204 = vadd.xlane.f32.xlu0 %v203
    %v205 = vpop.xlane.xlu0 %204
    %v206 = vsel %vm151, %v105, 0.0
    %207 = vadd.xlane.f32.xlu0 %v206
    %v208 = vpop.xlane.xlu0 %207
    %v209 = vsel %vm151, %v106, 0.0
    %210 = vadd.xlane.f32.xlu0 %v209
    %v211 = vpop.xlane.xlu0 %210
    %v212 = vsel %vm151, %v107, 0.0
    %213 = vadd.xlane.f32.xlu0 %v212
    %v214 = vpop.xlane.xlu0 %213
    %v215 = vsel %vm151, %v108, 0.0
    %216 = vadd.xlane.f32.xlu0 %v215
    %v217 = vpop.xlane.xlu0 %216
    %v218 = vsel %vm151, %v109, 0.0
    %219 = vadd.xlane.f32.xlu0 %v218
    %v220 = vpop.xlane.xlu0 %219
    %v221 = vsel %vm151, %v110, 0.0
    %222 = vadd.xlane.f32.xlu0 %v221
    %v223 = vpop.xlane.xlu0 %222
    %v224 = vsel %vm151, %v111, 0.0
    %225 = vadd.xlane.f32.xlu0 %v224
    %v226 = vpop.xlane.xlu0 %225
    %v227 = vsel %vm151, %v112, 0.0
    %228 = vadd.xlane.f32.xlu0 %v227
    %v229 = vpop.xlane.xlu0 %228
    %v230 = vsel %vm151, %v113, 0.0
    %231 = vadd.xlane.f32.xlu0 %v230
    %v232 = vpop.xlane.xlu0 %231
    %v233 = vsel %vm151, %v114, 0.0
    %234 = vadd.xlane.f32.xlu0 %v233
    %v235 = vpop.xlane.xlu0 %234
    %v236 = vsel %vm151, %v115, 0.0
    %237 = vadd.xlane.f32.xlu0 %v236
    %v238 = vpop.xlane.xlu0 %237
    %v239 = vsel %vm151, %v116, 0.0
    %240 = vadd.xlane.f32.xlu0 %v239
    %v241 = vpop.xlane.xlu0 %240
    %v242 = vsel %vm151, %v117, 0.0
    %243 = vadd.xlane.f32.xlu0 %v242
    %v244 = vpop.xlane.xlu0 %243
    %v245 = vsel %vm151, %v118, 0.0
    %246 = vadd.xlane.f32.xlu0 %v245
    %v247 = vpop.xlane.xlu0 %246
    %v248 = vsel %vm151, %v119, 0.0
    %249 = vadd.xlane.f32.xlu0 %v248
    %v250 = vpop.xlane.xlu0 %249
    %v251 = vsel %vm151, %v120, 0.0
    %252 = vadd.xlane.f32.xlu0 %v251
    %v253 = vpop.xlane.xlu0 %252
    %v254 = vsel %vm151, %v121, 0.0
    %255 = vadd.xlane.f32.xlu0 %v254
    %v256 = vpop.xlane.xlu0 %255
    %v257 = vsel %vm151, %v122, 0.0
    %258 = vadd.xlane.f32.xlu0 %v257
    %v259 = vpop.xlane.xlu0 %258
    %v260 = vsel %vm151, %v123, 0.0
    %261 = vadd.xlane.f32.xlu0 %v260
    %v262 = vpop.xlane.xlu0 %261
    %v263 = vsel %vm151, %v124, 0.0
    %264 = vadd.xlane.f32.xlu0 %v263
    %v265 = vpop.xlane.xlu0 %264
    %v266 = vsel %vm151, %v125, 0.0
    %267 = vadd.xlane.f32.xlu0 %v266
    %v268 = vpop.xlane.xlu0 %267
    %v269 = vsel %vm151, %v126, 0.0
    %270 = vadd.xlane.f32.xlu0 %v269
    %v271 = vpop.xlane.xlu0 %270
    %v272 = vsel %vm151, %v127, 0.0
    %273 = vadd.xlane.f32.xlu0 %v272
    %v274 = vpop.xlane.xlu0 %273
    %v275 = vsel %vm151, %v128, 0.0
    %276 = vadd.xlane.f32.xlu0 %v275
    %v277 = vpop.xlane.xlu0 %276
    %v278 = vsel %vm151, %v129, 0.0
    %279 = vadd.xlane.f32.xlu0 %v278
    %v280 = vpop.xlane.xlu0 %279
    %v281 = vsel %vm151, %v130, 0.0
    %282 = vadd.xlane.f32.xlu0 %v281
    %v283 = vpop.xlane.xlu0 %282
    %v284 = vsel %vm151, %v131, 0.0
    %285 = vadd.xlane.f32.xlu0 %v284
    %v286 = vpop.xlane.xlu0 %285
    %v287 = vsel %vm151, %v132, 0.0
    %288 = vadd.xlane.f32.xlu0 %v287
    %v289 = vpop.xlane.xlu0 %288
    %v290 = vsel %vm151, %v133, 0.0
    %291 = vadd.xlane.f32.xlu0 %v290
    %v292 = vpop.xlane.xlu0 %291
    %v293 = vsel %vm151, %v134, 0.0
    %294 = vadd.xlane.f32.xlu0 %v293
    %v295 = vpop.xlane.xlu0 %294
    %v296 = vsel %vm151, %v135, 0.0
    %297 = vadd.xlane.f32.xlu0 %v296
    %v298 = vpop.xlane.xlu0 %297
    %v299 = vsel %vm151, %v136, 0.0
    %300 = vadd.xlane.f32.xlu0 %v299
    %v301 = vpop.xlane.xlu0 %300
    %v302 = vsel %vm151, %v137, 0.0
    %303 = vadd.xlane.f32.xlu0 %v302
    %v304 = vpop.xlane.xlu0 %303
    %v305 = vsel %vm151, %v138, 0.0
    %306 = vadd.xlane.f32.xlu0 %v305
    %v307 = vpop.xlane.xlu0 %306
    %v308 = vsel %vm151, %v139, 0.0
    %309 = vadd.xlane.f32.xlu0 %v308
    %v310 = vpop.xlane.xlu0 %309
    %v311 = vsel %vm151, %v140, 0.0
    %312 = vadd.xlane.f32.xlu0 %v311
    %v313 = vpop.xlane.xlu0 %312
    %v314 = vsel %vm151, %v141, 0.0
    %315 = vadd.xlane.f32.xlu0 %v314
    %v316 = vpop.xlane.xlu0 %315
    %v317 = vsel %vm151, %v142, 0.0
    %318 = vadd.xlane.f32.xlu0 %v317
    %v319 = vpop.xlane.xlu0 %318
    %v320 = vsel %vm151, %v143, 0.0
    %321 = vadd.xlane.f32.xlu0 %v320
    %v322 = vpop.xlane.xlu0 %321
    %v323 = vsel %vm151, %v144, 0.0
    %324 = vadd.xlane.f32.xlu0 %v323
    %v325 = vpop.xlane.xlu0 %324
    %v326 = vsel %vm151, %v145, 0.0
    %327 = vadd.xlane.f32.xlu0 %v326
    %v328 = vpop.xlane.xlu0 %327
    %v329 = vsel %vm151, %v146, 0.0
    %330 = vadd.xlane.f32.xlu0 %v329
    %v331 = vpop.xlane.xlu0 %330
    %v332 = vsel %vm151, %v147, 0.0
    %333 = vadd.xlane.f32.xlu0 %v332
    %v334 = vpop.xlane.xlu0 %333
    %v335 = vsel %vm151, %v148, 0.0
    %336 = vadd.xlane.f32.xlu0 %v335
    %v337 = vpop.xlane.xlu0 %336
    %v338 = vsel %vm151, %v149, 0.0
    %339 = vadd.xlane.f32.xlu0 %v338
    %v340 = vpop.xlane.xlu0 %339
    %v341 = vsel %vm151, %v150, 0.0
    %342 = vadd.xlane.f32.xlu0 %v341
    %v343 = vpop.xlane.xlu0 %342
    %s344 = sld [smem:[#allocation2]]
    %v345 = vstv %s344
    %v346 = vadd.f32 %v154, %v345
    %v347 = vadd.f32 %v157, %v345
    %v348 = vadd.f32 %v160, %v345
    %v349 = vadd.f32 %v163, %v345
    %v350 = vadd.f32 %v166, %v345
    %v351 = vadd.f32 %v169, %v345
    %v352 = vadd.f32 %v172, %v345
    %v353 = vadd.f32 %v175, %v345
    %v354 = vadd.f32 %v178, %v345
    %v355 = vadd.f32 %v181, %v345
    %v356 = vadd.f32 %v184, %v345
    %v357 = vadd.f32 %v187, %v345
    %v358 = vadd.f32 %v190, %v345
    %v359 = vadd.f32 %v193, %v345
    %v360 = vadd.f32 %v196, %v345
    %v361 = vadd.f32 %v199, %v345
    %v362 = vadd.f32 %v202, %v345
    %v363 = vadd.f32 %v205, %v345
    %v364 = vadd.f32 %v208, %v345
    %v365 = vadd.f32 %v211, %v345
    %v366 = vadd.f32 %v214, %v345
    %v367 = vadd.f32 %v217, %v345
    %v368 = vadd.f32 %v220, %v345
    %v369 = vadd.f32 %v223, %v345
    %v370 = vadd.f32 %v226, %v345
    %v371 = vadd.f32 %v229, %v345
    %v372 = vadd.f32 %v232, %v345
    %v373 = vadd.f32 %v235, %v345
    %v374 = vadd.f32 %v238, %v345
    %v375 = vadd.f32 %v241, %v345
    %v376 = vadd.f32 %v244, %v345
    %v377 = vadd.f32 %v247, %v345
    %v378 = vadd.f32 %v250, %v345
    %v379 = vadd.f32 %v253, %v345
    %v380 = vadd.f32 %v256, %v345
    %v381 = vadd.f32 %v259, %v345
    %v382 = vadd.f32 %v262, %v345
    %v383 = vadd.f32 %v265, %v345
    %v384 = vadd.f32 %v268, %v345
    %v385 = vadd.f32 %v271, %v345
    %v386 = vadd.f32 %v274, %v345
    %v387 = vadd.f32 %v277, %v345
    %v388 = vadd.f32 %v280, %v345
    %v389 = vadd.f32 %v283, %v345
    %v390 = vadd.f32 %v286, %v345
    %v391 = vadd.f32 %v289, %v345
    %v392 = vadd.f32 %v292, %v345
    %v393 = vadd.f32 %v295, %v345
    %v394 = vadd.f32 %v298, %v345
    %v395 = vadd.f32 %v301, %v345
    %v396 = vadd.f32 %v304, %v345
    %v397 = vadd.f32 %v307, %v345
    %v398 = vadd.f32 %v310, %v345
    %v399 = vadd.f32 %v313, %v345
    %v400 = vadd.f32 %v316, %v345
    %v401 = vadd.f32 %v319, %v345
    %v402 = vadd.f32 %v322, %v345
    %v403 = vadd.f32 %v325, %v345
    %v404 = vadd.f32 %v328, %v345
    %v405 = vadd.f32 %v331, %v345
    %v406 = vadd.f32 %v334, %v345
    %v407 = vadd.f32 %v337, %v345
    %v408 = vadd.f32 %v340, %v345
    %v409 = vadd.f32 %v343, %v345
    %v410 = vxor.u32 %v346, 2147483648
    %v411 = vxor.u32 %v347, 2147483648
    %v412 = vxor.u32 %v348, 2147483648
    %v413 = vxor.u32 %v349, 2147483648
    %v414 = vxor.u32 %v350, 2147483648
    %v415 = vxor.u32 %v351, 2147483648
    %v416 = vxor.u32 %v352, 2147483648
    %v417 = vxor.u32 %v353, 2147483648
    %v418 = vxor.u32 %v354, 2147483648
    %v419 = vxor.u32 %v355, 2147483648
    %v420 = vxor.u32 %v356, 2147483648
    %v421 = vxor.u32 %v357, 2147483648
    %v422 = vxor.u32 %v358, 2147483648
    %v423 = vxor.u32 %v359, 2147483648
    %v424 = vxor.u32 %v360, 2147483648
    %v425 = vxor.u32 %v361, 2147483648
    %v426 = vxor.u32 %v362, 2147483648
    %v427 = vxor.u32 %v363, 2147483648
    %v428 = vxor.u32 %v364, 2147483648
    %v429 = vxor.u32 %v365, 2147483648
    %v430 = vxor.u32 %v366, 2147483648
    %v431 = vxor.u32 %v367, 2147483648
    %v432 = vxor.u32 %v368, 2147483648
    %v433 = vxor.u32 %v369, 2147483648
    %v434 = vxor.u32 %v370, 2147483648
    %v435 = vxor.u32 %v371, 2147483648
    %v436 = vxor.u32 %v372, 2147483648
    %v437 = vxor.u32 %v373, 2147483648
    %v438 = vxor.u32 %v374, 2147483648
    %v439 = vxor.u32 %v375, 2147483648
    %v440 = vxor.u32 %v376, 2147483648
    %v441 = vxor.u32 %v377, 2147483648
    %v442 = vxor.u32 %v378, 2147483648
    %v443 = vxor.u32 %v379, 2147483648
    %v444 = vxor.u32 %v380, 2147483648
    %v445 = vxor.u32 %v381, 2147483648
    %v446 = vxor.u32 %v382, 2147483648
    %v447 = vxor.u32 %v383, 2147483648
    %v448 = vxor.u32 %v384, 2147483648
    %v449 = vxor.u32 %v385, 2147483648
    %v450 = vxor.u32 %v386, 2147483648
    %v451 = vxor.u32 %v387, 2147483648
    %v452 = vxor.u32 %v388, 2147483648
    %v453 = vxor.u32 %v389, 2147483648
    %v454 = vxor.u32 %v390, 2147483648
    %v455 = vxor.u32 %v391, 2147483648
    %v456 = vxor.u32 %v392, 2147483648
    %v457 = vxor.u32 %v393, 2147483648
    %v458 = vxor.u32 %v394, 2147483648
    %v459 = vxor.u32 %v395, 2147483648
    %v460 = vxor.u32 %v396, 2147483648
    %v461 = vxor.u32 %v397, 2147483648
    %v462 = vxor.u32 %v398, 2147483648
    %v463 = vxor.u32 %v399, 2147483648
    %v464 = vxor.u32 %v400, 2147483648
    %v465 = vxor.u32 %v401, 2147483648
    %v466 = vxor.u32 %v402, 2147483648
    %v467 = vxor.u32 %v403, 2147483648
    %v468 = vxor.u32 %v404, 2147483648
    %v469 = vxor.u32 %v405, 2147483648
    %v470 = vxor.u32 %v406, 2147483648
    %v471 = vxor.u32 %v407, 2147483648
    %v472 = vxor.u32 %v408, 2147483648
    %v473 = vxor.u32 %v409, 2147483648
    %v474 = vmul.f32 %v410, 1.442695
    %v475 = vpow.pop %v474
    %v476 = vmul.f32 %v411, 1.442695
    %v477 = vpow.pop %v476
    %v478 = vmul.f32 %v412, 1.442695
    %v479 = vpow.pop %v478
    %v480 = vmul.f32 %v413, 1.442695
    %v481 = vpow.pop %v480
    %v482 = vmul.f32 %v414, 1.442695
    %v483 = vpow.pop %v482
    %v484 = vmul.f32 %v415, 1.442695
    %v485 = vpow.pop %v484
    %v486 = vmul.f32 %v416, 1.442695
    %v487 = vpow.pop %v486
    %v488 = vmul.f32 %v417, 1.442695
    %v489 = vpow.pop %v488
    %v490 = vmul.f32 %v418, 1.442695
    %v491 = vpow.pop %v490
    %v492 = vmul.f32 %v419, 1.442695
    %v493 = vpow.pop %v492
    %v494 = vmul.f32 %v420, 1.442695
    %v495 = vpow.pop %v494
    %v496 = vmul.f32 %v421, 1.442695
    %v497 = vpow.pop %v496
    %v498 = vmul.f32 %v422, 1.442695
    %v499 = vpow.pop %v498
    %v500 = vmul.f32 %v423, 1.442695
    %v501 = vpow.pop %v500
    %v502 = vmul.f32 %v424, 1.442695
    %v503 = vpow.pop %v502
    %v504 = vmul.f32 %v425, 1.442695
    %v505 = vpow.pop %v504
    %v506 = vmul.f32 %v426, 1.442695
    %v507 = vpow.pop %v506
    %v508 = vmul.f32 %v427, 1.442695
    %v509 = vpow.pop %v508
    %v510 = vmul.f32 %v428, 1.442695
    %v511 = vpow.pop %v510
    %v512 = vmul.f32 %v429, 1.442695
    %v513 = vpow.pop %v512
    %v514 = vmul.f32 %v430, 1.442695
    %v515 = vpow.pop %v514
    %v516 = vmul.f32 %v431, 1.442695
    %v517 = vpow.pop %v516
    %v518 = vmul.f32 %v432, 1.442695
    %v519 = vpow.pop %v518
    %v520 = vmul.f32 %v433, 1.442695
    %v521 = vpow.pop %v520
    %v522 = vmul.f32 %v434, 1.442695
    %v523 = vpow.pop %v522
    %v524 = vmul.f32 %v435, 1.442695
    %v525 = vpow.pop %v524
    %v526 = vmul.f32 %v436, 1.442695
    %v527 = vpow.pop %v526
    %v528 = vmul.f32 %v437, 1.442695
    %v529 = vpow.pop %v528
    %v530 = vmul.f32 %v438, 1.442695
    %v531 = vpow.pop %v530
    %v532 = vmul.f32 %v439, 1.442695
    %v533 = vpow.pop %v532
    %v534 = vmul.f32 %v440, 1.442695
    %v535 = vpow.pop %v534
    %v536 = vmul.f32 %v441, 1.442695
    %v537 = vpow.pop %v536
    %v538 = vmul.f32 %v442, 1.442695
    %v539 = vpow.pop %v538
    %v540 = vmul.f32 %v443, 1.442695
    %v541 = vpow.pop %v540
    %v542 = vmul.f32 %v444, 1.442695
    %v543 = vpow.pop %v542
    %v544 = vmul.f32 %v445, 1.442695
    %v545 = vpow.pop %v544
    %v546 = vmul.f32 %v446, 1.442695
    %v547 = vpow.pop %v546
    %v548 = vmul.f32 %v447, 1.442695
    %v549 = vpow.pop %v548
    %v550 = vmul.f32 %v448, 1.442695
    %v551 = vpow.pop %v550
    %v552 = vmul.f32 %v449, 1.442695
    %v553 = vpow.pop %v552
    %v554 = vmul.f32 %v450, 1.442695
    %v555 = vpow.pop %v554
    %v556 = vmul.f32 %v451, 1.442695
    %v557 = vpow.pop %v556
    %v558 = vmul.f32 %v452, 1.442695
    %v559 = vpow.pop %v558
    %v560 = vmul.f32 %v453, 1.442695
    %v561 = vpow.pop %v560
    %v562 = vmul.f32 %v454, 1.442695
    %v563 = vpow.pop %v562
    %v564 = vmul.f32 %v455, 1.442695
    %v565 = vpow.pop %v564
    %v566 = vmul.f32 %v456, 1.442695
    %v567 = vpow.pop %v566
    %v568 = vmul.f32 %v457, 1.442695
    %v569 = vpow.pop %v568
    %v570 = vmul.f32 %v458, 1.442695
    %v571 = vpow.pop %v570
    %v572 = vmul.f32 %v459, 1.442695
    %v573 = vpow.pop %v572
    %v574 = vmul.f32 %v460, 1.442695
    %v575 = vpow.pop %v574
    %v576 = vmul.f32 %v461, 1.442695
    %v577 = vpow.pop %v576
    %v578 = vmul.f32 %v462, 1.442695
    %v579 = vpow.pop %v578
    %v580 = vmul.f32 %v463, 1.442695
    %v581 = vpow.pop %v580
    %v582 = vmul.f32 %v464, 1.442695
    %v583 = vpow.pop %v582
    %v584 = vmul.f32 %v465, 1.442695
    %v585 = vpow.pop %v584
    %v586 = vmul.f32 %v466, 1.442695
    %v587 = vpow.pop %v586
    %v588 = vmul.f32 %v467, 1.442695
    %v589 = vpow.pop %v588
    %v590 = vmul.f32 %v468, 1.442695
    %v591 = vpow.pop %v590
    %v592 = vmul.f32 %v469, 1.442695
    %v593 = vpow.pop %v592
    %v594 = vmul.f32 %v470, 1.442695
    %v595 = vpow.pop %v594
    %v596 = vmul.f32 %v471, 1.442695
    %v597 = vpow.pop %v596
    %v598 = vmul.f32 %v472, 1.442695
    %v599 = vpow.pop %v598
    %v600 = vmul.f32 %v473, 1.442695
    %v601 = vpow.pop %v600
    %v602 = vadd.f32 %v475, 1.0
    %v603 = vadd.f32 %v477, 1.0
    %v604 = vadd.f32 %v479, 1.0
    %v605 = vadd.f32 %v481, 1.0
    %v606 = vadd.f32 %v483, 1.0
    %v607 = vadd.f32 %v485, 1.0
    %v608 = vadd.f32 %v487, 1.0
    %v609 = vadd.f32 %v489, 1.0
    %v610 = vadd.f32 %v491, 1.0
    %v611 = vadd.f32 %v493, 1.0
    %v612 = vadd.f32 %v495, 1.0
    %v613 = vadd.f32 %v497, 1.0
    %v614 = vadd.f32 %v499, 1.0
    %v615 = vadd.f32 %v501, 1.0
    %v616 = vadd.f32 %v503, 1.0
    %v617 = vadd.f32 %v505, 1.0
    %v618 = vadd.f32 %v507, 1.0
    %v619 = vadd.f32 %v509, 1.0
    %v620 = vadd.f32 %v511, 1.0
    %v621 = vadd.f32 %v513, 1.0
    %v622 = vadd.f32 %v515, 1.0
    %v623 = vadd.f32 %v517, 1.0
    %v624 = vadd.f32 %v519, 1.0
    %v625 = vadd.f32 %v521, 1.0
    %v626 = vadd.f32 %v523, 1.0
    %v627 = vadd.f32 %v525, 1.0
    %v628 = vadd.f32 %v527, 1.0
    %v629 = vadd.f32 %v529, 1.0
    %v630 = vadd.f32 %v531, 1.0
    %v631 = vadd.f32 %v533, 1.0
    %v632 = vadd.f32 %v535, 1.0
    %v633 = vadd.f32 %v537, 1.0
    %v634 = vadd.f32 %v539, 1.0
    %v635 = vadd.f32 %v541, 1.0
    %v636 = vadd.f32 %v543, 1.0
    %v637 = vadd.f32 %v545, 1.0
    %v638 = vadd.f32 %v547, 1.0
    %v639 = vadd.f32 %v549, 1.0
    %v640 = vadd.f32 %v551, 1.0
    %v641 = vadd.f32 %v553, 1.0
    %v642 = vadd.f32 %v555, 1.0
    %v643 = vadd.f32 %v557, 1.0
    %v644 = vadd.f32 %v559, 1.0
    %v645 = vadd.f32 %v561, 1.0
    %v646 = vadd.f32 %v563, 1.0
    %v647 = vadd.f32 %v565, 1.0
    %v648 = vadd.f32 %v567, 1.0
    %v649 = vadd.f32 %v569, 1.0
    %v650 = vadd.f32 %v571, 1.0
    %v651 = vadd.f32 %v573, 1.0
    %v652 = vadd.f32 %v575, 1.0
    %v653 = vadd.f32 %v577, 1.0
    %v654 = vadd.f32 %v579, 1.0
    %v655 = vadd.f32 %v581, 1.0
    %v656 = vadd.f32 %v583, 1.0
    %v657 = vadd.f32 %v585, 1.0
    %v658 = vadd.f32 %v587, 1.0
    %v659 = vadd.f32 %v589, 1.0
    %v660 = vadd.f32 %v591, 1.0
    %v661 = vadd.f32 %v593, 1.0
    %v662 = vadd.f32 %v595, 1.0
    %v663 = vadd.f32 %v597, 1.0
    %v664 = vadd.f32 %v599, 1.0
    %v665 = vadd.f32 %v601, 1.0
    %v666 = vrcp.pop %v602
    %v667 = vmul.f32 1.0, %v666
    %v668 = vrcp.pop %v603
    %v669 = vmul.f32 1.0, %v668
    %v670 = vrcp.pop %v604
    %v671 = vmul.f32 1.0, %v670
    %v672 = vrcp.pop %v605
    %v673 = vmul.f32 1.0, %v672
    %v674 = vrcp.pop %v606
    %v675 = vmul.f32 1.0, %v674
    %v676 = vrcp.pop %v607
    %v677 = vmul.f32 1.0, %v676
    %v678 = vrcp.pop %v608
    %v679 = vmul.f32 1.0, %v678
    %v680 = vrcp.pop %v609
    %v681 = vmul.f32 1.0, %v680
    %v682 = vrcp.pop %v610
    %v683 = vmul.f32 1.0, %v682
    %v684 = vrcp.pop %v611
    %v685 = vmul.f32 1.0, %v684
    %v686 = vrcp.pop %v612
    %v687 = vmul.f32 1.0, %v686
    %v688 = vrcp.pop %v613
    %v689 = vmul.f32 1.0, %v688
    %v690 = vrcp.pop %v614
    %v691 = vmul.f32 1.0, %v690
    %v692 = vrcp.pop %v615
    %v693 = vmul.f32 1.0, %v692
    %v694 = vrcp.pop %v616
    %v695 = vmul.f32 1.0, %v694
    %v696 = vrcp.pop %v617
    %v697 = vmul.f32 1.0, %v696
    %v698 = vrcp.pop %v618
    %v699 = vmul.f32 1.0, %v698
    %v700 = vrcp.pop %v619
    %v701 = vmul.f32 1.0, %v700
    %v702 = vrcp.pop %v620
    %v703 = vmul.f32 1.0, %v702
    %v704 = vrcp.pop %v621
    %v705 = vmul.f32 1.0, %v704
    %v706 = vrcp.pop %v622
    %v707 = vmul.f32 1.0, %v706
    %v708 = vrcp.pop %v623
    %v709 = vmul.f32 1.0, %v708
    %v710 = vrcp.pop %v624
    %v711 = vmul.f32 1.0, %v710
    %v712 = vrcp.pop %v625
    %v713 = vmul.f32 1.0, %v712
    %v714 = vrcp.pop %v626
    %v715 = vmul.f32 1.0, %v714
    %v716 = vrcp.pop %v627
    %v717 = vmul.f32 1.0, %v716
    %v718 = vrcp.pop %v628
    %v719 = vmul.f32 1.0, %v718
    %v720 = vrcp.pop %v629
    %v721 = vmul.f32 1.0, %v720
    %v722 = vrcp.pop %v630
    %v723 = vmul.f32 1.0, %v722
    %v724 = vrcp.pop %v631
    %v725 = vmul.f32 1.0, %v724
    %v726 = vrcp.pop %v632
    %v727 = vmul.f32 1.0, %v726
    %v728 = vrcp.pop %v633
    %v729 = vmul.f32 1.0, %v728
    %v730 = vrcp.pop %v634
    %v731 = vmul.f32 1.0, %v730
    %v732 = vrcp.pop %v635
    %v733 = vmul.f32 1.0, %v732
    %v734 = vrcp.pop %v636
    %v735 = vmul.f32 1.0, %v734
    %v736 = vrcp.pop %v637
    %v737 = vmul.f32 1.0, %v736
    %v738 = vrcp.pop %v638
    %v739 = vmul.f32 1.0, %v738
    %v740 = vrcp.pop %v639
    %v741 = vmul.f32 1.0, %v740
    %v742 = vrcp.pop %v640
    %v743 = vmul.f32 1.0, %v742
    %v744 = vrcp.pop %v641
    %v745 = vmul.f32 1.0, %v744
    %v746 = vrcp.pop %v642
    %v747 = vmul.f32 1.0, %v746
    %v748 = vrcp.pop %v643
    %v749 = vmul.f32 1.0, %v748
    %v750 = vrcp.pop %v644
    %v751 = vmul.f32 1.0, %v750
    %v752 = vrcp.pop %v645
    %v753 = vmul.f32 1.0, %v752
    %v754 = vrcp.pop %v646
    %v755 = vmul.f32 1.0, %v754
    %v756 = vrcp.pop %v647
    %v757 = vmul.f32 1.0, %v756
    %v758 = vrcp.pop %v648
    %v759 = vmul.f32 1.0, %v758
    %v760 = vrcp.pop %v649
    %v761 = vmul.f32 1.0, %v760
    %v762 = vrcp.pop %v650
    %v763 = vmul.f32 1.0, %v762
    %v764 = vrcp.pop %v651
    %v765 = vmul.f32 1.0, %v764
    %v766 = vrcp.pop %v652
    %v767 = vmul.f32 1.0, %v766
    %v768 = vrcp.pop %v653
    %v769 = vmul.f32 1.0, %v768
    %v770 = vrcp.pop %v654
    %v771 = vmul.f32 1.0, %v770
    %v772 = vrcp.pop %v655
    %v773 = vmul.f32 1.0, %v772
    %v774 = vrcp.pop %v656
    %v775 = vmul.f32 1.0, %v774
    %v776 = vrcp.pop %v657
    %v777 = vmul.f32 1.0, %v776
    %v778 = vrcp.pop %v658
    %v779 = vmul.f32 1.0, %v778
    %v780 = vrcp.pop %v659
    %v781 = vmul.f32 1.0, %v780
    %v782 = vrcp.pop %v660
    %v783 = vmul.f32 1.0, %v782
    %v784 = vrcp.pop %v661
    %v785 = vmul.f32 1.0, %v784
    %v786 = vrcp.pop %v662
    %v787 = vmul.f32 1.0, %v786
    %v788 = vrcp.pop %v663
    %v789 = vmul.f32 1.0, %v788
    %v790 = vrcp.pop %v664
    %v791 = vmul.f32 1.0, %v790
    %v792 = vrcp.pop %v665
    %v793 = vmul.f32 1.0, %v792
    %v858 = vlaneseq
    %v859 = vshrl.u32 %v858, 7
    %v860 = vsub.s32 0, %v859
    %v861 = vrot.slane %v667, %v860
    %v862 = vlaneseq
    %v863 = vshrl.u32 %v862, 7
    %v864 = vsub.s32 1, %v863
    %v865 = vrot.slane %v667, %v864
    %v866 = vlaneseq
    %v867 = vshrl.u32 %v866, 7
    %v868 = vsub.s32 2, %v867
    %v869 = vrot.slane %v667, %v868
    %v870 = vlaneseq
    %v871 = vshrl.u32 %v870, 7
    %v872 = vsub.s32 3, %v871
    %v873 = vrot.slane %v667, %v872
    %v874 = vlaneseq
    %v875 = vshrl.u32 %v874, 7
    %v876 = vsub.s32 4, %v875
    %v877 = vrot.slane %v667, %v876
    %v878 = vlaneseq
    %v879 = vshrl.u32 %v878, 7
    %v880 = vsub.s32 5, %v879
    %v881 = vrot.slane %v667, %v880
    %v882 = vlaneseq
    %v883 = vshrl.u32 %v882, 7
    %v884 = vsub.s32 6, %v883
    %v885 = vrot.slane %v667, %v884
    %v886 = vlaneseq
    %v887 = vshrl.u32 %v886, 7
    %v888 = vsub.s32 7, %v887
    %v889 = vrot.slane %v667, %v888
    %v890 = vlaneseq
    %v891 = vshrl.u32 %v890, 7
    %v892 = vsub.s32 0, %v891
    %v893 = vrot.slane %v669, %v892
    %v894 = vlaneseq
    %v895 = vshrl.u32 %v894, 7
    %v896 = vsub.s32 1, %v895
    %v897 = vrot.slane %v669, %v896
    %v898 = vlaneseq
    %v899 = vshrl.u32 %v898, 7
    %v900 = vsub.s32 2, %v899
    %v901 = vrot.slane %v669, %v900
    %v902 = vlaneseq
    %v903 = vshrl.u32 %v902, 7
    %v904 = vsub.s32 3, %v903
    %v905 = vrot.slane %v669, %v904
    %v906 = vlaneseq
    %v907 = vshrl.u32 %v906, 7
    %v908 = vsub.s32 4, %v907
    %v909 = vrot.slane %v669, %v908
    %v910 = vlaneseq
    %v911 = vshrl.u32 %v910, 7
    %v912 = vsub.s32 5, %v911
    %v913 = vrot.slane %v669, %v912
    %v914 = vlaneseq
    %v915 = vshrl.u32 %v914, 7
    %v916 = vsub.s32 6, %v915
    %v917 = vrot.slane %v669, %v916
    %v918 = vlaneseq
    %v919 = vshrl.u32 %v918, 7
    %v920 = vsub.s32 7, %v919
    %v921 = vrot.slane %v669, %v920
    %v922 = vlaneseq
    %v923 = vshrl.u32 %v922, 7
    %v924 = vsub.s32 0, %v923
    %v925 = vrot.slane %v671, %v924
    %v926 = vlaneseq
    %v927 = vshrl.u32 %v926, 7
    %v928 = vsub.s32 1, %v927
    %v929 = vrot.slane %v671, %v928
    %v930 = vlaneseq
    %v931 = vshrl.u32 %v930, 7
    %v932 = vsub.s32 2, %v931
    %v933 = vrot.slane %v671, %v932
    %v934 = vlaneseq
    %v935 = vshrl.u32 %v934, 7
    %v936 = vsub.s32 3, %v935
    %v937 = vrot.slane %v671, %v936
    %v938 = vlaneseq
    %v939 = vshrl.u32 %v938, 7
    %v940 = vsub.s32 4, %v939
    %v941 = vrot.slane %v671, %v940
    %v942 = vlaneseq
    %v943 = vshrl.u32 %v942, 7
    %v944 = vsub.s32 5, %v943
    %v945 = vrot.slane %v671, %v944
    %v946 = vlaneseq
    %v947 = vshrl.u32 %v946, 7
    %v948 = vsub.s32 6, %v947
    %v949 = vrot.slane %v671, %v948
    %v950 = vlaneseq
    %v951 = vshrl.u32 %v950, 7
    %v952 = vsub.s32 7, %v951
    %v953 = vrot.slane %v671, %v952
    %v954 = vlaneseq
    %v955 = vshrl.u32 %v954, 7
    %v956 = vsub.s32 0, %v955
    %v957 = vrot.slane %v673, %v956
    %v958 = vlaneseq
    %v959 = vshrl.u32 %v958, 7
    %v960 = vsub.s32 1, %v959
    %v961 = vrot.slane %v673, %v960
    %v962 = vlaneseq
    %v963 = vshrl.u32 %v962, 7
    %v964 = vsub.s32 2, %v963
    %v965 = vrot.slane %v673, %v964
    %v966 = vlaneseq
    %v967 = vshrl.u32 %v966, 7
    %v968 = vsub.s32 3, %v967
    %v969 = vrot.slane %v673, %v968
    %v970 = vlaneseq
    %v971 = vshrl.u32 %v970, 7
    %v972 = vsub.s32 4, %v971
    %v973 = vrot.slane %v673, %v972
    %v974 = vlaneseq
    %v975 = vshrl.u32 %v974, 7
    %v976 = vsub.s32 5, %v975
    %v977 = vrot.slane %v673, %v976
    %v978 = vlaneseq
    %v979 = vshrl.u32 %v978, 7
    %v980 = vsub.s32 6, %v979
    %v981 = vrot.slane %v673, %v980
    %v982 = vlaneseq
    %v983 = vshrl.u32 %v982, 7
    %v984 = vsub.s32 7, %v983
    %v985 = vrot.slane %v673, %v984
    %v986 = vlaneseq
    %v987 = vshrl.u32 %v986, 7
    %v988 = vsub.s32 0, %v987
    %v989 = vrot.slane %v675, %v988
    %v990 = vlaneseq
    %v991 = vshrl.u32 %v990, 7
    %v992 = vsub.s32 1, %v991
    %v993 = vrot.slane %v675, %v992
    %v994 = vlaneseq
    %v995 = vshrl.u32 %v994, 7
    %v996 = vsub.s32 2, %v995
    %v997 = vrot.slane %v675, %v996
    %v998 = vlaneseq
    %v999 = vshrl.u32 %v998, 7
    %v1000 = vsub.s32 3, %v999
    %v1001 = vrot.slane %v675, %v1000
    %v1002 = vlaneseq
    %v1003 = vshrl.u32 %v1002, 7
    %v1004 = vsub.s32 4, %v1003
    %v1005 = vrot.slane %v675, %v1004
    %v1006 = vlaneseq
    %v1007 = vshrl.u32 %v1006, 7
    %v1008 = vsub.s32 5, %v1007
    %v1009 = vrot.slane %v675, %v1008
    %v1010 = vlaneseq
    %v1011 = vshrl.u32 %v1010, 7
    %v1012 = vsub.s32 6, %v1011
    %v1013 = vrot.slane %v675, %v1012
    %v1014 = vlaneseq
    %v1015 = vshrl.u32 %v1014, 7
    %v1016 = vsub.s32 7, %v1015
    %v1017 = vrot.slane %v675, %v1016
    %v1018 = vlaneseq
    %v1019 = vshrl.u32 %v1018, 7
    %v1020 = vsub.s32 0, %v1019
    %v1021 = vrot.slane %v677, %v1020
    %v1022 = vlaneseq
    %v1023 = vshrl.u32 %v1022, 7
    %v1024 = vsub.s32 1, %v1023
    %v1025 = vrot.slane %v677, %v1024
    %v1026 = vlaneseq
    %v1027 = vshrl.u32 %v1026, 7
    %v1028 = vsub.s32 2, %v1027
    %v1029 = vrot.slane %v677, %v1028
    %v1030 = vlaneseq
    %v1031 = vshrl.u32 %v1030, 7
    %v1032 = vsub.s32 3, %v1031
    %v1033 = vrot.slane %v677, %v1032
    %v1034 = vlaneseq
    %v1035 = vshrl.u32 %v1034, 7
    %v1036 = vsub.s32 4, %v1035
    %v1037 = vrot.slane %v677, %v1036
    %v1038 = vlaneseq
    %v1039 = vshrl.u32 %v1038, 7
    %v1040 = vsub.s32 5, %v1039
    %v1041 = vrot.slane %v677, %v1040
    %v1042 = vlaneseq
    %v1043 = vshrl.u32 %v1042, 7
    %v1044 = vsub.s32 6, %v1043
    %v1045 = vrot.slane %v677, %v1044
    %v1046 = vlaneseq
    %v1047 = vshrl.u32 %v1046, 7
    %v1048 = vsub.s32 7, %v1047
    %v1049 = vrot.slane %v677, %v1048
    %v1050 = vlaneseq
    %v1051 = vshrl.u32 %v1050, 7
    %v1052 = vsub.s32 0, %v1051
    %v1053 = vrot.slane %v679, %v1052
    %v1054 = vlaneseq
    %v1055 = vshrl.u32 %v1054, 7
    %v1056 = vsub.s32 1, %v1055
    %v1057 = vrot.slane %v679, %v1056
    %v1058 = vlaneseq
    %v1059 = vshrl.u32 %v1058, 7
    %v1060 = vsub.s32 2, %v1059
    %v1061 = vrot.slane %v679, %v1060
    %v1062 = vlaneseq
    %v1063 = vshrl.u32 %v1062, 7
    %v1064 = vsub.s32 3, %v1063
    %v1065 = vrot.slane %v679, %v1064
    %v1066 = vlaneseq
    %v1067 = vshrl.u32 %v1066, 7
    %v1068 = vsub.s32 4, %v1067
    %v1069 = vrot.slane %v679, %v1068
    %v1070 = vlaneseq
    %v1071 = vshrl.u32 %v1070, 7
    %v1072 = vsub.s32 5, %v1071
    %v1073 = vrot.slane %v679, %v1072
    %v1074 = vlaneseq
    %v1075 = vshrl.u32 %v1074, 7
    %v1076 = vsub.s32 6, %v1075
    %v1077 = vrot.slane %v679, %v1076
    %v1078 = vlaneseq
    %v1079 = vshrl.u32 %v1078, 7
    %v1080 = vsub.s32 7, %v1079
    %v1081 = vrot.slane %v679, %v1080
    %v1082 = vlaneseq
    %v1083 = vshrl.u32 %v1082, 7
    %v1084 = vsub.s32 0, %v1083
    %v1085 = vrot.slane %v681, %v1084
    %v1086 = vlaneseq
    %v1087 = vshrl.u32 %v1086, 7
    %v1088 = vsub.s32 1, %v1087
    %v1089 = vrot.slane %v681, %v1088
    %v1090 = vlaneseq
    %v1091 = vshrl.u32 %v1090, 7
    %v1092 = vsub.s32 2, %v1091
    %v1093 = vrot.slane %v681, %v1092
    %v1094 = vlaneseq
    %v1095 = vshrl.u32 %v1094, 7
    %v1096 = vsub.s32 3, %v1095
    %v1097 = vrot.slane %v681, %v1096
    %v1098 = vlaneseq
    %v1099 = vshrl.u32 %v1098, 7
    %v1100 = vsub.s32 4, %v1099
    %v1101 = vrot.slane %v681, %v1100
    %v1102 = vlaneseq
    %v1103 = vshrl.u32 %v1102, 7
    %v1104 = vsub.s32 5, %v1103
    %v1105 = vrot.slane %v681, %v1104
    %v1106 = vlaneseq
    %v1107 = vshrl.u32 %v1106, 7
    %v1108 = vsub.s32 6, %v1107
    %v1109 = vrot.slane %v681, %v1108
    %v1110 = vlaneseq
    %v1111 = vshrl.u32 %v1110, 7
    %v1112 = vsub.s32 7, %v1111
    %v1113 = vrot.slane %v681, %v1112
    %v1114 = vlaneseq
    %v1115 = vshrl.u32 %v1114, 7
    %v1116 = vsub.s32 0, %v1115
    %v1117 = vrot.slane %v683, %v1116
    %v1118 = vlaneseq
    %v1119 = vshrl.u32 %v1118, 7
    %v1120 = vsub.s32 1, %v1119
    %v1121 = vrot.slane %v683, %v1120
    %v1122 = vlaneseq
    %v1123 = vshrl.u32 %v1122, 7
    %v1124 = vsub.s32 2, %v1123
    %v1125 = vrot.slane %v683, %v1124
    %v1126 = vlaneseq
    %v1127 = vshrl.u32 %v1126, 7
    %v1128 = vsub.s32 3, %v1127
    %v1129 = vrot.slane %v683, %v1128
    %v1130 = vlaneseq
    %v1131 = vshrl.u32 %v1130, 7
    %v1132 = vsub.s32 4, %v1131
    %v1133 = vrot.slane %v683, %v1132
    %v1134 = vlaneseq
    %v1135 = vshrl.u32 %v1134, 7
    %v1136 = vsub.s32 5, %v1135
    %v1137 = vrot.slane %v683, %v1136
    %v1138 = vlaneseq
    %v1139 = vshrl.u32 %v1138, 7
    %v1140 = vsub.s32 6, %v1139
    %v1141 = vrot.slane %v683, %v1140
    %v1142 = vlaneseq
    %v1143 = vshrl.u32 %v1142, 7
    %v1144 = vsub.s32 7, %v1143
    %v1145 = vrot.slane %v683, %v1144
    %v1146 = vlaneseq
    %v1147 = vshrl.u32 %v1146, 7
    %v1148 = vsub.s32 0, %v1147
    %v1149 = vrot.slane %v685, %v1148
    %v1150 = vlaneseq
    %v1151 = vshrl.u32 %v1150, 7
    %v1152 = vsub.s32 1, %v1151
    %v1153 = vrot.slane %v685, %v1152
    %v1154 = vlaneseq
    %v1155 = vshrl.u32 %v1154, 7
    %v1156 = vsub.s32 2, %v1155
    %v1157 = vrot.slane %v685, %v1156
    %v1158 = vlaneseq
    %v1159 = vshrl.u32 %v1158, 7
    %v1160 = vsub.s32 3, %v1159
    %v1161 = vrot.slane %v685, %v1160
    %v1162 = vlaneseq
    %v1163 = vshrl.u32 %v1162, 7
    %v1164 = vsub.s32 4, %v1163
    %v1165 = vrot.slane %v685, %v1164
    %v1166 = vlaneseq
    %v1167 = vshrl.u32 %v1166, 7
    %v1168 = vsub.s32 5, %v1167
    %v1169 = vrot.slane %v685, %v1168
    %v1170 = vlaneseq
    %v1171 = vshrl.u32 %v1170, 7
    %v1172 = vsub.s32 6, %v1171
    %v1173 = vrot.slane %v685, %v1172
    %v1174 = vlaneseq
    %v1175 = vshrl.u32 %v1174, 7
    %v1176 = vsub.s32 7, %v1175
    %v1177 = vrot.slane %v685, %v1176
    %v1178 = vlaneseq
    %v1179 = vshrl.u32 %v1178, 7
    %v1180 = vsub.s32 0, %v1179
    %v1181 = vrot.slane %v687, %v1180
    %v1182 = vlaneseq
    %v1183 = vshrl.u32 %v1182, 7
    %v1184 = vsub.s32 1, %v1183
    %v1185 = vrot.slane %v687, %v1184
    %v1186 = vlaneseq
    %v1187 = vshrl.u32 %v1186, 7
    %v1188 = vsub.s32 2, %v1187
    %v1189 = vrot.slane %v687, %v1188
    %v1190 = vlaneseq
    %v1191 = vshrl.u32 %v1190, 7
    %v1192 = vsub.s32 3, %v1191
    %v1193 = vrot.slane %v687, %v1192
    %v1194 = vlaneseq
    %v1195 = vshrl.u32 %v1194, 7
    %v1196 = vsub.s32 4, %v1195
    %v1197 = vrot.slane %v687, %v1196
    %v1198 = vlaneseq
    %v1199 = vshrl.u32 %v1198, 7
    %v1200 = vsub.s32 5, %v1199
    %v1201 = vrot.slane %v687, %v1200
    %v1202 = vlaneseq
    %v1203 = vshrl.u32 %v1202, 7
    %v1204 = vsub.s32 6, %v1203
    %v1205 = vrot.slane %v687, %v1204
    %v1206 = vlaneseq
    %v1207 = vshrl.u32 %v1206, 7
    %v1208 = vsub.s32 7, %v1207
    %v1209 = vrot.slane %v687, %v1208
    %v1210 = vlaneseq
    %v1211 = vshrl.u32 %v1210, 7
    %v1212 = vsub.s32 0, %v1211
    %v1213 = vrot.slane %v689, %v1212
    %v1214 = vlaneseq
    %v1215 = vshrl.u32 %v1214, 7
    %v1216 = vsub.s32 1, %v1215
    %v1217 = vrot.slane %v689, %v1216
    %v1218 = vlaneseq
    %v1219 = vshrl.u32 %v1218, 7
    %v1220 = vsub.s32 2, %v1219
    %v1221 = vrot.slane %v689, %v1220
    %v1222 = vlaneseq
    %v1223 = vshrl.u32 %v1222, 7
    %v1224 = vsub.s32 3, %v1223
    %v1225 = vrot.slane %v689, %v1224
    %v1226 = vlaneseq
    %v1227 = vshrl.u32 %v1226, 7
    %v1228 = vsub.s32 4, %v1227
    %v1229 = vrot.slane %v689, %v1228
    %v1230 = vlaneseq
    %v1231 = vshrl.u32 %v1230, 7
    %v1232 = vsub.s32 5, %v1231
    %v1233 = vrot.slane %v689, %v1232
    %v1234 = vlaneseq
    %v1235 = vshrl.u32 %v1234, 7
    %v1236 = vsub.s32 6, %v1235
    %v1237 = vrot.slane %v689, %v1236
    %v1238 = vlaneseq
    %v1239 = vshrl.u32 %v1238, 7
    %v1240 = vsub.s32 7, %v1239
    %v1241 = vrot.slane %v689, %v1240
    %v1242 = vlaneseq
    %v1243 = vshrl.u32 %v1242, 7
    %v1244 = vsub.s32 0, %v1243
    %v1245 = vrot.slane %v691, %v1244
    %v1246 = vlaneseq
    %v1247 = vshrl.u32 %v1246, 7
    %v1248 = vsub.s32 1, %v1247
    %v1249 = vrot.slane %v691, %v1248
    %v1250 = vlaneseq
    %v1251 = vshrl.u32 %v1250, 7
    %v1252 = vsub.s32 2, %v1251
    %v1253 = vrot.slane %v691, %v1252
    %v1254 = vlaneseq
    %v1255 = vshrl.u32 %v1254, 7
    %v1256 = vsub.s32 3, %v1255
    %v1257 = vrot.slane %v691, %v1256
    %v1258 = vlaneseq
    %v1259 = vshrl.u32 %v1258, 7
    %v1260 = vsub.s32 4, %v1259
    %v1261 = vrot.slane %v691, %v1260
    %v1262 = vlaneseq
    %v1263 = vshrl.u32 %v1262, 7
    %v1264 = vsub.s32 5, %v1263
    %v1265 = vrot.slane %v691, %v1264
    %v1266 = vlaneseq
    %v1267 = vshrl.u32 %v1266, 7
    %v1268 = vsub.s32 6, %v1267
    %v1269 = vrot.slane %v691, %v1268
    %v1270 = vlaneseq
    %v1271 = vshrl.u32 %v1270, 7
    %v1272 = vsub.s32 7, %v1271
    %v1273 = vrot.slane %v691, %v1272
    %v1274 = vlaneseq
    %v1275 = vshrl.u32 %v1274, 7
    %v1276 = vsub.s32 0, %v1275
    %v1277 = vrot.slane %v693, %v1276
    %v1278 = vlaneseq
    %v1279 = vshrl.u32 %v1278, 7
    %v1280 = vsub.s32 1, %v1279
    %v1281 = vrot.slane %v693, %v1280
    %v1282 = vlaneseq
    %v1283 = vshrl.u32 %v1282, 7
    %v1284 = vsub.s32 2, %v1283
    %v1285 = vrot.slane %v693, %v1284
    %v1286 = vlaneseq
    %v1287 = vshrl.u32 %v1286, 7
    %v1288 = vsub.s32 3, %v1287
    %v1289 = vrot.slane %v693, %v1288
    %v1290 = vlaneseq
    %v1291 = vshrl.u32 %v1290, 7
    %v1292 = vsub.s32 4, %v1291
    %v1293 = vrot.slane %v693, %v1292
    %v1294 = vlaneseq
    %v1295 = vshrl.u32 %v1294, 7
    %v1296 = vsub.s32 5, %v1295
    %v1297 = vrot.slane %v693, %v1296
    %v1298 = vlaneseq
    %v1299 = vshrl.u32 %v1298, 7
    %v1300 = vsub.s32 6, %v1299
    %v1301 = vrot.slane %v693, %v1300
    %v1302 = vlaneseq
    %v1303 = vshrl.u32 %v1302, 7
    %v1304 = vsub.s32 7, %v1303
    %v1305 = vrot.slane %v693, %v1304
    %v1306 = vlaneseq
    %v1307 = vshrl.u32 %v1306, 7
    %v1308 = vsub.s32 0, %v1307
    %v1309 = vrot.slane %v695, %v1308
    %v1310 = vlaneseq
    %v1311 = vshrl.u32 %v1310, 7
    %v1312 = vsub.s32 1, %v1311
    %v1313 = vrot.slane %v695, %v1312
    %v1314 = vlaneseq
    %v1315 = vshrl.u32 %v1314, 7
    %v1316 = vsub.s32 2, %v1315
    %v1317 = vrot.slane %v695, %v1316
    %v1318 = vlaneseq
    %v1319 = vshrl.u32 %v1318, 7
    %v1320 = vsub.s32 3, %v1319
    %v1321 = vrot.slane %v695, %v1320
    %v1322 = vlaneseq
    %v1323 = vshrl.u32 %v1322, 7
    %v1324 = vsub.s32 4, %v1323
    %v1325 = vrot.slane %v695, %v1324
    %v1326 = vlaneseq
    %v1327 = vshrl.u32 %v1326, 7
    %v1328 = vsub.s32 5, %v1327
    %v1329 = vrot.slane %v695, %v1328
    %v1330 = vlaneseq
    %v1331 = vshrl.u32 %v1330, 7
    %v1332 = vsub.s32 6, %v1331
    %v1333 = vrot.slane %v695, %v1332
    %v1334 = vlaneseq
    %v1335 = vshrl.u32 %v1334, 7
    %v1336 = vsub.s32 7, %v1335
    %v1337 = vrot.slane %v695, %v1336
    %v1338 = vlaneseq
    %v1339 = vshrl.u32 %v1338, 7
    %v1340 = vsub.s32 0, %v1339
    %v1341 = vrot.slane %v697, %v1340
    %v1342 = vlaneseq
    %v1343 = vshrl.u32 %v1342, 7
    %v1344 = vsub.s32 1, %v1343
    %v1345 = vrot.slane %v697, %v1344
    %v1346 = vlaneseq
    %v1347 = vshrl.u32 %v1346, 7
    %v1348 = vsub.s32 2, %v1347
    %v1349 = vrot.slane %v697, %v1348
    %v1350 = vlaneseq
    %v1351 = vshrl.u32 %v1350, 7
    %v1352 = vsub.s32 3, %v1351
    %v1353 = vrot.slane %v697, %v1352
    %v1354 = vlaneseq
    %v1355 = vshrl.u32 %v1354, 7
    %v1356 = vsub.s32 4, %v1355
    %v1357 = vrot.slane %v697, %v1356
    %v1358 = vlaneseq
    %v1359 = vshrl.u32 %v1358, 7
    %v1360 = vsub.s32 5, %v1359
    %v1361 = vrot.slane %v697, %v1360
    %v1362 = vlaneseq
    %v1363 = vshrl.u32 %v1362, 7
    %v1364 = vsub.s32 6, %v1363
    %v1365 = vrot.slane %v697, %v1364
    %v1366 = vlaneseq
    %v1367 = vshrl.u32 %v1366, 7
    %v1368 = vsub.s32 7, %v1367
    %v1369 = vrot.slane %v697, %v1368
    %v1370 = vlaneseq
    %v1371 = vshrl.u32 %v1370, 7
    %v1372 = vsub.s32 0, %v1371
    %v1373 = vrot.slane %v699, %v1372
    %v1374 = vlaneseq
    %v1375 = vshrl.u32 %v1374, 7
    %v1376 = vsub.s32 1, %v1375
    %v1377 = vrot.slane %v699, %v1376
    %v1378 = vlaneseq
    %v1379 = vshrl.u32 %v1378, 7
    %v1380 = vsub.s32 2, %v1379
    %v1381 = vrot.slane %v699, %v1380
    %v1382 = vlaneseq
    %v1383 = vshrl.u32 %v1382, 7
    %v1384 = vsub.s32 3, %v1383
    %v1385 = vrot.slane %v699, %v1384
    %v1386 = vlaneseq
    %v1387 = vshrl.u32 %v1386, 7
    %v1388 = vsub.s32 4, %v1387
    %v1389 = vrot.slane %v699, %v1388
    %v1390 = vlaneseq
    %v1391 = vshrl.u32 %v1390, 7
    %v1392 = vsub.s32 5, %v1391
    %v1393 = vrot.slane %v699, %v1392
    %v1394 = vlaneseq
    %v1395 = vshrl.u32 %v1394, 7
    %v1396 = vsub.s32 6, %v1395
    %v1397 = vrot.slane %v699, %v1396
    %v1398 = vlaneseq
    %v1399 = vshrl.u32 %v1398, 7
    %v1400 = vsub.s32 7, %v1399
    %v1401 = vrot.slane %v699, %v1400
    %v1402 = vlaneseq
    %v1403 = vshrl.u32 %v1402, 7
    %v1404 = vsub.s32 0, %v1403
    %v1405 = vrot.slane %v701, %v1404
    %v1406 = vlaneseq
    %v1407 = vshrl.u32 %v1406, 7
    %v1408 = vsub.s32 1, %v1407
    %v1409 = vrot.slane %v701, %v1408
    %v1410 = vlaneseq
    %v1411 = vshrl.u32 %v1410, 7
    %v1412 = vsub.s32 2, %v1411
    %v1413 = vrot.slane %v701, %v1412
    %v1414 = vlaneseq
    %v1415 = vshrl.u32 %v1414, 7
    %v1416 = vsub.s32 3, %v1415
    %v1417 = vrot.slane %v701, %v1416
    %v1418 = vlaneseq
    %v1419 = vshrl.u32 %v1418, 7
    %v1420 = vsub.s32 4, %v1419
    %v1421 = vrot.slane %v701, %v1420
    %v1422 = vlaneseq
    %v1423 = vshrl.u32 %v1422, 7
    %v1424 = vsub.s32 5, %v1423
    %v1425 = vrot.slane %v701, %v1424
    %v1426 = vlaneseq
    %v1427 = vshrl.u32 %v1426, 7
    %v1428 = vsub.s32 6, %v1427
    %v1429 = vrot.slane %v701, %v1428
    %v1430 = vlaneseq
    %v1431 = vshrl.u32 %v1430, 7
    %v1432 = vsub.s32 7, %v1431
    %v1433 = vrot.slane %v701, %v1432
    %v1434 = vlaneseq
    %v1435 = vshrl.u32 %v1434, 7
    %v1436 = vsub.s32 0, %v1435
    %v1437 = vrot.slane %v703, %v1436
    %v1438 = vlaneseq
    %v1439 = vshrl.u32 %v1438, 7
    %v1440 = vsub.s32 1, %v1439
    %v1441 = vrot.slane %v703, %v1440
    %v1442 = vlaneseq
    %v1443 = vshrl.u32 %v1442, 7
    %v1444 = vsub.s32 2, %v1443
    %v1445 = vrot.slane %v703, %v1444
    %v1446 = vlaneseq
    %v1447 = vshrl.u32 %v1446, 7
    %v1448 = vsub.s32 3, %v1447
    %v1449 = vrot.slane %v703, %v1448
    %v1450 = vlaneseq
    %v1451 = vshrl.u32 %v1450, 7
    %v1452 = vsub.s32 4, %v1451
    %v1453 = vrot.slane %v703, %v1452
    %v1454 = vlaneseq
    %v1455 = vshrl.u32 %v1454, 7
    %v1456 = vsub.s32 5, %v1455
    %v1457 = vrot.slane %v703, %v1456
    %v1458 = vlaneseq
    %v1459 = vshrl.u32 %v1458, 7
    %v1460 = vsub.s32 6, %v1459
    %v1461 = vrot.slane %v703, %v1460
    %v1462 = vlaneseq
    %v1463 = vshrl.u32 %v1462, 7
    %v1464 = vsub.s32 7, %v1463
    %v1465 = vrot.slane %v703, %v1464
    %v1466 = vlaneseq
    %v1467 = vshrl.u32 %v1466, 7
    %v1468 = vsub.s32 0, %v1467
    %v1469 = vrot.slane %v705, %v1468
    %v1470 = vlaneseq
    %v1471 = vshrl.u32 %v1470, 7
    %v1472 = vsub.s32 1, %v1471
    %v1473 = vrot.slane %v705, %v1472
    %v1474 = vlaneseq
    %v1475 = vshrl.u32 %v1474, 7
    %v1476 = vsub.s32 2, %v1475
    %v1477 = vrot.slane %v705, %v1476
    %v1478 = vlaneseq
    %v1479 = vshrl.u32 %v1478, 7
    %v1480 = vsub.s32 3, %v1479
    %v1481 = vrot.slane %v705, %v1480
    %v1482 = vlaneseq
    %v1483 = vshrl.u32 %v1482, 7
    %v1484 = vsub.s32 4, %v1483
    %v1485 = vrot.slane %v705, %v1484
    %v1486 = vlaneseq
    %v1487 = vshrl.u32 %v1486, 7
    %v1488 = vsub.s32 5, %v1487
    %v1489 = vrot.slane %v705, %v1488
    %v1490 = vlaneseq
    %v1491 = vshrl.u32 %v1490, 7
    %v1492 = vsub.s32 6, %v1491
    %v1493 = vrot.slane %v705, %v1492
    %v1494 = vlaneseq
    %v1495 = vshrl.u32 %v1494, 7
    %v1496 = vsub.s32 7, %v1495
    %v1497 = vrot.slane %v705, %v1496
    %v1498 = vlaneseq
    %v1499 = vshrl.u32 %v1498, 7
    %v1500 = vsub.s32 0, %v1499
    %v1501 = vrot.slane %v707, %v1500
    %v1502 = vlaneseq
    %v1503 = vshrl.u32 %v1502, 7
    %v1504 = vsub.s32 1, %v1503
    %v1505 = vrot.slane %v707, %v1504
    %v1506 = vlaneseq
    %v1507 = vshrl.u32 %v1506, 7
    %v1508 = vsub.s32 2, %v1507
    %v1509 = vrot.slane %v707, %v1508
    %v1510 = vlaneseq
    %v1511 = vshrl.u32 %v1510, 7
    %v1512 = vsub.s32 3, %v1511
    %v1513 = vrot.slane %v707, %v1512
    %v1514 = vlaneseq
    %v1515 = vshrl.u32 %v1514, 7
    %v1516 = vsub.s32 4, %v1515
    %v1517 = vrot.slane %v707, %v1516
    %v1518 = vlaneseq
    %v1519 = vshrl.u32 %v1518, 7
    %v1520 = vsub.s32 5, %v1519
    %v1521 = vrot.slane %v707, %v1520
    %v1522 = vlaneseq
    %v1523 = vshrl.u32 %v1522, 7
    %v1524 = vsub.s32 6, %v1523
    %v1525 = vrot.slane %v707, %v1524
    %v1526 = vlaneseq
    %v1527 = vshrl.u32 %v1526, 7
    %v1528 = vsub.s32 7, %v1527
    %v1529 = vrot.slane %v707, %v1528
    %v1530 = vlaneseq
    %v1531 = vshrl.u32 %v1530, 7
    %v1532 = vsub.s32 0, %v1531
    %v1533 = vrot.slane %v709, %v1532
    %v1534 = vlaneseq
    %v1535 = vshrl.u32 %v1534, 7
    %v1536 = vsub.s32 1, %v1535
    %v1537 = vrot.slane %v709, %v1536
    %v1538 = vlaneseq
    %v1539 = vshrl.u32 %v1538, 7
    %v1540 = vsub.s32 2, %v1539
    %v1541 = vrot.slane %v709, %v1540
    %v1542 = vlaneseq
    %v1543 = vshrl.u32 %v1542, 7
    %v1544 = vsub.s32 3, %v1543
    %v1545 = vrot.slane %v709, %v1544
    %v1546 = vlaneseq
    %v1547 = vshrl.u32 %v1546, 7
    %v1548 = vsub.s32 4, %v1547
    %v1549 = vrot.slane %v709, %v1548
    %v1550 = vlaneseq
    %v1551 = vshrl.u32 %v1550, 7
    %v1552 = vsub.s32 5, %v1551
    %v1553 = vrot.slane %v709, %v1552
    %v1554 = vlaneseq
    %v1555 = vshrl.u32 %v1554, 7
    %v1556 = vsub.s32 6, %v1555
    %v1557 = vrot.slane %v709, %v1556
    %v1558 = vlaneseq
    %v1559 = vshrl.u32 %v1558, 7
    %v1560 = vsub.s32 7, %v1559
    %v1561 = vrot.slane %v709, %v1560
    %v1562 = vlaneseq
    %v1563 = vshrl.u32 %v1562, 7
    %v1564 = vsub.s32 0, %v1563
    %v1565 = vrot.slane %v711, %v1564
    %v1566 = vlaneseq
    %v1567 = vshrl.u32 %v1566, 7
    %v1568 = vsub.s32 1, %v1567
    %v1569 = vrot.slane %v711, %v1568
    %v1570 = vlaneseq
    %v1571 = vshrl.u32 %v1570, 7
    %v1572 = vsub.s32 2, %v1571
    %v1573 = vrot.slane %v711, %v1572
    %v1574 = vlaneseq
    %v1575 = vshrl.u32 %v1574, 7
    %v1576 = vsub.s32 3, %v1575
    %v1577 = vrot.slane %v711, %v1576
    %v1578 = vlaneseq
    %v1579 = vshrl.u32 %v1578, 7
    %v1580 = vsub.s32 4, %v1579
    %v1581 = vrot.slane %v711, %v1580
    %v1582 = vlaneseq
    %v1583 = vshrl.u32 %v1582, 7
    %v1584 = vsub.s32 5, %v1583
    %v1585 = vrot.slane %v711, %v1584
    %v1586 = vlaneseq
    %v1587 = vshrl.u32 %v1586, 7
    %v1588 = vsub.s32 6, %v1587
    %v1589 = vrot.slane %v711, %v1588
    %v1590 = vlaneseq
    %v1591 = vshrl.u32 %v1590, 7
    %v1592 = vsub.s32 7, %v1591
    %v1593 = vrot.slane %v711, %v1592
    %v1594 = vlaneseq
    %v1595 = vshrl.u32 %v1594, 7
    %v1596 = vsub.s32 0, %v1595
    %v1597 = vrot.slane %v713, %v1596
    %v1598 = vlaneseq
    %v1599 = vshrl.u32 %v1598, 7
    %v1600 = vsub.s32 1, %v1599
    %v1601 = vrot.slane %v713, %v1600
    %v1602 = vlaneseq
    %v1603 = vshrl.u32 %v1602, 7
    %v1604 = vsub.s32 2, %v1603
    %v1605 = vrot.slane %v713, %v1604
    %v1606 = vlaneseq
    %v1607 = vshrl.u32 %v1606, 7
    %v1608 = vsub.s32 3, %v1607
    %v1609 = vrot.slane %v713, %v1608
    %v1610 = vlaneseq
    %v1611 = vshrl.u32 %v1610, 7
    %v1612 = vsub.s32 4, %v1611
    %v1613 = vrot.slane %v713, %v1612
    %v1614 = vlaneseq
    %v1615 = vshrl.u32 %v1614, 7
    %v1616 = vsub.s32 5, %v1615
    %v1617 = vrot.slane %v713, %v1616
    %v1618 = vlaneseq
    %v1619 = vshrl.u32 %v1618, 7
    %v1620 = vsub.s32 6, %v1619
    %v1621 = vrot.slane %v713, %v1620
    %v1622 = vlaneseq
    %v1623 = vshrl.u32 %v1622, 7
    %v1624 = vsub.s32 7, %v1623
    %v1625 = vrot.slane %v713, %v1624
    %v1626 = vlaneseq
    %v1627 = vshrl.u32 %v1626, 7
    %v1628 = vsub.s32 0, %v1627
    %v1629 = vrot.slane %v715, %v1628
    %v1630 = vlaneseq
    %v1631 = vshrl.u32 %v1630, 7
    %v1632 = vsub.s32 1, %v1631
    %v1633 = vrot.slane %v715, %v1632
    %v1634 = vlaneseq
    %v1635 = vshrl.u32 %v1634, 7
    %v1636 = vsub.s32 2, %v1635
    %v1637 = vrot.slane %v715, %v1636
    %v1638 = vlaneseq
    %v1639 = vshrl.u32 %v1638, 7
    %v1640 = vsub.s32 3, %v1639
    %v1641 = vrot.slane %v715, %v1640
    %v1642 = vlaneseq
    %v1643 = vshrl.u32 %v1642, 7
    %v1644 = vsub.s32 4, %v1643
    %v1645 = vrot.slane %v715, %v1644
    %v1646 = vlaneseq
    %v1647 = vshrl.u32 %v1646, 7
    %v1648 = vsub.s32 5, %v1647
    %v1649 = vrot.slane %v715, %v1648
    %v1650 = vlaneseq
    %v1651 = vshrl.u32 %v1650, 7
    %v1652 = vsub.s32 6, %v1651
    %v1653 = vrot.slane %v715, %v1652
    %v1654 = vlaneseq
    %v1655 = vshrl.u32 %v1654, 7
    %v1656 = vsub.s32 7, %v1655
    %v1657 = vrot.slane %v715, %v1656
    %v1658 = vlaneseq
    %v1659 = vshrl.u32 %v1658, 7
    %v1660 = vsub.s32 0, %v1659
    %v1661 = vrot.slane %v717, %v1660
    %v1662 = vlaneseq
    %v1663 = vshrl.u32 %v1662, 7
    %v1664 = vsub.s32 1, %v1663
    %v1665 = vrot.slane %v717, %v1664
    %v1666 = vlaneseq
    %v1667 = vshrl.u32 %v1666, 7
    %v1668 = vsub.s32 2, %v1667
    %v1669 = vrot.slane %v717, %v1668
    %v1670 = vlaneseq
    %v1671 = vshrl.u32 %v1670, 7
    %v1672 = vsub.s32 3, %v1671
    %v1673 = vrot.slane %v717, %v1672
    %v1674 = vlaneseq
    %v1675 = vshrl.u32 %v1674, 7
    %v1676 = vsub.s32 4, %v1675
    %v1677 = vrot.slane %v717, %v1676
    %v1678 = vlaneseq
    %v1679 = vshrl.u32 %v1678, 7
    %v1680 = vsub.s32 5, %v1679
    %v1681 = vrot.slane %v717, %v1680
    %v1682 = vlaneseq
    %v1683 = vshrl.u32 %v1682, 7
    %v1684 = vsub.s32 6, %v1683
    %v1685 = vrot.slane %v717, %v1684
    %v1686 = vlaneseq
    %v1687 = vshrl.u32 %v1686, 7
    %v1688 = vsub.s32 7, %v1687
    %v1689 = vrot.slane %v717, %v1688
    %v1690 = vlaneseq
    %v1691 = vshrl.u32 %v1690, 7
    %v1692 = vsub.s32 0, %v1691
    %v1693 = vrot.slane %v719, %v1692
    %v1694 = vlaneseq
    %v1695 = vshrl.u32 %v1694, 7
    %v1696 = vsub.s32 1, %v1695
    %v1697 = vrot.slane %v719, %v1696
    %v1698 = vlaneseq
    %v1699 = vshrl.u32 %v1698, 7
    %v1700 = vsub.s32 2, %v1699
    %v1701 = vrot.slane %v719, %v1700
    %v1702 = vlaneseq
    %v1703 = vshrl.u32 %v1702, 7
    %v1704 = vsub.s32 3, %v1703
    %v1705 = vrot.slane %v719, %v1704
    %v1706 = vlaneseq
    %v1707 = vshrl.u32 %v1706, 7
    %v1708 = vsub.s32 4, %v1707
    %v1709 = vrot.slane %v719, %v1708
    %v1710 = vlaneseq
    %v1711 = vshrl.u32 %v1710, 7
    %v1712 = vsub.s32 5, %v1711
    %v1713 = vrot.slane %v719, %v1712
    %v1714 = vlaneseq
    %v1715 = vshrl.u32 %v1714, 7
    %v1716 = vsub.s32 6, %v1715
    %v1717 = vrot.slane %v719, %v1716
    %v1718 = vlaneseq
    %v1719 = vshrl.u32 %v1718, 7
    %v1720 = vsub.s32 7, %v1719
    %v1721 = vrot.slane %v719, %v1720
    %v1722 = vlaneseq
    %v1723 = vshrl.u32 %v1722, 7
    %v1724 = vsub.s32 0, %v1723
    %v1725 = vrot.slane %v721, %v1724
    %v1726 = vlaneseq
    %v1727 = vshrl.u32 %v1726, 7
    %v1728 = vsub.s32 1, %v1727
    %v1729 = vrot.slane %v721, %v1728
    %v1730 = vlaneseq
    %v1731 = vshrl.u32 %v1730, 7
    %v1732 = vsub.s32 2, %v1731
    %v1733 = vrot.slane %v721, %v1732
    %v1734 = vlaneseq
    %v1735 = vshrl.u32 %v1734, 7
    %v1736 = vsub.s32 3, %v1735
    %v1737 = vrot.slane %v721, %v1736
    %v1738 = vlaneseq
    %v1739 = vshrl.u32 %v1738, 7
    %v1740 = vsub.s32 4, %v1739
    %v1741 = vrot.slane %v721, %v1740
    %v1742 = vlaneseq
    %v1743 = vshrl.u32 %v1742, 7
    %v1744 = vsub.s32 5, %v1743
    %v1745 = vrot.slane %v721, %v1744
    %v1746 = vlaneseq
    %v1747 = vshrl.u32 %v1746, 7
    %v1748 = vsub.s32 6, %v1747
    %v1749 = vrot.slane %v721, %v1748
    %v1750 = vlaneseq
    %v1751 = vshrl.u32 %v1750, 7
    %v1752 = vsub.s32 7, %v1751
    %v1753 = vrot.slane %v721, %v1752
    %v1754 = vlaneseq
    %v1755 = vshrl.u32 %v1754, 7
    %v1756 = vsub.s32 0, %v1755
    %v1757 = vrot.slane %v723, %v1756
    %v1758 = vlaneseq
    %v1759 = vshrl.u32 %v1758, 7
    %v1760 = vsub.s32 1, %v1759
    %v1761 = vrot.slane %v723, %v1760
    %v1762 = vlaneseq
    %v1763 = vshrl.u32 %v1762, 7
    %v1764 = vsub.s32 2, %v1763
    %v1765 = vrot.slane %v723, %v1764
    %v1766 = vlaneseq
    %v1767 = vshrl.u32 %v1766, 7
    %v1768 = vsub.s32 3, %v1767
    %v1769 = vrot.slane %v723, %v1768
    %v1770 = vlaneseq
    %v1771 = vshrl.u32 %v1770, 7
    %v1772 = vsub.s32 4, %v1771
    %v1773 = vrot.slane %v723, %v1772
    %v1774 = vlaneseq
    %v1775 = vshrl.u32 %v1774, 7
    %v1776 = vsub.s32 5, %v1775
    %v1777 = vrot.slane %v723, %v1776
    %v1778 = vlaneseq
    %v1779 = vshrl.u32 %v1778, 7
    %v1780 = vsub.s32 6, %v1779
    %v1781 = vrot.slane %v723, %v1780
    %v1782 = vlaneseq
    %v1783 = vshrl.u32 %v1782, 7
    %v1784 = vsub.s32 7, %v1783
    %v1785 = vrot.slane %v723, %v1784
    %v1786 = vlaneseq
    %v1787 = vshrl.u32 %v1786, 7
    %v1788 = vsub.s32 0, %v1787
    %v1789 = vrot.slane %v725, %v1788
    %v1790 = vlaneseq
    %v1791 = vshrl.u32 %v1790, 7
    %v1792 = vsub.s32 1, %v1791
    %v1793 = vrot.slane %v725, %v1792
    %v1794 = vlaneseq
    %v1795 = vshrl.u32 %v1794, 7
    %v1796 = vsub.s32 2, %v1795
    %v1797 = vrot.slane %v725, %v1796
    %v1798 = vlaneseq
    %v1799 = vshrl.u32 %v1798, 7
    %v1800 = vsub.s32 3, %v1799
    %v1801 = vrot.slane %v725, %v1800
    %v1802 = vlaneseq
    %v1803 = vshrl.u32 %v1802, 7
    %v1804 = vsub.s32 4, %v1803
    %v1805 = vrot.slane %v725, %v1804
    %v1806 = vlaneseq
    %v1807 = vshrl.u32 %v1806, 7
    %v1808 = vsub.s32 5, %v1807
    %v1809 = vrot.slane %v725, %v1808
    %v1810 = vlaneseq
    %v1811 = vshrl.u32 %v1810, 7
    %v1812 = vsub.s32 6, %v1811
    %v1813 = vrot.slane %v725, %v1812
    %v1814 = vlaneseq
    %v1815 = vshrl.u32 %v1814, 7
    %v1816 = vsub.s32 7, %v1815
    %v1817 = vrot.slane %v725, %v1816
    %v1818 = vlaneseq
    %v1819 = vshrl.u32 %v1818, 7
    %v1820 = vsub.s32 0, %v1819
    %v1821 = vrot.slane %v727, %v1820
    %v1822 = vlaneseq
    %v1823 = vshrl.u32 %v1822, 7
    %v1824 = vsub.s32 1, %v1823
    %v1825 = vrot.slane %v727, %v1824
    %v1826 = vlaneseq
    %v1827 = vshrl.u32 %v1826, 7
    %v1828 = vsub.s32 2, %v1827
    %v1829 = vrot.slane %v727, %v1828
    %v1830 = vlaneseq
    %v1831 = vshrl.u32 %v1830, 7
    %v1832 = vsub.s32 3, %v1831
    %v1833 = vrot.slane %v727, %v1832
    %v1834 = vlaneseq
    %v1835 = vshrl.u32 %v1834, 7
    %v1836 = vsub.s32 4, %v1835
    %v1837 = vrot.slane %v727, %v1836
    %v1838 = vlaneseq
    %v1839 = vshrl.u32 %v1838, 7
    %v1840 = vsub.s32 5, %v1839
    %v1841 = vrot.slane %v727, %v1840
    %v1842 = vlaneseq
    %v1843 = vshrl.u32 %v1842, 7
    %v1844 = vsub.s32 6, %v1843
    %v1845 = vrot.slane %v727, %v1844
    %v1846 = vlaneseq
    %v1847 = vshrl.u32 %v1846, 7
    %v1848 = vsub.s32 7, %v1847
    %v1849 = vrot.slane %v727, %v1848
    %v1850 = vlaneseq
    %v1851 = vshrl.u32 %v1850, 7
    %v1852 = vsub.s32 0, %v1851
    %v1853 = vrot.slane %v729, %v1852
    %v1854 = vlaneseq
    %v1855 = vshrl.u32 %v1854, 7
    %v1856 = vsub.s32 1, %v1855
    %v1857 = vrot.slane %v729, %v1856
    %v1858 = vlaneseq
    %v1859 = vshrl.u32 %v1858, 7
    %v1860 = vsub.s32 2, %v1859
    %v1861 = vrot.slane %v729, %v1860
    %v1862 = vlaneseq
    %v1863 = vshrl.u32 %v1862, 7
    %v1864 = vsub.s32 3, %v1863
    %v1865 = vrot.slane %v729, %v1864
    %v1866 = vlaneseq
    %v1867 = vshrl.u32 %v1866, 7
    %v1868 = vsub.s32 4, %v1867
    %v1869 = vrot.slane %v729, %v1868
    %v1870 = vlaneseq
    %v1871 = vshrl.u32 %v1870, 7
    %v1872 = vsub.s32 5, %v1871
    %v1873 = vrot.slane %v729, %v1872
    %v1874 = vlaneseq
    %v1875 = vshrl.u32 %v1874, 7
    %v1876 = vsub.s32 6, %v1875
    %v1877 = vrot.slane %v729, %v1876
    %v1878 = vlaneseq
    %v1879 = vshrl.u32 %v1878, 7
    %v1880 = vsub.s32 7, %v1879
    %v1881 = vrot.slane %v729, %v1880
    %v1882 = vlaneseq
    %v1883 = vshrl.u32 %v1882, 7
    %v1884 = vsub.s32 0, %v1883
    %v1885 = vrot.slane %v731, %v1884
    %v1886 = vlaneseq
    %v1887 = vshrl.u32 %v1886, 7
    %v1888 = vsub.s32 1, %v1887
    %v1889 = vrot.slane %v731, %v1888
    %v1890 = vlaneseq
    %v1891 = vshrl.u32 %v1890, 7
    %v1892 = vsub.s32 2, %v1891
    %v1893 = vrot.slane %v731, %v1892
    %v1894 = vlaneseq
    %v1895 = vshrl.u32 %v1894, 7
    %v1896 = vsub.s32 3, %v1895
    %v1897 = vrot.slane %v731, %v1896
    %v1898 = vlaneseq
    %v1899 = vshrl.u32 %v1898, 7
    %v1900 = vsub.s32 4, %v1899
    %v1901 = vrot.slane %v731, %v1900
    %v1902 = vlaneseq
    %v1903 = vshrl.u32 %v1902, 7
    %v1904 = vsub.s32 5, %v1903
    %v1905 = vrot.slane %v731, %v1904
    %v1906 = vlaneseq
    %v1907 = vshrl.u32 %v1906, 7
    %v1908 = vsub.s32 6, %v1907
    %v1909 = vrot.slane %v731, %v1908
    %v1910 = vlaneseq
    %v1911 = vshrl.u32 %v1910, 7
    %v1912 = vsub.s32 7, %v1911
    %v1913 = vrot.slane %v731, %v1912
    %v1914 = vlaneseq
    %v1915 = vshrl.u32 %v1914, 7
    %v1916 = vsub.s32 0, %v1915
    %v1917 = vrot.slane %v733, %v1916
    %v1918 = vlaneseq
    %v1919 = vshrl.u32 %v1918, 7
    %v1920 = vsub.s32 1, %v1919
    %v1921 = vrot.slane %v733, %v1920
    %v1922 = vlaneseq
    %v1923 = vshrl.u32 %v1922, 7
    %v1924 = vsub.s32 2, %v1923
    %v1925 = vrot.slane %v733, %v1924
    %v1926 = vlaneseq
    %v1927 = vshrl.u32 %v1926, 7
    %v1928 = vsub.s32 3, %v1927
    %v1929 = vrot.slane %v733, %v1928
    %v1930 = vlaneseq
    %v1931 = vshrl.u32 %v1930, 7
    %v1932 = vsub.s32 4, %v1931
    %v1933 = vrot.slane %v733, %v1932
    %v1934 = vlaneseq
    %v1935 = vshrl.u32 %v1934, 7
    %v1936 = vsub.s32 5, %v1935
    %v1937 = vrot.slane %v733, %v1936
    %v1938 = vlaneseq
    %v1939 = vshrl.u32 %v1938, 7
    %v1940 = vsub.s32 6, %v1939
    %v1941 = vrot.slane %v733, %v1940
    %v1942 = vlaneseq
    %v1943 = vshrl.u32 %v1942, 7
    %v1944 = vsub.s32 7, %v1943
    %v1945 = vrot.slane %v733, %v1944
    %v1946 = vlaneseq
    %v1947 = vshrl.u32 %v1946, 7
    %v1948 = vsub.s32 0, %v1947
    %v1949 = vrot.slane %v735, %v1948
    %v1950 = vlaneseq
    %v1951 = vshrl.u32 %v1950, 7
    %v1952 = vsub.s32 1, %v1951
    %v1953 = vrot.slane %v735, %v1952
    %v1954 = vlaneseq
    %v1955 = vshrl.u32 %v1954, 7
    %v1956 = vsub.s32 2, %v1955
    %v1957 = vrot.slane %v735, %v1956
    %v1958 = vlaneseq
    %v1959 = vshrl.u32 %v1958, 7
    %v1960 = vsub.s32 3, %v1959
    %v1961 = vrot.slane %v735, %v1960
    %v1962 = vlaneseq
    %v1963 = vshrl.u32 %v1962, 7
    %v1964 = vsub.s32 4, %v1963
    %v1965 = vrot.slane %v735, %v1964
    %v1966 = vlaneseq
    %v1967 = vshrl.u32 %v1966, 7
    %v1968 = vsub.s32 5, %v1967
    %v1969 = vrot.slane %v735, %v1968
    %v1970 = vlaneseq
    %v1971 = vshrl.u32 %v1970, 7
    %v1972 = vsub.s32 6, %v1971
    %v1973 = vrot.slane %v735, %v1972
    %v1974 = vlaneseq
    %v1975 = vshrl.u32 %v1974, 7
    %v1976 = vsub.s32 7, %v1975
    %v1977 = vrot.slane %v735, %v1976
    %v1978 = vlaneseq
    %v1979 = vshrl.u32 %v1978, 7
    %v1980 = vsub.s32 0, %v1979
    %v1981 = vrot.slane %v737, %v1980
    %v1982 = vlaneseq
    %v1983 = vshrl.u32 %v1982, 7
    %v1984 = vsub.s32 1, %v1983
    %v1985 = vrot.slane %v737, %v1984
    %v1986 = vlaneseq
    %v1987 = vshrl.u32 %v1986, 7
    %v1988 = vsub.s32 2, %v1987
    %v1989 = vrot.slane %v737, %v1988
    %v1990 = vlaneseq
    %v1991 = vshrl.u32 %v1990, 7
    %v1992 = vsub.s32 3, %v1991
    %v1993 = vrot.slane %v737, %v1992
    %v1994 = vlaneseq
    %v1995 = vshrl.u32 %v1994, 7
    %v1996 = vsub.s32 4, %v1995
    %v1997 = vrot.slane %v737, %v1996
    %v1998 = vlaneseq
    %v1999 = vshrl.u32 %v1998, 7
    %v2000 = vsub.s32 5, %v1999
    %v2001 = vrot.slane %v737, %v2000
    %v2002 = vlaneseq
    %v2003 = vshrl.u32 %v2002, 7
    %v2004 = vsub.s32 6, %v2003
    %v2005 = vrot.slane %v737, %v2004
    %v2006 = vlaneseq
    %v2007 = vshrl.u32 %v2006, 7
    %v2008 = vsub.s32 7, %v2007
    %v2009 = vrot.slane %v737, %v2008
    %v2010 = vlaneseq
    %v2011 = vshrl.u32 %v2010, 7
    %v2012 = vsub.s32 0, %v2011
    %v2013 = vrot.slane %v739, %v2012
    %v2014 = vlaneseq
    %v2015 = vshrl.u32 %v2014, 7
    %v2016 = vsub.s32 1, %v2015
    %v2017 = vrot.slane %v739, %v2016
    %v2018 = vlaneseq
    %v2019 = vshrl.u32 %v2018, 7
    %v2020 = vsub.s32 2, %v2019
    %v2021 = vrot.slane %v739, %v2020
    %v2022 = vlaneseq
    %v2023 = vshrl.u32 %v2022, 7
    %v2024 = vsub.s32 3, %v2023
    %v2025 = vrot.slane %v739, %v2024
    %v2026 = vlaneseq
    %v2027 = vshrl.u32 %v2026, 7
    %v2028 = vsub.s32 4, %v2027
    %v2029 = vrot.slane %v739, %v2028
    %v2030 = vlaneseq
    %v2031 = vshrl.u32 %v2030, 7
    %v2032 = vsub.s32 5, %v2031
    %v2033 = vrot.slane %v739, %v2032
    %v2034 = vlaneseq
    %v2035 = vshrl.u32 %v2034, 7
    %v2036 = vsub.s32 6, %v2035
    %v2037 = vrot.slane %v739, %v2036
    %v2038 = vlaneseq
    %v2039 = vshrl.u32 %v2038, 7
    %v2040 = vsub.s32 7, %v2039
    %v2041 = vrot.slane %v739, %v2040
    %v2042 = vlaneseq
    %v2043 = vshrl.u32 %v2042, 7
    %v2044 = vsub.s32 0, %v2043
    %v2045 = vrot.slane %v741, %v2044
    %v2046 = vlaneseq
    %v2047 = vshrl.u32 %v2046, 7
    %v2048 = vsub.s32 1, %v2047
    %v2049 = vrot.slane %v741, %v2048
    %v2050 = vlaneseq
    %v2051 = vshrl.u32 %v2050, 7
    %v2052 = vsub.s32 2, %v2051
    %v2053 = vrot.slane %v741, %v2052
    %v2054 = vlaneseq
    %v2055 = vshrl.u32 %v2054, 7
    %v2056 = vsub.s32 3, %v2055
    %v2057 = vrot.slane %v741, %v2056
    %v2058 = vlaneseq
    %v2059 = vshrl.u32 %v2058, 7
    %v2060 = vsub.s32 4, %v2059
    %v2061 = vrot.slane %v741, %v2060
    %v2062 = vlaneseq
    %v2063 = vshrl.u32 %v2062, 7
    %v2064 = vsub.s32 5, %v2063
    %v2065 = vrot.slane %v741, %v2064
    %v2066 = vlaneseq
    %v2067 = vshrl.u32 %v2066, 7
    %v2068 = vsub.s32 6, %v2067
    %v2069 = vrot.slane %v741, %v2068
    %v2070 = vlaneseq
    %v2071 = vshrl.u32 %v2070, 7
    %v2072 = vsub.s32 7, %v2071
    %v2073 = vrot.slane %v741, %v2072
    %v2074 = vlaneseq
    %v2075 = vshrl.u32 %v2074, 7
    %v2076 = vsub.s32 0, %v2075
    %v2077 = vrot.slane %v743, %v2076
    %v2078 = vlaneseq
    %v2079 = vshrl.u32 %v2078, 7
    %v2080 = vsub.s32 1, %v2079
    %v2081 = vrot.slane %v743, %v2080
    %v2082 = vlaneseq
    %v2083 = vshrl.u32 %v2082, 7
    %v2084 = vsub.s32 2, %v2083
    %v2085 = vrot.slane %v743, %v2084
    %v2086 = vlaneseq
    %v2087 = vshrl.u32 %v2086, 7
    %v2088 = vsub.s32 3, %v2087
    %v2089 = vrot.slane %v743, %v2088
    %v2090 = vlaneseq
    %v2091 = vshrl.u32 %v2090, 7
    %v2092 = vsub.s32 4, %v2091
    %v2093 = vrot.slane %v743, %v2092
    %v2094 = vlaneseq
    %v2095 = vshrl.u32 %v2094, 7
    %v2096 = vsub.s32 5, %v2095
    %v2097 = vrot.slane %v743, %v2096
    %v2098 = vlaneseq
    %v2099 = vshrl.u32 %v2098, 7
    %v2100 = vsub.s32 6, %v2099
    %v2101 = vrot.slane %v743, %v2100
    %v2102 = vlaneseq
    %v2103 = vshrl.u32 %v2102, 7
    %v2104 = vsub.s32 7, %v2103
    %v2105 = vrot.slane %v743, %v2104
    %v2106 = vlaneseq
    %v2107 = vshrl.u32 %v2106, 7
    %v2108 = vsub.s32 0, %v2107
    %v2109 = vrot.slane %v745, %v2108
    %v2110 = vlaneseq
    %v2111 = vshrl.u32 %v2110, 7
    %v2112 = vsub.s32 1, %v2111
    %v2113 = vrot.slane %v745, %v2112
    %v2114 = vlaneseq
    %v2115 = vshrl.u32 %v2114, 7
    %v2116 = vsub.s32 2, %v2115
    %v2117 = vrot.slane %v745, %v2116
    %v2118 = vlaneseq
    %v2119 = vshrl.u32 %v2118, 7
    %v2120 = vsub.s32 3, %v2119
    %v2121 = vrot.slane %v745, %v2120
    %v2122 = vlaneseq
    %v2123 = vshrl.u32 %v2122, 7
    %v2124 = vsub.s32 4, %v2123
    %v2125 = vrot.slane %v745, %v2124
    %v2126 = vlaneseq
    %v2127 = vshrl.u32 %v2126, 7
    %v2128 = vsub.s32 5, %v2127
    %v2129 = vrot.slane %v745, %v2128
    %v2130 = vlaneseq
    %v2131 = vshrl.u32 %v2130, 7
    %v2132 = vsub.s32 6, %v2131
    %v2133 = vrot.slane %v745, %v2132
    %v2134 = vlaneseq
    %v2135 = vshrl.u32 %v2134, 7
    %v2136 = vsub.s32 7, %v2135
    %v2137 = vrot.slane %v745, %v2136
    %v2138 = vlaneseq
    %v2139 = vshrl.u32 %v2138, 7
    %v2140 = vsub.s32 0, %v2139
    %v2141 = vrot.slane %v747, %v2140
    %v2142 = vlaneseq
    %v2143 = vshrl.u32 %v2142, 7
    %v2144 = vsub.s32 1, %v2143
    %v2145 = vrot.slane %v747, %v2144
    %v2146 = vlaneseq
    %v2147 = vshrl.u32 %v2146, 7
    %v2148 = vsub.s32 2, %v2147
    %v2149 = vrot.slane %v747, %v2148
    %v2150 = vlaneseq
    %v2151 = vshrl.u32 %v2150, 7
    %v2152 = vsub.s32 3, %v2151
    %v2153 = vrot.slane %v747, %v2152
    %v2154 = vlaneseq
    %v2155 = vshrl.u32 %v2154, 7
    %v2156 = vsub.s32 4, %v2155
    %v2157 = vrot.slane %v747, %v2156
    %v2158 = vlaneseq
    %v2159 = vshrl.u32 %v2158, 7
    %v2160 = vsub.s32 5, %v2159
    %v2161 = vrot.slane %v747, %v2160
    %v2162 = vlaneseq
    %v2163 = vshrl.u32 %v2162, 7
    %v2164 = vsub.s32 6, %v2163
    %v2165 = vrot.slane %v747, %v2164
    %v2166 = vlaneseq
    %v2167 = vshrl.u32 %v2166, 7
    %v2168 = vsub.s32 7, %v2167
    %v2169 = vrot.slane %v747, %v2168
    %v2170 = vlaneseq
    %v2171 = vshrl.u32 %v2170, 7
    %v2172 = vsub.s32 0, %v2171
    %v2173 = vrot.slane %v749, %v2172
    %v2174 = vlaneseq
    %v2175 = vshrl.u32 %v2174, 7
    %v2176 = vsub.s32 1, %v2175
    %v2177 = vrot.slane %v749, %v2176
    %v2178 = vlaneseq
    %v2179 = vshrl.u32 %v2178, 7
    %v2180 = vsub.s32 2, %v2179
    %v2181 = vrot.slane %v749, %v2180
    %v2182 = vlaneseq
    %v2183 = vshrl.u32 %v2182, 7
    %v2184 = vsub.s32 3, %v2183
    %v2185 = vrot.slane %v749, %v2184
    %v2186 = vlaneseq
    %v2187 = vshrl.u32 %v2186, 7
    %v2188 = vsub.s32 4, %v2187
    %v2189 = vrot.slane %v749, %v2188
    %v2190 = vlaneseq
    %v2191 = vshrl.u32 %v2190, 7
    %v2192 = vsub.s32 5, %v2191
    %v2193 = vrot.slane %v749, %v2192
    %v2194 = vlaneseq
    %v2195 = vshrl.u32 %v2194, 7
    %v2196 = vsub.s32 6, %v2195
    %v2197 = vrot.slane %v749, %v2196
    %v2198 = vlaneseq
    %v2199 = vshrl.u32 %v2198, 7
    %v2200 = vsub.s32 7, %v2199
    %v2201 = vrot.slane %v749, %v2200
    %v2202 = vlaneseq
    %v2203 = vshrl.u32 %v2202, 7
    %v2204 = vsub.s32 0, %v2203
    %v2205 = vrot.slane %v751, %v2204
    %v2206 = vlaneseq
    %v2207 = vshrl.u32 %v2206, 7
    %v2208 = vsub.s32 1, %v2207
    %v2209 = vrot.slane %v751, %v2208
    %v2210 = vlaneseq
    %v2211 = vshrl.u32 %v2210, 7
    %v2212 = vsub.s32 2, %v2211
    %v2213 = vrot.slane %v751, %v2212
    %v2214 = vlaneseq
    %v2215 = vshrl.u32 %v2214, 7
    %v2216 = vsub.s32 3, %v2215
    %v2217 = vrot.slane %v751, %v2216
    %v2218 = vlaneseq
    %v2219 = vshrl.u32 %v2218, 7
    %v2220 = vsub.s32 4, %v2219
    %v2221 = vrot.slane %v751, %v2220
    %v2222 = vlaneseq
    %v2223 = vshrl.u32 %v2222, 7
    %v2224 = vsub.s32 5, %v2223
    %v2225 = vrot.slane %v751, %v2224
    %v2226 = vlaneseq
    %v2227 = vshrl.u32 %v2226, 7
    %v2228 = vsub.s32 6, %v2227
    %v2229 = vrot.slane %v751, %v2228
    %v2230 = vlaneseq
    %v2231 = vshrl.u32 %v2230, 7
    %v2232 = vsub.s32 7, %v2231
    %v2233 = vrot.slane %v751, %v2232
    %v2234 = vlaneseq
    %v2235 = vshrl.u32 %v2234, 7
    %v2236 = vsub.s32 0, %v2235
    %v2237 = vrot.slane %v753, %v2236
    %v2238 = vlaneseq
    %v2239 = vshrl.u32 %v2238, 7
    %v2240 = vsub.s32 1, %v2239
    %v2241 = vrot.slane %v753, %v2240
    %v2242 = vlaneseq
    %v2243 = vshrl.u32 %v2242, 7
    %v2244 = vsub.s32 2, %v2243
    %v2245 = vrot.slane %v753, %v2244
    %v2246 = vlaneseq
    %v2247 = vshrl.u32 %v2246, 7
    %v2248 = vsub.s32 3, %v2247
    %v2249 = vrot.slane %v753, %v2248
    %v2250 = vlaneseq
    %v2251 = vshrl.u32 %v2250, 7
    %v2252 = vsub.s32 4, %v2251
    %v2253 = vrot.slane %v753, %v2252
    %v2254 = vlaneseq
    %v2255 = vshrl.u32 %v2254, 7
    %v2256 = vsub.s32 5, %v2255
    %v2257 = vrot.slane %v753, %v2256
    %v2258 = vlaneseq
    %v2259 = vshrl.u32 %v2258, 7
    %v2260 = vsub.s32 6, %v2259
    %v2261 = vrot.slane %v753, %v2260
    %v2262 = vlaneseq
    %v2263 = vshrl.u32 %v2262, 7
    %v2264 = vsub.s32 7, %v2263
    %v2265 = vrot.slane %v753, %v2264
    %v2266 = vlaneseq
    %v2267 = vshrl.u32 %v2266, 7
    %v2268 = vsub.s32 0, %v2267
    %v2269 = vrot.slane %v755, %v2268
    %v2270 = vlaneseq
    %v2271 = vshrl.u32 %v2270, 7
    %v2272 = vsub.s32 1, %v2271
    %v2273 = vrot.slane %v755, %v2272
    %v2274 = vlaneseq
    %v2275 = vshrl.u32 %v2274, 7
    %v2276 = vsub.s32 2, %v2275
    %v2277 = vrot.slane %v755, %v2276
    %v2278 = vlaneseq
    %v2279 = vshrl.u32 %v2278, 7
    %v2280 = vsub.s32 3, %v2279
    %v2281 = vrot.slane %v755, %v2280
    %v2282 = vlaneseq
    %v2283 = vshrl.u32 %v2282, 7
    %v2284 = vsub.s32 4, %v2283
    %v2285 = vrot.slane %v755, %v2284
    %v2286 = vlaneseq
    %v2287 = vshrl.u32 %v2286, 7
    %v2288 = vsub.s32 5, %v2287
    %v2289 = vrot.slane %v755, %v2288
    %v2290 = vlaneseq
    %v2291 = vshrl.u32 %v2290, 7
    %v2292 = vsub.s32 6, %v2291
    %v2293 = vrot.slane %v755, %v2292
    %v2294 = vlaneseq
    %v2295 = vshrl.u32 %v2294, 7
    %v2296 = vsub.s32 7, %v2295
    %v2297 = vrot.slane %v755, %v2296
    %v2298 = vlaneseq
    %v2299 = vshrl.u32 %v2298, 7
    %v2300 = vsub.s32 0, %v2299
    %v2301 = vrot.slane %v757, %v2300
    %v2302 = vlaneseq
    %v2303 = vshrl.u32 %v2302, 7
    %v2304 = vsub.s32 1, %v2303
    %v2305 = vrot.slane %v757, %v2304
    %v2306 = vlaneseq
    %v2307 = vshrl.u32 %v2306, 7
    %v2308 = vsub.s32 2, %v2307
    %v2309 = vrot.slane %v757, %v2308
    %v2310 = vlaneseq
    %v2311 = vshrl.u32 %v2310, 7
    %v2312 = vsub.s32 3, %v2311
    %v2313 = vrot.slane %v757, %v2312
    %v2314 = vlaneseq
    %v2315 = vshrl.u32 %v2314, 7
    %v2316 = vsub.s32 4, %v2315
    %v2317 = vrot.slane %v757, %v2316
    %v2318 = vlaneseq
    %v2319 = vshrl.u32 %v2318, 7
    %v2320 = vsub.s32 5, %v2319
    %v2321 = vrot.slane %v757, %v2320
    %v2322 = vlaneseq
    %v2323 = vshrl.u32 %v2322, 7
    %v2324 = vsub.s32 6, %v2323
    %v2325 = vrot.slane %v757, %v2324
    %v2326 = vlaneseq
    %v2327 = vshrl.u32 %v2326, 7
    %v2328 = vsub.s32 7, %v2327
    %v2329 = vrot.slane %v757, %v2328
    %v2330 = vlaneseq
    %v2331 = vshrl.u32 %v2330, 7
    %v2332 = vsub.s32 0, %v2331
    %v2333 = vrot.slane %v759, %v2332
    %v2334 = vlaneseq
    %v2335 = vshrl.u32 %v2334, 7
    %v2336 = vsub.s32 1, %v2335
    %v2337 = vrot.slane %v759, %v2336
    %v2338 = vlaneseq
    %v2339 = vshrl.u32 %v2338, 7
    %v2340 = vsub.s32 2, %v2339
    %v2341 = vrot.slane %v759, %v2340
    %v2342 = vlaneseq
    %v2343 = vshrl.u32 %v2342, 7
    %v2344 = vsub.s32 3, %v2343
    %v2345 = vrot.slane %v759, %v2344
    %v2346 = vlaneseq
    %v2347 = vshrl.u32 %v2346, 7
    %v2348 = vsub.s32 4, %v2347
    %v2349 = vrot.slane %v759, %v2348
    %v2350 = vlaneseq
    %v2351 = vshrl.u32 %v2350, 7
    %v2352 = vsub.s32 5, %v2351
    %v2353 = vrot.slane %v759, %v2352
    %v2354 = vlaneseq
    %v2355 = vshrl.u32 %v2354, 7
    %v2356 = vsub.s32 6, %v2355
    %v2357 = vrot.slane %v759, %v2356
    %v2358 = vlaneseq
    %v2359 = vshrl.u32 %v2358, 7
    %v2360 = vsub.s32 7, %v2359
    %v2361 = vrot.slane %v759, %v2360
    %v2362 = vlaneseq
    %v2363 = vshrl.u32 %v2362, 7
    %v2364 = vsub.s32 0, %v2363
    %v2365 = vrot.slane %v761, %v2364
    %v2366 = vlaneseq
    %v2367 = vshrl.u32 %v2366, 7
    %v2368 = vsub.s32 1, %v2367
    %v2369 = vrot.slane %v761, %v2368
    %v2370 = vlaneseq
    %v2371 = vshrl.u32 %v2370, 7
    %v2372 = vsub.s32 2, %v2371
    %v2373 = vrot.slane %v761, %v2372
    %v2374 = vlaneseq
    %v2375 = vshrl.u32 %v2374, 7
    %v2376 = vsub.s32 3, %v2375
    %v2377 = vrot.slane %v761, %v2376
    %v2378 = vlaneseq
    %v2379 = vshrl.u32 %v2378, 7
    %v2380 = vsub.s32 4, %v2379
    %v2381 = vrot.slane %v761, %v2380
    %v2382 = vlaneseq
    %v2383 = vshrl.u32 %v2382, 7
    %v2384 = vsub.s32 5, %v2383
    %v2385 = vrot.slane %v761, %v2384
    %v2386 = vlaneseq
    %v2387 = vshrl.u32 %v2386, 7
    %v2388 = vsub.s32 6, %v2387
    %v2389 = vrot.slane %v761, %v2388
    %v2390 = vlaneseq
    %v2391 = vshrl.u32 %v2390, 7
    %v2392 = vsub.s32 7, %v2391
    %v2393 = vrot.slane %v761, %v2392
    %v2394 = vlaneseq
    %v2395 = vshrl.u32 %v2394, 7
    %v2396 = vsub.s32 0, %v2395
    %v2397 = vrot.slane %v763, %v2396
    %v2398 = vlaneseq
    %v2399 = vshrl.u32 %v2398, 7
    %v2400 = vsub.s32 1, %v2399
    %v2401 = vrot.slane %v763, %v2400
    %v2402 = vlaneseq
    %v2403 = vshrl.u32 %v2402, 7
    %v2404 = vsub.s32 2, %v2403
    %v2405 = vrot.slane %v763, %v2404
    %v2406 = vlaneseq
    %v2407 = vshrl.u32 %v2406, 7
    %v2408 = vsub.s32 3, %v2407
    %v2409 = vrot.slane %v763, %v2408
    %v2410 = vlaneseq
    %v2411 = vshrl.u32 %v2410, 7
    %v2412 = vsub.s32 4, %v2411
    %v2413 = vrot.slane %v763, %v2412
    %v2414 = vlaneseq
    %v2415 = vshrl.u32 %v2414, 7
    %v2416 = vsub.s32 5, %v2415
    %v2417 = vrot.slane %v763, %v2416
    %v2418 = vlaneseq
    %v2419 = vshrl.u32 %v2418, 7
    %v2420 = vsub.s32 6, %v2419
    %v2421 = vrot.slane %v763, %v2420
    %v2422 = vlaneseq
    %v2423 = vshrl.u32 %v2422, 7
    %v2424 = vsub.s32 7, %v2423
    %v2425 = vrot.slane %v763, %v2424
    %v2426 = vlaneseq
    %v2427 = vshrl.u32 %v2426, 7
    %v2428 = vsub.s32 0, %v2427
    %v2429 = vrot.slane %v765, %v2428
    %v2430 = vlaneseq
    %v2431 = vshrl.u32 %v2430, 7
    %v2432 = vsub.s32 1, %v2431
    %v2433 = vrot.slane %v765, %v2432
    %v2434 = vlaneseq
    %v2435 = vshrl.u32 %v2434, 7
    %v2436 = vsub.s32 2, %v2435
    %v2437 = vrot.slane %v765, %v2436
    %v2438 = vlaneseq
    %v2439 = vshrl.u32 %v2438, 7
    %v2440 = vsub.s32 3, %v2439
    %v2441 = vrot.slane %v765, %v2440
    %v2442 = vlaneseq
    %v2443 = vshrl.u32 %v2442, 7
    %v2444 = vsub.s32 4, %v2443
    %v2445 = vrot.slane %v765, %v2444
    %v2446 = vlaneseq
    %v2447 = vshrl.u32 %v2446, 7
    %v2448 = vsub.s32 5, %v2447
    %v2449 = vrot.slane %v765, %v2448
    %v2450 = vlaneseq
    %v2451 = vshrl.u32 %v2450, 7
    %v2452 = vsub.s32 6, %v2451
    %v2453 = vrot.slane %v765, %v2452
    %v2454 = vlaneseq
    %v2455 = vshrl.u32 %v2454, 7
    %v2456 = vsub.s32 7, %v2455
    %v2457 = vrot.slane %v765, %v2456
    %v2458 = vlaneseq
    %v2459 = vshrl.u32 %v2458, 7
    %v2460 = vsub.s32 0, %v2459
    %v2461 = vrot.slane %v767, %v2460
    %v2462 = vlaneseq
    %v2463 = vshrl.u32 %v2462, 7
    %v2464 = vsub.s32 1, %v2463
    %v2465 = vrot.slane %v767, %v2464
    %v2466 = vlaneseq
    %v2467 = vshrl.u32 %v2466, 7
    %v2468 = vsub.s32 2, %v2467
    %v2469 = vrot.slane %v767, %v2468
    %v2470 = vlaneseq
    %v2471 = vshrl.u32 %v2470, 7
    %v2472 = vsub.s32 3, %v2471
    %v2473 = vrot.slane %v767, %v2472
    %v2474 = vlaneseq
    %v2475 = vshrl.u32 %v2474, 7
    %v2476 = vsub.s32 4, %v2475
    %v2477 = vrot.slane %v767, %v2476
    %v2478 = vlaneseq
    %v2479 = vshrl.u32 %v2478, 7
    %v2480 = vsub.s32 5, %v2479
    %v2481 = vrot.slane %v767, %v2480
    %v2482 = vlaneseq
    %v2483 = vshrl.u32 %v2482, 7
    %v2484 = vsub.s32 6, %v2483
    %v2485 = vrot.slane %v767, %v2484
    %v2486 = vlaneseq
    %v2487 = vshrl.u32 %v2486, 7
    %v2488 = vsub.s32 7, %v2487
    %v2489 = vrot.slane %v767, %v2488
    %v2490 = vlaneseq
    %v2491 = vshrl.u32 %v2490, 7
    %v2492 = vsub.s32 0, %v2491
    %v2493 = vrot.slane %v769, %v2492
    %v2494 = vlaneseq
    %v2495 = vshrl.u32 %v2494, 7
    %v2496 = vsub.s32 1, %v2495
    %v2497 = vrot.slane %v769, %v2496
    %v2498 = vlaneseq
    %v2499 = vshrl.u32 %v2498, 7
    %v2500 = vsub.s32 2, %v2499
    %v2501 = vrot.slane %v769, %v2500
    %v2502 = vlaneseq
    %v2503 = vshrl.u32 %v2502, 7
    %v2504 = vsub.s32 3, %v2503
    %v2505 = vrot.slane %v769, %v2504
    %v2506 = vlaneseq
    %v2507 = vshrl.u32 %v2506, 7
    %v2508 = vsub.s32 4, %v2507
    %v2509 = vrot.slane %v769, %v2508
    %v2510 = vlaneseq
    %v2511 = vshrl.u32 %v2510, 7
    %v2512 = vsub.s32 5, %v2511
    %v2513 = vrot.slane %v769, %v2512
    %v2514 = vlaneseq
    %v2515 = vshrl.u32 %v2514, 7
    %v2516 = vsub.s32 6, %v2515
    %v2517 = vrot.slane %v769, %v2516
    %v2518 = vlaneseq
    %v2519 = vshrl.u32 %v2518, 7
    %v2520 = vsub.s32 7, %v2519
    %v2521 = vrot.slane %v769, %v2520
    %v2522 = vlaneseq
    %v2523 = vshrl.u32 %v2522, 7
    %v2524 = vsub.s32 0, %v2523
    %v2525 = vrot.slane %v771, %v2524
    %v2526 = vlaneseq
    %v2527 = vshrl.u32 %v2526, 7
    %v2528 = vsub.s32 1, %v2527
    %v2529 = vrot.slane %v771, %v2528
    %v2530 = vlaneseq
    %v2531 = vshrl.u32 %v2530, 7
    %v2532 = vsub.s32 2, %v2531
    %v2533 = vrot.slane %v771, %v2532
    %v2534 = vlaneseq
    %v2535 = vshrl.u32 %v2534, 7
    %v2536 = vsub.s32 3, %v2535
    %v2537 = vrot.slane %v771, %v2536
    %v2538 = vlaneseq
    %v2539 = vshrl.u32 %v2538, 7
    %v2540 = vsub.s32 4, %v2539
    %v2541 = vrot.slane %v771, %v2540
    %v2542 = vlaneseq
    %v2543 = vshrl.u32 %v2542, 7
    %v2544 = vsub.s32 5, %v2543
    %v2545 = vrot.slane %v771, %v2544
    %v2546 = vlaneseq
    %v2547 = vshrl.u32 %v2546, 7
    %v2548 = vsub.s32 6, %v2547
    %v2549 = vrot.slane %v771, %v2548
    %v2550 = vlaneseq
    %v2551 = vshrl.u32 %v2550, 7
    %v2552 = vsub.s32 7, %v2551
    %v2553 = vrot.slane %v771, %v2552
    %v2554 = vlaneseq
    %v2555 = vshrl.u32 %v2554, 7
    %v2556 = vsub.s32 0, %v2555
    %v2557 = vrot.slane %v773, %v2556
    %v2558 = vlaneseq
    %v2559 = vshrl.u32 %v2558, 7
    %v2560 = vsub.s32 1, %v2559
    %v2561 = vrot.slane %v773, %v2560
    %v2562 = vlaneseq
    %v2563 = vshrl.u32 %v2562, 7
    %v2564 = vsub.s32 2, %v2563
    %v2565 = vrot.slane %v773, %v2564
    %v2566 = vlaneseq
    %v2567 = vshrl.u32 %v2566, 7
    %v2568 = vsub.s32 3, %v2567
    %v2569 = vrot.slane %v773, %v2568
    %v2570 = vlaneseq
    %v2571 = vshrl.u32 %v2570, 7
    %v2572 = vsub.s32 4, %v2571
    %v2573 = vrot.slane %v773, %v2572
    %v2574 = vlaneseq
    %v2575 = vshrl.u32 %v2574, 7
    %v2576 = vsub.s32 5, %v2575
    %v2577 = vrot.slane %v773, %v2576
    %v2578 = vlaneseq
    %v2579 = vshrl.u32 %v2578, 7
    %v2580 = vsub.s32 6, %v2579
    %v2581 = vrot.slane %v773, %v2580
    %v2582 = vlaneseq
    %v2583 = vshrl.u32 %v2582, 7
    %v2584 = vsub.s32 7, %v2583
    %v2585 = vrot.slane %v773, %v2584
    %v2586 = vlaneseq
    %v2587 = vshrl.u32 %v2586, 7
    %v2588 = vsub.s32 0, %v2587
    %v2589 = vrot.slane %v775, %v2588
    %v2590 = vlaneseq
    %v2591 = vshrl.u32 %v2590, 7
    %v2592 = vsub.s32 1, %v2591
    %v2593 = vrot.slane %v775, %v2592
    %v2594 = vlaneseq
    %v2595 = vshrl.u32 %v2594, 7
    %v2596 = vsub.s32 2, %v2595
    %v2597 = vrot.slane %v775, %v2596
    %v2598 = vlaneseq
    %v2599 = vshrl.u32 %v2598, 7
    %v2600 = vsub.s32 3, %v2599
    %v2601 = vrot.slane %v775, %v2600
    %v2602 = vlaneseq
    %v2603 = vshrl.u32 %v2602, 7
    %v2604 = vsub.s32 4, %v2603
    %v2605 = vrot.slane %v775, %v2604
    %v2606 = vlaneseq
    %v2607 = vshrl.u32 %v2606, 7
    %v2608 = vsub.s32 5, %v2607
    %v2609 = vrot.slane %v775, %v2608
    %v2610 = vlaneseq
    %v2611 = vshrl.u32 %v2610, 7
    %v2612 = vsub.s32 6, %v2611
    %v2613 = vrot.slane %v775, %v2612
    %v2614 = vlaneseq
    %v2615 = vshrl.u32 %v2614, 7
    %v2616 = vsub.s32 7, %v2615
    %v2617 = vrot.slane %v775, %v2616
    %v2618 = vlaneseq
    %v2619 = vshrl.u32 %v2618, 7
    %v2620 = vsub.s32 0, %v2619
    %v2621 = vrot.slane %v777, %v2620
    %v2622 = vlaneseq
    %v2623 = vshrl.u32 %v2622, 7
    %v2624 = vsub.s32 1, %v2623
    %v2625 = vrot.slane %v777, %v2624
    %v2626 = vlaneseq
    %v2627 = vshrl.u32 %v2626, 7
    %v2628 = vsub.s32 2, %v2627
    %v2629 = vrot.slane %v777, %v2628
    %v2630 = vlaneseq
    %v2631 = vshrl.u32 %v2630, 7
    %v2632 = vsub.s32 3, %v2631
    %v2633 = vrot.slane %v777, %v2632
    %v2634 = vlaneseq
    %v2635 = vshrl.u32 %v2634, 7
    %v2636 = vsub.s32 4, %v2635
    %v2637 = vrot.slane %v777, %v2636
    %v2638 = vlaneseq
    %v2639 = vshrl.u32 %v2638, 7
    %v2640 = vsub.s32 5, %v2639
    %v2641 = vrot.slane %v777, %v2640
    %v2642 = vlaneseq
    %v2643 = vshrl.u32 %v2642, 7
    %v2644 = vsub.s32 6, %v2643
    %v2645 = vrot.slane %v777, %v2644
    %v2646 = vlaneseq
    %v2647 = vshrl.u32 %v2646, 7
    %v2648 = vsub.s32 7, %v2647
    %v2649 = vrot.slane %v777, %v2648
    %v2650 = vlaneseq
    %v2651 = vshrl.u32 %v2650, 7
    %v2652 = vsub.s32 0, %v2651
    %v2653 = vrot.slane %v779, %v2652
    %v2654 = vlaneseq
    %v2655 = vshrl.u32 %v2654, 7
    %v2656 = vsub.s32 1, %v2655
    %v2657 = vrot.slane %v779, %v2656
    %v2658 = vlaneseq
    %v2659 = vshrl.u32 %v2658, 7
    %v2660 = vsub.s32 2, %v2659
    %v2661 = vrot.slane %v779, %v2660
    %v2662 = vlaneseq
    %v2663 = vshrl.u32 %v2662, 7
    %v2664 = vsub.s32 3, %v2663
    %v2665 = vrot.slane %v779, %v2664
    %v2666 = vlaneseq
    %v2667 = vshrl.u32 %v2666, 7
    %v2668 = vsub.s32 4, %v2667
    %v2669 = vrot.slane %v779, %v2668
    %v2670 = vlaneseq
    %v2671 = vshrl.u32 %v2670, 7
    %v2672 = vsub.s32 5, %v2671
    %v2673 = vrot.slane %v779, %v2672
    %v2674 = vlaneseq
    %v2675 = vshrl.u32 %v2674, 7
    %v2676 = vsub.s32 6, %v2675
    %v2677 = vrot.slane %v779, %v2676
    %v2678 = vlaneseq
    %v2679 = vshrl.u32 %v2678, 7
    %v2680 = vsub.s32 7, %v2679
    %v2681 = vrot.slane %v779, %v2680
    %v2682 = vlaneseq
    %v2683 = vshrl.u32 %v2682, 7
    %v2684 = vsub.s32 0, %v2683
    %v2685 = vrot.slane %v781, %v2684
    %v2686 = vlaneseq
    %v2687 = vshrl.u32 %v2686, 7
    %v2688 = vsub.s32 1, %v2687
    %v2689 = vrot.slane %v781, %v2688
    %v2690 = vlaneseq
    %v2691 = vshrl.u32 %v2690, 7
    %v2692 = vsub.s32 2, %v2691
    %v2693 = vrot.slane %v781, %v2692
    %v2694 = vlaneseq
    %v2695 = vshrl.u32 %v2694, 7
    %v2696 = vsub.s32 3, %v2695
    %v2697 = vrot.slane %v781, %v2696
    %v2698 = vlaneseq
    %v2699 = vshrl.u32 %v2698, 7
    %v2700 = vsub.s32 4, %v2699
    %v2701 = vrot.slane %v781, %v2700
    %v2702 = vlaneseq
    %v2703 = vshrl.u32 %v2702, 7
    %v2704 = vsub.s32 5, %v2703
    %v2705 = vrot.slane %v781, %v2704
    %v2706 = vlaneseq
    %v2707 = vshrl.u32 %v2706, 7
    %v2708 = vsub.s32 6, %v2707
    %v2709 = vrot.slane %v781, %v2708
    %v2710 = vlaneseq
    %v2711 = vshrl.u32 %v2710, 7
    %v2712 = vsub.s32 7, %v2711
    %v2713 = vrot.slane %v781, %v2712
    %v2714 = vlaneseq
    %v2715 = vshrl.u32 %v2714, 7
    %v2716 = vsub.s32 0, %v2715
    %v2717 = vrot.slane %v783, %v2716
    %v2718 = vlaneseq
    %v2719 = vshrl.u32 %v2718, 7
    %v2720 = vsub.s32 1, %v2719
    %v2721 = vrot.slane %v783, %v2720
    %v2722 = vlaneseq
    %v2723 = vshrl.u32 %v2722, 7
    %v2724 = vsub.s32 2, %v2723
    %v2725 = vrot.slane %v783, %v2724
    %v2726 = vlaneseq
    %v2727 = vshrl.u32 %v2726, 7
    %v2728 = vsub.s32 3, %v2727
    %v2729 = vrot.slane %v783, %v2728
    %v2730 = vlaneseq
    %v2731 = vshrl.u32 %v2730, 7
    %v2732 = vsub.s32 4, %v2731
    %v2733 = vrot.slane %v783, %v2732
    %v2734 = vlaneseq
    %v2735 = vshrl.u32 %v2734, 7
    %v2736 = vsub.s32 5, %v2735
    %v2737 = vrot.slane %v783, %v2736
    %v2738 = vlaneseq
    %v2739 = vshrl.u32 %v2738, 7
    %v2740 = vsub.s32 6, %v2739
    %v2741 = vrot.slane %v783, %v2740
    %v2742 = vlaneseq
    %v2743 = vshrl.u32 %v2742, 7
    %v2744 = vsub.s32 7, %v2743
    %v2745 = vrot.slane %v783, %v2744
    %v2746 = vlaneseq
    %v2747 = vshrl.u32 %v2746, 7
    %v2748 = vsub.s32 0, %v2747
    %v2749 = vrot.slane %v785, %v2748
    %v2750 = vlaneseq
    %v2751 = vshrl.u32 %v2750, 7
    %v2752 = vsub.s32 1, %v2751
    %v2753 = vrot.slane %v785, %v2752
    %v2754 = vlaneseq
    %v2755 = vshrl.u32 %v2754, 7
    %v2756 = vsub.s32 2, %v2755
    %v2757 = vrot.slane %v785, %v2756
    %v2758 = vlaneseq
    %v2759 = vshrl.u32 %v2758, 7
    %v2760 = vsub.s32 3, %v2759
    %v2761 = vrot.slane %v785, %v2760
    %v2762 = vlaneseq
    %v2763 = vshrl.u32 %v2762, 7
    %v2764 = vsub.s32 4, %v2763
    %v2765 = vrot.slane %v785, %v2764
    %v2766 = vlaneseq
    %v2767 = vshrl.u32 %v2766, 7
    %v2768 = vsub.s32 5, %v2767
    %v2769 = vrot.slane %v785, %v2768
    %v2770 = vlaneseq
    %v2771 = vshrl.u32 %v2770, 7
    %v2772 = vsub.s32 6, %v2771
    %v2773 = vrot.slane %v785, %v2772
    %v2774 = vlaneseq
    %v2775 = vshrl.u32 %v2774, 7
    %v2776 = vsub.s32 7, %v2775
    %v2777 = vrot.slane %v785, %v2776
    %v2778 = vlaneseq
    %v2779 = vshrl.u32 %v2778, 7
    %v2780 = vsub.s32 0, %v2779
    %v2781 = vrot.slane %v787, %v2780
    %v2782 = vlaneseq
    %v2783 = vshrl.u32 %v2782, 7
    %v2784 = vsub.s32 1, %v2783
    %v2785 = vrot.slane %v787, %v2784
    %v2786 = vlaneseq
    %v2787 = vshrl.u32 %v2786, 7
    %v2788 = vsub.s32 2, %v2787
    %v2789 = vrot.slane %v787, %v2788
    %v2790 = vlaneseq
    %v2791 = vshrl.u32 %v2790, 7
    %v2792 = vsub.s32 3, %v2791
    %v2793 = vrot.slane %v787, %v2792
    %v2794 = vlaneseq
    %v2795 = vshrl.u32 %v2794, 7
    %v2796 = vsub.s32 4, %v2795
    %v2797 = vrot.slane %v787, %v2796
    %v2798 = vlaneseq
    %v2799 = vshrl.u32 %v2798, 7
    %v2800 = vsub.s32 5, %v2799
    %v2801 = vrot.slane %v787, %v2800
    %v2802 = vlaneseq
    %v2803 = vshrl.u32 %v2802, 7
    %v2804 = vsub.s32 6, %v2803
    %v2805 = vrot.slane %v787, %v2804
    %v2806 = vlaneseq
    %v2807 = vshrl.u32 %v2806, 7
    %v2808 = vsub.s32 7, %v2807
    %v2809 = vrot.slane %v787, %v2808
    %v2810 = vlaneseq
    %v2811 = vshrl.u32 %v2810, 7
    %v2812 = vsub.s32 0, %v2811
    %v2813 = vrot.slane %v789, %v2812
    %v2814 = vlaneseq
    %v2815 = vshrl.u32 %v2814, 7
    %v2816 = vsub.s32 1, %v2815
    %v2817 = vrot.slane %v789, %v2816
    %v2818 = vlaneseq
    %v2819 = vshrl.u32 %v2818, 7
    %v2820 = vsub.s32 2, %v2819
    %v2821 = vrot.slane %v789, %v2820
    %v2822 = vlaneseq
    %v2823 = vshrl.u32 %v2822, 7
    %v2824 = vsub.s32 3, %v2823
    %v2825 = vrot.slane %v789, %v2824
    %v2826 = vlaneseq
    %v2827 = vshrl.u32 %v2826, 7
    %v2828 = vsub.s32 4, %v2827
    %v2829 = vrot.slane %v789, %v2828
    %v2830 = vlaneseq
    %v2831 = vshrl.u32 %v2830, 7
    %v2832 = vsub.s32 5, %v2831
    %v2833 = vrot.slane %v789, %v2832
    %v2834 = vlaneseq
    %v2835 = vshrl.u32 %v2834, 7
    %v2836 = vsub.s32 6, %v2835
    %v2837 = vrot.slane %v789, %v2836
    %v2838 = vlaneseq
    %v2839 = vshrl.u32 %v2838, 7
    %v2840 = vsub.s32 7, %v2839
    %v2841 = vrot.slane %v789, %v2840
    %v2842 = vlaneseq
    %v2843 = vshrl.u32 %v2842, 7
    %v2844 = vsub.s32 0, %v2843
    %v2845 = vrot.slane %v791, %v2844
    %v2846 = vlaneseq
    %v2847 = vshrl.u32 %v2846, 7
    %v2848 = vsub.s32 1, %v2847
    %v2849 = vrot.slane %v791, %v2848
    %v2850 = vlaneseq
    %v2851 = vshrl.u32 %v2850, 7
    %v2852 = vsub.s32 2, %v2851
    %v2853 = vrot.slane %v791, %v2852
    %v2854 = vlaneseq
    %v2855 = vshrl.u32 %v2854, 7
    %v2856 = vsub.s32 3, %v2855
    %v2857 = vrot.slane %v791, %v2856
    %v2858 = vlaneseq
    %v2859 = vshrl.u32 %v2858, 7
    %v2860 = vsub.s32 4, %v2859
    %v2861 = vrot.slane %v791, %v2860
    %v2862 = vlaneseq
    %v2863 = vshrl.u32 %v2862, 7
    %v2864 = vsub.s32 5, %v2863
    %v2865 = vrot.slane %v791, %v2864
    %v2866 = vlaneseq
    %v2867 = vshrl.u32 %v2866, 7
    %v2868 = vsub.s32 6, %v2867
    %v2869 = vrot.slane %v791, %v2868
    %v2870 = vlaneseq
    %v2871 = vshrl.u32 %v2870, 7
    %v2872 = vsub.s32 7, %v2871
    %v2873 = vrot.slane %v791, %v2872
    %v2874 = vlaneseq
    %v2875 = vshrl.u32 %v2874, 7
    %v2876 = vsub.s32 0, %v2875
    %v2877 = vrot.slane %v793, %v2876
    %v2878 = vlaneseq
    %v2879 = vshrl.u32 %v2878, 7
    %v2880 = vsub.s32 1, %v2879
    %v2881 = vrot.slane %v793, %v2880
    %v2882 = vlaneseq
    %v2883 = vshrl.u32 %v2882, 7
    %v2884 = vsub.s32 2, %v2883
    %v2885 = vrot.slane %v793, %v2884
    %v2886 = vlaneseq
    %v2887 = vshrl.u32 %v2886, 7
    %v2888 = vsub.s32 3, %v2887
    %v2889 = vrot.slane %v793, %v2888
    %v2890 = vlaneseq
    %v2891 = vshrl.u32 %v2890, 7
    %v2892 = vsub.s32 4, %v2891
    %v2893 = vrot.slane %v793, %v2892
    %v2894 = vlaneseq
    %v2895 = vshrl.u32 %v2894, 7
    %v2896 = vsub.s32 5, %v2895
    %v2897 = vrot.slane %v793, %v2896
    %v2898 = vlaneseq
    %v2899 = vshrl.u32 %v2898, 7
    %v2900 = vsub.s32 6, %v2899
    %v2901 = vrot.slane %v793, %v2900
    %v2902 = vlaneseq
    %v2903 = vshrl.u32 %v2902, 7
    %v2904 = vsub.s32 7, %v2903
    %v2905 = vrot.slane %v793, %v2904
    %v2906 = vcombine.low %v861, %v865
    %v2907 = vcombine.low %v869, %v873
    %v2908 = vcombine.low %v877, %v881
    %v2909 = vcombine.low %v885, %v889
    %v2911 = vunpack.c.l.s4 1966171168
    %v2912 = vunpack.c.0.s8 %v2911
    %v2913 = vlaneseq
    %v2914 = vshrl.u32 %v2913, 7
    %v2915 = vsub.s32 %v2912, %v2914
    %v2916 = vrot.slane %v2906, %v2915
    %v2918 = vunpack.c.l.s4 1966171168
    %v2919 = vunpack.c.0.s8 %v2918
    %v2920 = vlaneseq
    %v2921 = vshrl.u32 %v2920, 7
    %v2922 = vsub.s32 %v2919, %v2921
    %v2923 = vrot.slane %v2907, %v2922
    %v2925 = vunpack.c.l.s4 1966171168
    %v2926 = vunpack.c.0.s8 %v2925
    %v2927 = vlaneseq
    %v2928 = vshrl.u32 %v2927, 7
    %v2929 = vsub.s32 %v2926, %v2928
    %v2930 = vrot.slane %v2908, %v2929
    %v2932 = vunpack.c.l.s4 1966171168
    %v2933 = vunpack.c.0.s8 %v2932
    %v2934 = vlaneseq
    %v2935 = vshrl.u32 %v2934, 7
    %v2936 = vsub.s32 %v2933, %v2935
    %v2937 = vrot.slane %v2909, %v2936
    %v2938 = vcombine.low %v2916, %v2923
    %v2939 = vcombine.low %v2930, %v2937
    %v2941 = vunpack.c.l.s4 1966171168
    %v2942 = vunpack.c.0.s8 %v2941
    %v2943 = vlaneseq
    %v2944 = vshrl.u32 %v2943, 7
    %v2945 = vsub.s32 %v2942, %v2944
    %v2946 = vrot.slane %v2938, %v2945
    %v2948 = vunpack.c.l.s4 1966171168
    %v2949 = vunpack.c.0.s8 %v2948
    %v2950 = vlaneseq
    %v2951 = vshrl.u32 %v2950, 7
    %v2952 = vsub.s32 %v2949, %v2951
    %v2953 = vrot.slane %v2939, %v2952
    %v2954 = vcombine.low %v2946, %v2953
    %v2955 = vcombine.low %v893, %v897
    %v2956 = vcombine.low %v901, %v905
    %v2957 = vcombine.low %v909, %v913
    %v2958 = vcombine.low %v917, %v921
    %v2960 = vunpack.c.l.s4 1966171168
    %v2961 = vunpack.c.0.s8 %v2960
    %v2962 = vlaneseq
    %v2963 = vshrl.u32 %v2962, 7
    %v2964 = vsub.s32 %v2961, %v2963
    %v2965 = vrot.slane %v2955, %v2964
    %v2967 = vunpack.c.l.s4 1966171168
    %v2968 = vunpack.c.0.s8 %v2967
    %v2969 = vlaneseq
    %v2970 = vshrl.u32 %v2969, 7
    %v2971 = vsub.s32 %v2968, %v2970
    %v2972 = vrot.slane %v2956, %v2971
    %v2974 = vunpack.c.l.s4 1966171168
    %v2975 = vunpack.c.0.s8 %v2974
    %v2976 = vlaneseq
    %v2977 = vshrl.u32 %v2976, 7
    %v2978 = vsub.s32 %v2975, %v2977
    %v2979 = vrot.slane %v2957, %v2978
    %v2981 = vunpack.c.l.s4 1966171168
    %v2982 = vunpack.c.0.s8 %v2981
    %v2983 = vlaneseq
    %v2984 = vshrl.u32 %v2983, 7
    %v2985 = vsub.s32 %v2982, %v2984
    %v2986 = vrot.slane %v2958, %v2985
    %v2987 = vcombine.low %v2965, %v2972
    %v2988 = vcombine.low %v2979, %v2986
    %v2990 = vunpack.c.l.s4 1966171168
    %v2991 = vunpack.c.0.s8 %v2990
    %v2992 = vlaneseq
    %v2993 = vshrl.u32 %v2992, 7
    %v2994 = vsub.s32 %v2991, %v2993
    %v2995 = vrot.slane %v2987, %v2994
    %v2997 = vunpack.c.l.s4 1966171168
    %v2998 = vunpack.c.0.s8 %v2997
    %v2999 = vlaneseq
    %v3000 = vshrl.u32 %v2999, 7
    %v3001 = vsub.s32 %v2998, %v3000
    %v3002 = vrot.slane %v2988, %v3001
    %v3003 = vcombine.low %v2995, %v3002
    %v3004 = vcombine.low %v925, %v929
    %v3005 = vcombine.low %v933, %v937
    %v3006 = vcombine.low %v941, %v945
    %v3007 = vcombine.low %v949, %v953
    %v3009 = vunpack.c.l.s4 1966171168
    %v3010 = vunpack.c.0.s8 %v3009
    %v3011 = vlaneseq
    %v3012 = vshrl.u32 %v3011, 7
    %v3013 = vsub.s32 %v3010, %v3012
    %v3014 = vrot.slane %v3004, %v3013
    %v3016 = vunpack.c.l.s4 1966171168
    %v3017 = vunpack.c.0.s8 %v3016
    %v3018 = vlaneseq
    %v3019 = vshrl.u32 %v3018, 7
    %v3020 = vsub.s32 %v3017, %v3019
    %v3021 = vrot.slane %v3005, %v3020
    %v3023 = vunpack.c.l.s4 1966171168
    %v3024 = vunpack.c.0.s8 %v3023
    %v3025 = vlaneseq
    %v3026 = vshrl.u32 %v3025, 7
    %v3027 = vsub.s32 %v3024, %v3026
    %v3028 = vrot.slane %v3006, %v3027
    %v3030 = vunpack.c.l.s4 1966171168
    %v3031 = vunpack.c.0.s8 %v3030
    %v3032 = vlaneseq
    %v3033 = vshrl.u32 %v3032, 7
    %v3034 = vsub.s32 %v3031, %v3033
    %v3035 = vrot.slane %v3007, %v3034
    %v3036 = vcombine.low %v3014, %v3021
    %v3037 = vcombine.low %v3028, %v3035
    %v3039 = vunpack.c.l.s4 1966171168
    %v3040 = vunpack.c.0.s8 %v3039
    %v3041 = vlaneseq
    %v3042 = vshrl.u32 %v3041, 7
    %v3043 = vsub.s32 %v3040, %v3042
    %v3044 = vrot.slane %v3036, %v3043
    %v3046 = vunpack.c.l.s4 1966171168
    %v3047 = vunpack.c.0.s8 %v3046
    %v3048 = vlaneseq
    %v3049 = vshrl.u32 %v3048, 7
    %v3050 = vsub.s32 %v3047, %v3049
    %v3051 = vrot.slane %v3037, %v3050
    %v3052 = vcombine.low %v3044, %v3051
    %v3053 = vcombine.low %v957, %v961
    %v3054 = vcombine.low %v965, %v969
    %v3055 = vcombine.low %v973, %v977
    %v3056 = vcombine.low %v981, %v985
    %v3058 = vunpack.c.l.s4 1966171168
    %v3059 = vunpack.c.0.s8 %v3058
    %v3060 = vlaneseq
    %v3061 = vshrl.u32 %v3060, 7
    %v3062 = vsub.s32 %v3059, %v3061
    %v3063 = vrot.slane %v3053, %v3062
    %v3065 = vunpack.c.l.s4 1966171168
    %v3066 = vunpack.c.0.s8 %v3065
    %v3067 = vlaneseq
    %v3068 = vshrl.u32 %v3067, 7
    %v3069 = vsub.s32 %v3066, %v3068
    %v3070 = vrot.slane %v3054, %v3069
    %v3072 = vunpack.c.l.s4 1966171168
    %v3073 = vunpack.c.0.s8 %v3072
    %v3074 = vlaneseq
    %v3075 = vshrl.u32 %v3074, 7
    %v3076 = vsub.s32 %v3073, %v3075
    %v3077 = vrot.slane %v3055, %v3076
    %v3079 = vunpack.c.l.s4 1966171168
    %v3080 = vunpack.c.0.s8 %v3079
    %v3081 = vlaneseq
    %v3082 = vshrl.u32 %v3081, 7
    %v3083 = vsub.s32 %v3080, %v3082
    %v3084 = vrot.slane %v3056, %v3083
    %v3085 = vcombine.low %v3063, %v3070
    %v3086 = vcombine.low %v3077, %v3084
    %v3088 = vunpack.c.l.s4 1966171168
    %v3089 = vunpack.c.0.s8 %v3088
    %v3090 = vlaneseq
    %v3091 = vshrl.u32 %v3090, 7
    %v3092 = vsub.s32 %v3089, %v3091
    %v3093 = vrot.slane %v3085, %v3092
    %v3095 = vunpack.c.l.s4 1966171168
    %v3096 = vunpack.c.0.s8 %v3095
    %v3097 = vlaneseq
    %v3098 = vshrl.u32 %v3097, 7
    %v3099 = vsub.s32 %v3096, %v3098
    %v3100 = vrot.slane %v3086, %v3099
    %v3101 = vcombine.low %v3093, %v3100
    %v3102 = vcombine.low %v989, %v993
    %v3103 = vcombine.low %v997, %v1001
    %v3104 = vcombine.low %v1005, %v1009
    %v3105 = vcombine.low %v1013, %v1017
    %v3107 = vunpack.c.l.s4 1966171168
    %v3108 = vunpack.c.0.s8 %v3107
    %v3109 = vlaneseq
    %v3110 = vshrl.u32 %v3109, 7
    %v3111 = vsub.s32 %v3108, %v3110
    %v3112 = vrot.slane %v3102, %v3111
    %v3114 = vunpack.c.l.s4 1966171168
    %v3115 = vunpack.c.0.s8 %v3114
    %v3116 = vlaneseq
    %v3117 = vshrl.u32 %v3116, 7
    %v3118 = vsub.s32 %v3115, %v3117
    %v3119 = vrot.slane %v3103, %v3118
    %v3121 = vunpack.c.l.s4 1966171168
    %v3122 = vunpack.c.0.s8 %v3121
    %v3123 = vlaneseq
    %v3124 = vshrl.u32 %v3123, 7
    %v3125 = vsub.s32 %v3122, %v3124
    %v3126 = vrot.slane %v3104, %v3125
    %v3128 = vunpack.c.l.s4 1966171168
    %v3129 = vunpack.c.0.s8 %v3128
    %v3130 = vlaneseq
    %v3131 = vshrl.u32 %v3130, 7
    %v3132 = vsub.s32 %v3129, %v3131
    %v3133 = vrot.slane %v3105, %v3132
    %v3134 = vcombine.low %v3112, %v3119
    %v3135 = vcombine.low %v3126, %v3133
    %v3137 = vunpack.c.l.s4 1966171168
    %v3138 = vunpack.c.0.s8 %v3137
    %v3139 = vlaneseq
    %v3140 = vshrl.u32 %v3139, 7
    %v3141 = vsub.s32 %v3138, %v3140
    %v3142 = vrot.slane %v3134, %v3141
    %v3144 = vunpack.c.l.s4 1966171168
    %v3145 = vunpack.c.0.s8 %v3144
    %v3146 = vlaneseq
    %v3147 = vshrl.u32 %v3146, 7
    %v3148 = vsub.s32 %v3145, %v3147
    %v3149 = vrot.slane %v3135, %v3148
    %v3150 = vcombine.low %v3142, %v3149
    %v3151 = vcombine.low %v1021, %v1025
    %v3152 = vcombine.low %v1029, %v1033
    %v3153 = vcombine.low %v1037, %v1041
    %v3154 = vcombine.low %v1045, %v1049
    %v3156 = vunpack.c.l.s4 1966171168
    %v3157 = vunpack.c.0.s8 %v3156
    %v3158 = vlaneseq
    %v3159 = vshrl.u32 %v3158, 7
    %v3160 = vsub.s32 %v3157, %v3159
    %v3161 = vrot.slane %v3151, %v3160
    %v3163 = vunpack.c.l.s4 1966171168
    %v3164 = vunpack.c.0.s8 %v3163
    %v3165 = vlaneseq
    %v3166 = vshrl.u32 %v3165, 7
    %v3167 = vsub.s32 %v3164, %v3166
    %v3168 = vrot.slane %v3152, %v3167
    %v3170 = vunpack.c.l.s4 1966171168
    %v3171 = vunpack.c.0.s8 %v3170
    %v3172 = vlaneseq
    %v3173 = vshrl.u32 %v3172, 7
    %v3174 = vsub.s32 %v3171, %v3173
    %v3175 = vrot.slane %v3153, %v3174
    %v3177 = vunpack.c.l.s4 1966171168
    %v3178 = vunpack.c.0.s8 %v3177
    %v3179 = vlaneseq
    %v3180 = vshrl.u32 %v3179, 7
    %v3181 = vsub.s32 %v3178, %v3180
    %v3182 = vrot.slane %v3154, %v3181
    %v3183 = vcombine.low %v3161, %v3168
    %v3184 = vcombine.low %v3175, %v3182
    %v3186 = vunpack.c.l.s4 1966171168
    %v3187 = vunpack.c.0.s8 %v3186
    %v3188 = vlaneseq
    %v3189 = vshrl.u32 %v3188, 7
    %v3190 = vsub.s32 %v3187, %v3189
    %v3191 = vrot.slane %v3183, %v3190
    %v3193 = vunpack.c.l.s4 1966171168
    %v3194 = vunpack.c.0.s8 %v3193
    %v3195 = vlaneseq
    %v3196 = vshrl.u32 %v3195, 7
    %v3197 = vsub.s32 %v3194, %v3196
    %v3198 = vrot.slane %v3184, %v3197
    %v3199 = vcombine.low %v3191, %v3198
    %v3200 = vcombine.low %v1053, %v1057
    %v3201 = vcombine.low %v1061, %v1065
    %v3202 = vcombine.low %v1069, %v1073
    %v3203 = vcombine.low %v1077, %v1081
    %v3205 = vunpack.c.l.s4 1966171168
    %v3206 = vunpack.c.0.s8 %v3205
    %v3207 = vlaneseq
    %v3208 = vshrl.u32 %v3207, 7
    %v3209 = vsub.s32 %v3206, %v3208
    %v3210 = vrot.slane %v3200, %v3209
    %v3212 = vunpack.c.l.s4 1966171168
    %v3213 = vunpack.c.0.s8 %v3212
    %v3214 = vlaneseq
    %v3215 = vshrl.u32 %v3214, 7
    %v3216 = vsub.s32 %v3213, %v3215
    %v3217 = vrot.slane %v3201, %v3216
    %v3219 = vunpack.c.l.s4 1966171168
    %v3220 = vunpack.c.0.s8 %v3219
    %v3221 = vlaneseq
    %v3222 = vshrl.u32 %v3221, 7
    %v3223 = vsub.s32 %v3220, %v3222
    %v3224 = vrot.slane %v3202, %v3223
    %v3226 = vunpack.c.l.s4 1966171168
    %v3227 = vunpack.c.0.s8 %v3226
    %v3228 = vlaneseq
    %v3229 = vshrl.u32 %v3228, 7
    %v3230 = vsub.s32 %v3227, %v3229
    %v3231 = vrot.slane %v3203, %v3230
    %v3232 = vcombine.low %v3210, %v3217
    %v3233 = vcombine.low %v3224, %v3231
    %v3235 = vunpack.c.l.s4 1966171168
    %v3236 = vunpack.c.0.s8 %v3235
    %v3237 = vlaneseq
    %v3238 = vshrl.u32 %v3237, 7
    %v3239 = vsub.s32 %v3236, %v3238
    %v3240 = vrot.slane %v3232, %v3239
    %v3242 = vunpack.c.l.s4 1966171168
    %v3243 = vunpack.c.0.s8 %v3242
    %v3244 = vlaneseq
    %v3245 = vshrl.u32 %v3244, 7
    %v3246 = vsub.s32 %v3243, %v3245
    %v3247 = vrot.slane %v3233, %v3246
    %v3248 = vcombine.low %v3240, %v3247
    %v3249 = vcombine.low %v1085, %v1089
    %v3250 = vcombine.low %v1093, %v1097
    %v3251 = vcombine.low %v1101, %v1105
    %v3252 = vcombine.low %v1109, %v1113
    %v3254 = vunpack.c.l.s4 1966171168
    %v3255 = vunpack.c.0.s8 %v3254
    %v3256 = vlaneseq
    %v3257 = vshrl.u32 %v3256, 7
    %v3258 = vsub.s32 %v3255, %v3257
    %v3259 = vrot.slane %v3249, %v3258
    %v3261 = vunpack.c.l.s4 1966171168
    %v3262 = vunpack.c.0.s8 %v3261
    %v3263 = vlaneseq
    %v3264 = vshrl.u32 %v3263, 7
    %v3265 = vsub.s32 %v3262, %v3264
    %v3266 = vrot.slane %v3250, %v3265
    %v3268 = vunpack.c.l.s4 1966171168
    %v3269 = vunpack.c.0.s8 %v3268
    %v3270 = vlaneseq
    %v3271 = vshrl.u32 %v3270, 7
    %v3272 = vsub.s32 %v3269, %v3271
    %v3273 = vrot.slane %v3251, %v3272
    %v3275 = vunpack.c.l.s4 1966171168
    %v3276 = vunpack.c.0.s8 %v3275
    %v3277 = vlaneseq
    %v3278 = vshrl.u32 %v3277, 7
    %v3279 = vsub.s32 %v3276, %v3278
    %v3280 = vrot.slane %v3252, %v3279
    %v3281 = vcombine.low %v3259, %v3266
    %v3282 = vcombine.low %v3273, %v3280
    %v3284 = vunpack.c.l.s4 1966171168
    %v3285 = vunpack.c.0.s8 %v3284
    %v3286 = vlaneseq
    %v3287 = vshrl.u32 %v3286, 7
    %v3288 = vsub.s32 %v3285, %v3287
    %v3289 = vrot.slane %v3281, %v3288
    %v3291 = vunpack.c.l.s4 1966171168
    %v3292 = vunpack.c.0.s8 %v3291
    %v3293 = vlaneseq
    %v3294 = vshrl.u32 %v3293, 7
    %v3295 = vsub.s32 %v3292, %v3294
    %v3296 = vrot.slane %v3282, %v3295
    %v3297 = vcombine.low %v3289, %v3296
    %v3298 = vcombine.low %v1117, %v1121
    %v3299 = vcombine.low %v1125, %v1129
    %v3300 = vcombine.low %v1133, %v1137
    %v3301 = vcombine.low %v1141, %v1145
    %v3303 = vunpack.c.l.s4 1966171168
    %v3304 = vunpack.c.0.s8 %v3303
    %v3305 = vlaneseq
    %v3306 = vshrl.u32 %v3305, 7
    %v3307 = vsub.s32 %v3304, %v3306
    %v3308 = vrot.slane %v3298, %v3307
    %v3310 = vunpack.c.l.s4 1966171168
    %v3311 = vunpack.c.0.s8 %v3310
    %v3312 = vlaneseq
    %v3313 = vshrl.u32 %v3312, 7
    %v3314 = vsub.s32 %v3311, %v3313
    %v3315 = vrot.slane %v3299, %v3314
    %v3317 = vunpack.c.l.s4 1966171168
    %v3318 = vunpack.c.0.s8 %v3317
    %v3319 = vlaneseq
    %v3320 = vshrl.u32 %v3319, 7
    %v3321 = vsub.s32 %v3318, %v3320
    %v3322 = vrot.slane %v3300, %v3321
    %v3324 = vunpack.c.l.s4 1966171168
    %v3325 = vunpack.c.0.s8 %v3324
    %v3326 = vlaneseq
    %v3327 = vshrl.u32 %v3326, 7
    %v3328 = vsub.s32 %v3325, %v3327
    %v3329 = vrot.slane %v3301, %v3328
    %v3330 = vcombine.low %v3308, %v3315
    %v3331 = vcombine.low %v3322, %v3329
    %v3333 = vunpack.c.l.s4 1966171168
    %v3334 = vunpack.c.0.s8 %v3333
    %v3335 = vlaneseq
    %v3336 = vshrl.u32 %v3335, 7
    %v3337 = vsub.s32 %v3334, %v3336
    %v3338 = vrot.slane %v3330, %v3337
    %v3340 = vunpack.c.l.s4 1966171168
    %v3341 = vunpack.c.0.s8 %v3340
    %v3342 = vlaneseq
    %v3343 = vshrl.u32 %v3342, 7
    %v3344 = vsub.s32 %v3341, %v3343
    %v3345 = vrot.slane %v3331, %v3344
    %v3346 = vcombine.low %v3338, %v3345
    %v3347 = vcombine.low %v1149, %v1153
    %v3348 = vcombine.low %v1157, %v1161
    %v3349 = vcombine.low %v1165, %v1169
    %v3350 = vcombine.low %v1173, %v1177
    %v3352 = vunpack.c.l.s4 1966171168
    %v3353 = vunpack.c.0.s8 %v3352
    %v3354 = vlaneseq
    %v3355 = vshrl.u32 %v3354, 7
    %v3356 = vsub.s32 %v3353, %v3355
    %v3357 = vrot.slane %v3347, %v3356
    %v3359 = vunpack.c.l.s4 1966171168
    %v3360 = vunpack.c.0.s8 %v3359
    %v3361 = vlaneseq
    %v3362 = vshrl.u32 %v3361, 7
    %v3363 = vsub.s32 %v3360, %v3362
    %v3364 = vrot.slane %v3348, %v3363
    %v3366 = vunpack.c.l.s4 1966171168
    %v3367 = vunpack.c.0.s8 %v3366
    %v3368 = vlaneseq
    %v3369 = vshrl.u32 %v3368, 7
    %v3370 = vsub.s32 %v3367, %v3369
    %v3371 = vrot.slane %v3349, %v3370
    %v3373 = vunpack.c.l.s4 1966171168
    %v3374 = vunpack.c.0.s8 %v3373
    %v3375 = vlaneseq
    %v3376 = vshrl.u32 %v3375, 7
    %v3377 = vsub.s32 %v3374, %v3376
    %v3378 = vrot.slane %v3350, %v3377
    %v3379 = vcombine.low %v3357, %v3364
    %v3380 = vcombine.low %v3371, %v3378
    %v3382 = vunpack.c.l.s4 1966171168
    %v3383 = vunpack.c.0.s8 %v3382
    %v3384 = vlaneseq
    %v3385 = vshrl.u32 %v3384, 7
    %v3386 = vsub.s32 %v3383, %v3385
    %v3387 = vrot.slane %v3379, %v3386
    %v3389 = vunpack.c.l.s4 1966171168
    %v3390 = vunpack.c.0.s8 %v3389
    %v3391 = vlaneseq
    %v3392 = vshrl.u32 %v3391, 7
    %v3393 = vsub.s32 %v3390, %v3392
    %v3394 = vrot.slane %v3380, %v3393
    %v3395 = vcombine.low %v3387, %v3394
    %v3396 = vcombine.low %v1181, %v1185
    %v3397 = vcombine.low %v1189, %v1193
    %v3398 = vcombine.low %v1197, %v1201
    %v3399 = vcombine.low %v1205, %v1209
    %v3401 = vunpack.c.l.s4 1966171168
    %v3402 = vunpack.c.0.s8 %v3401
    %v3403 = vlaneseq
    %v3404 = vshrl.u32 %v3403, 7
    %v3405 = vsub.s32 %v3402, %v3404
    %v3406 = vrot.slane %v3396, %v3405
    %v3408 = vunpack.c.l.s4 1966171168
    %v3409 = vunpack.c.0.s8 %v3408
    %v3410 = vlaneseq
    %v3411 = vshrl.u32 %v3410, 7
    %v3412 = vsub.s32 %v3409, %v3411
    %v3413 = vrot.slane %v3397, %v3412
    %v3415 = vunpack.c.l.s4 1966171168
    %v3416 = vunpack.c.0.s8 %v3415
    %v3417 = vlaneseq
    %v3418 = vshrl.u32 %v3417, 7
    %v3419 = vsub.s32 %v3416, %v3418
    %v3420 = vrot.slane %v3398, %v3419
    %v3422 = vunpack.c.l.s4 1966171168
    %v3423 = vunpack.c.0.s8 %v3422
    %v3424 = vlaneseq
    %v3425 = vshrl.u32 %v3424, 7
    %v3426 = vsub.s32 %v3423, %v3425
    %v3427 = vrot.slane %v3399, %v3426
    %v3428 = vcombine.low %v3406, %v3413
    %v3429 = vcombine.low %v3420, %v3427
    %v3431 = vunpack.c.l.s4 1966171168
    %v3432 = vunpack.c.0.s8 %v3431
    %v3433 = vlaneseq
    %v3434 = vshrl.u32 %v3433, 7
    %v3435 = vsub.s32 %v3432, %v3434
    %v3436 = vrot.slane %v3428, %v3435
    %v3438 = vunpack.c.l.s4 1966171168
    %v3439 = vunpack.c.0.s8 %v3438
    %v3440 = vlaneseq
    %v3441 = vshrl.u32 %v3440, 7
    %v3442 = vsub.s32 %v3439, %v3441
    %v3443 = vrot.slane %v3429, %v3442
    %v3444 = vcombine.low %v3436, %v3443
    %v3445 = vcombine.low %v1213, %v1217
    %v3446 = vcombine.low %v1221, %v1225
    %v3447 = vcombine.low %v1229, %v1233
    %v3448 = vcombine.low %v1237, %v1241
    %v3450 = vunpack.c.l.s4 1966171168
    %v3451 = vunpack.c.0.s8 %v3450
    %v3452 = vlaneseq
    %v3453 = vshrl.u32 %v3452, 7
    %v3454 = vsub.s32 %v3451, %v3453
    %v3455 = vrot.slane %v3445, %v3454
    %v3457 = vunpack.c.l.s4 1966171168
    %v3458 = vunpack.c.0.s8 %v3457
    %v3459 = vlaneseq
    %v3460 = vshrl.u32 %v3459, 7
    %v3461 = vsub.s32 %v3458, %v3460
    %v3462 = vrot.slane %v3446, %v3461
    %v3464 = vunpack.c.l.s4 1966171168
    %v3465 = vunpack.c.0.s8 %v3464
    %v3466 = vlaneseq
    %v3467 = vshrl.u32 %v3466, 7
    %v3468 = vsub.s32 %v3465, %v3467
    %v3469 = vrot.slane %v3447, %v3468
    %v3471 = vunpack.c.l.s4 1966171168
    %v3472 = vunpack.c.0.s8 %v3471
    %v3473 = vlaneseq
    %v3474 = vshrl.u32 %v3473, 7
    %v3475 = vsub.s32 %v3472, %v3474
    %v3476 = vrot.slane %v3448, %v3475
    %v3477 = vcombine.low %v3455, %v3462
    %v3478 = vcombine.low %v3469, %v3476
    %v3480 = vunpack.c.l.s4 1966171168
    %v3481 = vunpack.c.0.s8 %v3480
    %v3482 = vlaneseq
    %v3483 = vshrl.u32 %v3482, 7
    %v3484 = vsub.s32 %v3481, %v3483
    %v3485 = vrot.slane %v3477, %v3484
    %v3487 = vunpack.c.l.s4 1966171168
    %v3488 = vunpack.c.0.s8 %v3487
    %v3489 = vlaneseq
    %v3490 = vshrl.u32 %v3489, 7
    %v3491 = vsub.s32 %v3488, %v3490
    %v3492 = vrot.slane %v3478, %v3491
    %v3493 = vcombine.low %v3485, %v3492
    %v3494 = vcombine.low %v1245, %v1249
    %v3495 = vcombine.low %v1253, %v1257
    %v3496 = vcombine.low %v1261, %v1265
    %v3497 = vcombine.low %v1269, %v1273
    %v3499 = vunpack.c.l.s4 1966171168
    %v3500 = vunpack.c.0.s8 %v3499
    %v3501 = vlaneseq
    %v3502 = vshrl.u32 %v3501, 7
    %v3503 = vsub.s32 %v3500, %v3502
    %v3504 = vrot.slane %v3494, %v3503
    %v3506 = vunpack.c.l.s4 1966171168
    %v3507 = vunpack.c.0.s8 %v3506
    %v3508 = vlaneseq
    %v3509 = vshrl.u32 %v3508, 7
    %v3510 = vsub.s32 %v3507, %v3509
    %v3511 = vrot.slane %v3495, %v3510
    %v3513 = vunpack.c.l.s4 1966171168
    %v3514 = vunpack.c.0.s8 %v3513
    %v3515 = vlaneseq
    %v3516 = vshrl.u32 %v3515, 7
    %v3517 = vsub.s32 %v3514, %v3516
    %v3518 = vrot.slane %v3496, %v3517
    %v3520 = vunpack.c.l.s4 1966171168
    %v3521 = vunpack.c.0.s8 %v3520
    %v3522 = vlaneseq
    %v3523 = vshrl.u32 %v3522, 7
    %v3524 = vsub.s32 %v3521, %v3523
    %v3525 = vrot.slane %v3497, %v3524
    %v3526 = vcombine.low %v3504, %v3511
    %v3527 = vcombine.low %v3518, %v3525
    %v3529 = vunpack.c.l.s4 1966171168
    %v3530 = vunpack.c.0.s8 %v3529
    %v3531 = vlaneseq
    %v3532 = vshrl.u32 %v3531, 7
    %v3533 = vsub.s32 %v3530, %v3532
    %v3534 = vrot.slane %v3526, %v3533
    %v3536 = vunpack.c.l.s4 1966171168
    %v3537 = vunpack.c.0.s8 %v3536
    %v3538 = vlaneseq
    %v3539 = vshrl.u32 %v3538, 7
    %v3540 = vsub.s32 %v3537, %v3539
    %v3541 = vrot.slane %v3527, %v3540
    %v3542 = vcombine.low %v3534, %v3541
    %v3543 = vcombine.low %v1277, %v1281
    %v3544 = vcombine.low %v1285, %v1289
    %v3545 = vcombine.low %v1293, %v1297
    %v3546 = vcombine.low %v1301, %v1305
    %v3548 = vunpack.c.l.s4 1966171168
    %v3549 = vunpack.c.0.s8 %v3548
    %v3550 = vlaneseq
    %v3551 = vshrl.u32 %v3550, 7
    %v3552 = vsub.s32 %v3549, %v3551
    %v3553 = vrot.slane %v3543, %v3552
    %v3555 = vunpack.c.l.s4 1966171168
    %v3556 = vunpack.c.0.s8 %v3555
    %v3557 = vlaneseq
    %v3558 = vshrl.u32 %v3557, 7
    %v3559 = vsub.s32 %v3556, %v3558
    %v3560 = vrot.slane %v3544, %v3559
    %v3562 = vunpack.c.l.s4 1966171168
    %v3563 = vunpack.c.0.s8 %v3562
    %v3564 = vlaneseq
    %v3565 = vshrl.u32 %v3564, 7
    %v3566 = vsub.s32 %v3563, %v3565
    %v3567 = vrot.slane %v3545, %v3566
    %v3569 = vunpack.c.l.s4 1966171168
    %v3570 = vunpack.c.0.s8 %v3569
    %v3571 = vlaneseq
    %v3572 = vshrl.u32 %v3571, 7
    %v3573 = vsub.s32 %v3570, %v3572
    %v3574 = vrot.slane %v3546, %v3573
    %v3575 = vcombine.low %v3553, %v3560
    %v3576 = vcombine.low %v3567, %v3574
    %v3578 = vunpack.c.l.s4 1966171168
    %v3579 = vunpack.c.0.s8 %v3578
    %v3580 = vlaneseq
    %v3581 = vshrl.u32 %v3580, 7
    %v3582 = vsub.s32 %v3579, %v3581
    %v3583 = vrot.slane %v3575, %v3582
    %v3585 = vunpack.c.l.s4 1966171168
    %v3586 = vunpack.c.0.s8 %v3585
    %v3587 = vlaneseq
    %v3588 = vshrl.u32 %v3587, 7
    %v3589 = vsub.s32 %v3586, %v3588
    %v3590 = vrot.slane %v3576, %v3589
    %v3591 = vcombine.low %v3583, %v3590
    %v3592 = vcombine.low %v1309, %v1313
    %v3593 = vcombine.low %v1317, %v1321
    %v3594 = vcombine.low %v1325, %v1329
    %v3595 = vcombine.low %v1333, %v1337
    %v3597 = vunpack.c.l.s4 1966171168
    %v3598 = vunpack.c.0.s8 %v3597
    %v3599 = vlaneseq
    %v3600 = vshrl.u32 %v3599, 7
    %v3601 = vsub.s32 %v3598, %v3600
    %v3602 = vrot.slane %v3592, %v3601
    %v3604 = vunpack.c.l.s4 1966171168
    %v3605 = vunpack.c.0.s8 %v3604
    %v3606 = vlaneseq
    %v3607 = vshrl.u32 %v3606, 7
    %v3608 = vsub.s32 %v3605, %v3607
    %v3609 = vrot.slane %v3593, %v3608
    %v3611 = vunpack.c.l.s4 1966171168
    %v3612 = vunpack.c.0.s8 %v3611
    %v3613 = vlaneseq
    %v3614 = vshrl.u32 %v3613, 7
    %v3615 = vsub.s32 %v3612, %v3614
    %v3616 = vrot.slane %v3594, %v3615
    %v3618 = vunpack.c.l.s4 1966171168
    %v3619 = vunpack.c.0.s8 %v3618
    %v3620 = vlaneseq
    %v3621 = vshrl.u32 %v3620, 7
    %v3622 = vsub.s32 %v3619, %v3621
    %v3623 = vrot.slane %v3595, %v3622
    %v3624 = vcombine.low %v3602, %v3609
    %v3625 = vcombine.low %v3616, %v3623
    %v3627 = vunpack.c.l.s4 1966171168
    %v3628 = vunpack.c.0.s8 %v3627
    %v3629 = vlaneseq
    %v3630 = vshrl.u32 %v3629, 7
    %v3631 = vsub.s32 %v3628, %v3630
    %v3632 = vrot.slane %v3624, %v3631
    %v3634 = vunpack.c.l.s4 1966171168
    %v3635 = vunpack.c.0.s8 %v3634
    %v3636 = vlaneseq
    %v3637 = vshrl.u32 %v3636, 7
    %v3638 = vsub.s32 %v3635, %v3637
    %v3639 = vrot.slane %v3625, %v3638
    %v3640 = vcombine.low %v3632, %v3639
    %v3641 = vcombine.low %v1341, %v1345
    %v3642 = vcombine.low %v1349, %v1353
    %v3643 = vcombine.low %v1357, %v1361
    %v3644 = vcombine.low %v1365, %v1369
    %v3646 = vunpack.c.l.s4 1966171168
    %v3647 = vunpack.c.0.s8 %v3646
    %v3648 = vlaneseq
    %v3649 = vshrl.u32 %v3648, 7
    %v3650 = vsub.s32 %v3647, %v3649
    %v3651 = vrot.slane %v3641, %v3650
    %v3653 = vunpack.c.l.s4 1966171168
    %v3654 = vunpack.c.0.s8 %v3653
    %v3655 = vlaneseq
    %v3656 = vshrl.u32 %v3655, 7
    %v3657 = vsub.s32 %v3654, %v3656
    %v3658 = vrot.slane %v3642, %v3657
    %v3660 = vunpack.c.l.s4 1966171168
    %v3661 = vunpack.c.0.s8 %v3660
    %v3662 = vlaneseq
    %v3663 = vshrl.u32 %v3662, 7
    %v3664 = vsub.s32 %v3661, %v3663
    %v3665 = vrot.slane %v3643, %v3664
    %v3667 = vunpack.c.l.s4 1966171168
    %v3668 = vunpack.c.0.s8 %v3667
    %v3669 = vlaneseq
    %v3670 = vshrl.u32 %v3669, 7
    %v3671 = vsub.s32 %v3668, %v3670
    %v3672 = vrot.slane %v3644, %v3671
    %v3673 = vcombine.low %v3651, %v3658
    %v3674 = vcombine.low %v3665, %v3672
    %v3676 = vunpack.c.l.s4 1966171168
    %v3677 = vunpack.c.0.s8 %v3676
    %v3678 = vlaneseq
    %v3679 = vshrl.u32 %v3678, 7
    %v3680 = vsub.s32 %v3677, %v3679
    %v3681 = vrot.slane %v3673, %v3680
    %v3683 = vunpack.c.l.s4 1966171168
    %v3684 = vunpack.c.0.s8 %v3683
    %v3685 = vlaneseq
    %v3686 = vshrl.u32 %v3685, 7
    %v3687 = vsub.s32 %v3684, %v3686
    %v3688 = vrot.slane %v3674, %v3687
    %v3689 = vcombine.low %v3681, %v3688
    %v3690 = vcombine.low %v1373, %v1377
    %v3691 = vcombine.low %v1381, %v1385
    %v3692 = vcombine.low %v1389, %v1393
    %v3693 = vcombine.low %v1397, %v1401
    %v3695 = vunpack.c.l.s4 1966171168
    %v3696 = vunpack.c.0.s8 %v3695
    %v3697 = vlaneseq
    %v3698 = vshrl.u32 %v3697, 7
    %v3699 = vsub.s32 %v3696, %v3698
    %v3700 = vrot.slane %v3690, %v3699
    %v3702 = vunpack.c.l.s4 1966171168
    %v3703 = vunpack.c.0.s8 %v3702
    %v3704 = vlaneseq
    %v3705 = vshrl.u32 %v3704, 7
    %v3706 = vsub.s32 %v3703, %v3705
    %v3707 = vrot.slane %v3691, %v3706
    %v3709 = vunpack.c.l.s4 1966171168
    %v3710 = vunpack.c.0.s8 %v3709
    %v3711 = vlaneseq
    %v3712 = vshrl.u32 %v3711, 7
    %v3713 = vsub.s32 %v3710, %v3712
    %v3714 = vrot.slane %v3692, %v3713
    %v3716 = vunpack.c.l.s4 1966171168
    %v3717 = vunpack.c.0.s8 %v3716
    %v3718 = vlaneseq
    %v3719 = vshrl.u32 %v3718, 7
    %v3720 = vsub.s32 %v3717, %v3719
    %v3721 = vrot.slane %v3693, %v3720
    %v3722 = vcombine.low %v3700, %v3707
    %v3723 = vcombine.low %v3714, %v3721
    %v3725 = vunpack.c.l.s4 1966171168
    %v3726 = vunpack.c.0.s8 %v3725
    %v3727 = vlaneseq
    %v3728 = vshrl.u32 %v3727, 7
    %v3729 = vsub.s32 %v3726, %v3728
    %v3730 = vrot.slane %v3722, %v3729
    %v3732 = vunpack.c.l.s4 1966171168
    %v3733 = vunpack.c.0.s8 %v3732
    %v3734 = vlaneseq
    %v3735 = vshrl.u32 %v3734, 7
    %v3736 = vsub.s32 %v3733, %v3735
    %v3737 = vrot.slane %v3723, %v3736
    %v3738 = vcombine.low %v3730, %v3737
    %v3739 = vcombine.low %v1405, %v1409
    %v3740 = vcombine.low %v1413, %v1417
    %v3741 = vcombine.low %v1421, %v1425
    %v3742 = vcombine.low %v1429, %v1433
    %v3744 = vunpack.c.l.s4 1966171168
    %v3745 = vunpack.c.0.s8 %v3744
    %v3746 = vlaneseq
    %v3747 = vshrl.u32 %v3746, 7
    %v3748 = vsub.s32 %v3745, %v3747
    %v3749 = vrot.slane %v3739, %v3748
    %v3751 = vunpack.c.l.s4 1966171168
    %v3752 = vunpack.c.0.s8 %v3751
    %v3753 = vlaneseq
    %v3754 = vshrl.u32 %v3753, 7
    %v3755 = vsub.s32 %v3752, %v3754
    %v3756 = vrot.slane %v3740, %v3755
    %v3758 = vunpack.c.l.s4 1966171168
    %v3759 = vunpack.c.0.s8 %v3758
    %v3760 = vlaneseq
    %v3761 = vshrl.u32 %v3760, 7
    %v3762 = vsub.s32 %v3759, %v3761
    %v3763 = vrot.slane %v3741, %v3762
    %v3765 = vunpack.c.l.s4 1966171168
    %v3766 = vunpack.c.0.s8 %v3765
    %v3767 = vlaneseq
    %v3768 = vshrl.u32 %v3767, 7
    %v3769 = vsub.s32 %v3766, %v3768
    %v3770 = vrot.slane %v3742, %v3769
    %v3771 = vcombine.low %v3749, %v3756
    %v3772 = vcombine.low %v3763, %v3770
    %v3774 = vunpack.c.l.s4 1966171168
    %v3775 = vunpack.c.0.s8 %v3774
    %v3776 = vlaneseq
    %v3777 = vshrl.u32 %v3776, 7
    %v3778 = vsub.s32 %v3775, %v3777
    %v3779 = vrot.slane %v3771, %v3778
    %v3781 = vunpack.c.l.s4 1966171168
    %v3782 = vunpack.c.0.s8 %v3781
    %v3783 = vlaneseq
    %v3784 = vshrl.u32 %v3783, 7
    %v3785 = vsub.s32 %v3782, %v3784
    %v3786 = vrot.slane %v3772, %v3785
    %v3787 = vcombine.low %v3779, %v3786
    %v3788 = vcombine.low %v1437, %v1441
    %v3789 = vcombine.low %v1445, %v1449
    %v3790 = vcombine.low %v1453, %v1457
    %v3791 = vcombine.low %v1461, %v1465
    %v3793 = vunpack.c.l.s4 1966171168
    %v3794 = vunpack.c.0.s8 %v3793
    %v3795 = vlaneseq
    %v3796 = vshrl.u32 %v3795, 7
    %v3797 = vsub.s32 %v3794, %v3796
    %v3798 = vrot.slane %v3788, %v3797
    %v3800 = vunpack.c.l.s4 1966171168
    %v3801 = vunpack.c.0.s8 %v3800
    %v3802 = vlaneseq
    %v3803 = vshrl.u32 %v3802, 7
    %v3804 = vsub.s32 %v3801, %v3803
    %v3805 = vrot.slane %v3789, %v3804
    %v3807 = vunpack.c.l.s4 1966171168
    %v3808 = vunpack.c.0.s8 %v3807
    %v3809 = vlaneseq
    %v3810 = vshrl.u32 %v3809, 7
    %v3811 = vsub.s32 %v3808, %v3810
    %v3812 = vrot.slane %v3790, %v3811
    %v3814 = vunpack.c.l.s4 1966171168
    %v3815 = vunpack.c.0.s8 %v3814
    %v3816 = vlaneseq
    %v3817 = vshrl.u32 %v3816, 7
    %v3818 = vsub.s32 %v3815, %v3817
    %v3819 = vrot.slane %v3791, %v3818
    %v3820 = vcombine.low %v3798, %v3805
    %v3821 = vcombine.low %v3812, %v3819
    %v3823 = vunpack.c.l.s4 1966171168
    %v3824 = vunpack.c.0.s8 %v3823
    %v3825 = vlaneseq
    %v3826 = vshrl.u32 %v3825, 7
    %v3827 = vsub.s32 %v3824, %v3826
    %v3828 = vrot.slane %v3820, %v3827
    %v3830 = vunpack.c.l.s4 1966171168
    %v3831 = vunpack.c.0.s8 %v3830
    %v3832 = vlaneseq
    %v3833 = vshrl.u32 %v3832, 7
    %v3834 = vsub.s32 %v3831, %v3833
    %v3835 = vrot.slane %v3821, %v3834
    %v3836 = vcombine.low %v3828, %v3835
    %v3837 = vcombine.low %v1469, %v1473
    %v3838 = vcombine.low %v1477, %v1481
    %v3839 = vcombine.low %v1485, %v1489
    %v3840 = vcombine.low %v1493, %v1497
    %v3842 = vunpack.c.l.s4 1966171168
    %v3843 = vunpack.c.0.s8 %v3842
    %v3844 = vlaneseq
    %v3845 = vshrl.u32 %v3844, 7
    %v3846 = vsub.s32 %v3843, %v3845
    %v3847 = vrot.slane %v3837, %v3846
    %v3849 = vunpack.c.l.s4 1966171168
    %v3850 = vunpack.c.0.s8 %v3849
    %v3851 = vlaneseq
    %v3852 = vshrl.u32 %v3851, 7
    %v3853 = vsub.s32 %v3850, %v3852
    %v3854 = vrot.slane %v3838, %v3853
    %v3856 = vunpack.c.l.s4 1966171168
    %v3857 = vunpack.c.0.s8 %v3856
    %v3858 = vlaneseq
    %v3859 = vshrl.u32 %v3858, 7
    %v3860 = vsub.s32 %v3857, %v3859
    %v3861 = vrot.slane %v3839, %v3860
    %v3863 = vunpack.c.l.s4 1966171168
    %v3864 = vunpack.c.0.s8 %v3863
    %v3865 = vlaneseq
    %v3866 = vshrl.u32 %v3865, 7
    %v3867 = vsub.s32 %v3864, %v3866
    %v3868 = vrot.slane %v3840, %v3867
    %v3869 = vcombine.low %v3847, %v3854
    %v3870 = vcombine.low %v3861, %v3868
    %v3872 = vunpack.c.l.s4 1966171168
    %v3873 = vunpack.c.0.s8 %v3872
    %v3874 = vlaneseq
    %v3875 = vshrl.u32 %v3874, 7
    %v3876 = vsub.s32 %v3873, %v3875
    %v3877 = vrot.slane %v3869, %v3876
    %v3879 = vunpack.c.l.s4 1966171168
    %v3880 = vunpack.c.0.s8 %v3879
    %v3881 = vlaneseq
    %v3882 = vshrl.u32 %v3881, 7
    %v3883 = vsub.s32 %v3880, %v3882
    %v3884 = vrot.slane %v3870, %v3883
    %v3885 = vcombine.low %v3877, %v3884
    %v3886 = vcombine.low %v1501, %v1505
    %v3887 = vcombine.low %v1509, %v1513
    %v3888 = vcombine.low %v1517, %v1521
    %v3889 = vcombine.low %v1525, %v1529
    %v3891 = vunpack.c.l.s4 1966171168
    %v3892 = vunpack.c.0.s8 %v3891
    %v3893 = vlaneseq
    %v3894 = vshrl.u32 %v3893, 7
    %v3895 = vsub.s32 %v3892, %v3894
    %v3896 = vrot.slane %v3886, %v3895
    %v3898 = vunpack.c.l.s4 1966171168
    %v3899 = vunpack.c.0.s8 %v3898
    %v3900 = vlaneseq
    %v3901 = vshrl.u32 %v3900, 7
    %v3902 = vsub.s32 %v3899, %v3901
    %v3903 = vrot.slane %v3887, %v3902
    %v3905 = vunpack.c.l.s4 1966171168
    %v3906 = vunpack.c.0.s8 %v3905
    %v3907 = vlaneseq
    %v3908 = vshrl.u32 %v3907, 7
    %v3909 = vsub.s32 %v3906, %v3908
    %v3910 = vrot.slane %v3888, %v3909
    %v3912 = vunpack.c.l.s4 1966171168
    %v3913 = vunpack.c.0.s8 %v3912
    %v3914 = vlaneseq
    %v3915 = vshrl.u32 %v3914, 7
    %v3916 = vsub.s32 %v3913, %v3915
    %v3917 = vrot.slane %v3889, %v3916
    %v3918 = vcombine.low %v3896, %v3903
    %v3919 = vcombine.low %v3910, %v3917
    %v3921 = vunpack.c.l.s4 1966171168
    %v3922 = vunpack.c.0.s8 %v3921
    %v3923 = vlaneseq
    %v3924 = vshrl.u32 %v3923, 7
    %v3925 = vsub.s32 %v3922, %v3924
    %v3926 = vrot.slane %v3918, %v3925
    %v3928 = vunpack.c.l.s4 1966171168
    %v3929 = vunpack.c.0.s8 %v3928
    %v3930 = vlaneseq
    %v3931 = vshrl.u32 %v3930, 7
    %v3932 = vsub.s32 %v3929, %v3931
    %v3933 = vrot.slane %v3919, %v3932
    %v3934 = vcombine.low %v3926, %v3933
    %v3935 = vcombine.low %v1533, %v1537
    %v3936 = vcombine.low %v1541, %v1545
    %v3937 = vcombine.low %v1549, %v1553
    %v3938 = vcombine.low %v1557, %v1561
    %v3940 = vunpack.c.l.s4 1966171168
    %v3941 = vunpack.c.0.s8 %v3940
    %v3942 = vlaneseq
    %v3943 = vshrl.u32 %v3942, 7
    %v3944 = vsub.s32 %v3941, %v3943
    %v3945 = vrot.slane %v3935, %v3944
    %v3947 = vunpack.c.l.s4 1966171168
    %v3948 = vunpack.c.0.s8 %v3947
    %v3949 = vlaneseq
    %v3950 = vshrl.u32 %v3949, 7
    %v3951 = vsub.s32 %v3948, %v3950
    %v3952 = vrot.slane %v3936, %v3951
    %v3954 = vunpack.c.l.s4 1966171168
    %v3955 = vunpack.c.0.s8 %v3954
    %v3956 = vlaneseq
    %v3957 = vshrl.u32 %v3956, 7
    %v3958 = vsub.s32 %v3955, %v3957
    %v3959 = vrot.slane %v3937, %v3958
    %v3961 = vunpack.c.l.s4 1966171168
    %v3962 = vunpack.c.0.s8 %v3961
    %v3963 = vlaneseq
    %v3964 = vshrl.u32 %v3963, 7
    %v3965 = vsub.s32 %v3962, %v3964
    %v3966 = vrot.slane %v3938, %v3965
    %v3967 = vcombine.low %v3945, %v3952
    %v3968 = vcombine.low %v3959, %v3966
    %v3970 = vunpack.c.l.s4 1966171168
    %v3971 = vunpack.c.0.s8 %v3970
    %v3972 = vlaneseq
    %v3973 = vshrl.u32 %v3972, 7
    %v3974 = vsub.s32 %v3971, %v3973
    %v3975 = vrot.slane %v3967, %v3974
    %v3977 = vunpack.c.l.s4 1966171168
    %v3978 = vunpack.c.0.s8 %v3977
    %v3979 = vlaneseq
    %v3980 = vshrl.u32 %v3979, 7
    %v3981 = vsub.s32 %v3978, %v3980
    %v3982 = vrot.slane %v3968, %v3981
    %v3983 = vcombine.low %v3975, %v3982
    %v3984 = vcombine.low %v1565, %v1569
    %v3985 = vcombine.low %v1573, %v1577
    %v3986 = vcombine.low %v1581, %v1585
    %v3987 = vcombine.low %v1589, %v1593
    %v3989 = vunpack.c.l.s4 1966171168
    %v3990 = vunpack.c.0.s8 %v3989
    %v3991 = vlaneseq
    %v3992 = vshrl.u32 %v3991, 7
    %v3993 = vsub.s32 %v3990, %v3992
    %v3994 = vrot.slane %v3984, %v3993
    %v3996 = vunpack.c.l.s4 1966171168
    %v3997 = vunpack.c.0.s8 %v3996
    %v3998 = vlaneseq
    %v3999 = vshrl.u32 %v3998, 7
    %v4000 = vsub.s32 %v3997, %v3999
    %v4001 = vrot.slane %v3985, %v4000
    %v4003 = vunpack.c.l.s4 1966171168
    %v4004 = vunpack.c.0.s8 %v4003
    %v4005 = vlaneseq
    %v4006 = vshrl.u32 %v4005, 7
    %v4007 = vsub.s32 %v4004, %v4006
    %v4008 = vrot.slane %v3986, %v4007
    %v4010 = vunpack.c.l.s4 1966171168
    %v4011 = vunpack.c.0.s8 %v4010
    %v4012 = vlaneseq
    %v4013 = vshrl.u32 %v4012, 7
    %v4014 = vsub.s32 %v4011, %v4013
    %v4015 = vrot.slane %v3987, %v4014
    %v4016 = vcombine.low %v3994, %v4001
    %v4017 = vcombine.low %v4008, %v4015
    %v4019 = vunpack.c.l.s4 1966171168
    %v4020 = vunpack.c.0.s8 %v4019
    %v4021 = vlaneseq
    %v4022 = vshrl.u32 %v4021, 7
    %v4023 = vsub.s32 %v4020, %v4022
    %v4024 = vrot.slane %v4016, %v4023
    %v4026 = vunpack.c.l.s4 1966171168
    %v4027 = vunpack.c.0.s8 %v4026
    %v4028 = vlaneseq
    %v4029 = vshrl.u32 %v4028, 7
    %v4030 = vsub.s32 %v4027, %v4029
    %v4031 = vrot.slane %v4017, %v4030
    %v4032 = vcombine.low %v4024, %v4031
    %v4033 = vcombine.low %v1597, %v1601
    %v4034 = vcombine.low %v1605, %v1609
    %v4035 = vcombine.low %v1613, %v1617
    %v4036 = vcombine.low %v1621, %v1625
    %v4038 = vunpack.c.l.s4 1966171168
    %v4039 = vunpack.c.0.s8 %v4038
    %v4040 = vlaneseq
    %v4041 = vshrl.u32 %v4040, 7
    %v4042 = vsub.s32 %v4039, %v4041
    %v4043 = vrot.slane %v4033, %v4042
    %v4045 = vunpack.c.l.s4 1966171168
    %v4046 = vunpack.c.0.s8 %v4045
    %v4047 = vlaneseq
    %v4048 = vshrl.u32 %v4047, 7
    %v4049 = vsub.s32 %v4046, %v4048
    %v4050 = vrot.slane %v4034, %v4049
    %v4052 = vunpack.c.l.s4 1966171168
    %v4053 = vunpack.c.0.s8 %v4052
    %v4054 = vlaneseq
    %v4055 = vshrl.u32 %v4054, 7
    %v4056 = vsub.s32 %v4053, %v4055
    %v4057 = vrot.slane %v4035, %v4056
    %v4059 = vunpack.c.l.s4 1966171168
    %v4060 = vunpack.c.0.s8 %v4059
    %v4061 = vlaneseq
    %v4062 = vshrl.u32 %v4061, 7
    %v4063 = vsub.s32 %v4060, %v4062
    %v4064 = vrot.slane %v4036, %v4063
    %v4065 = vcombine.low %v4043, %v4050
    %v4066 = vcombine.low %v4057, %v4064
    %v4068 = vunpack.c.l.s4 1966171168
    %v4069 = vunpack.c.0.s8 %v4068
    %v4070 = vlaneseq
    %v4071 = vshrl.u32 %v4070, 7
    %v4072 = vsub.s32 %v4069, %v4071
    %v4073 = vrot.slane %v4065, %v4072
    %v4075 = vunpack.c.l.s4 1966171168
    %v4076 = vunpack.c.0.s8 %v4075
    %v4077 = vlaneseq
    %v4078 = vshrl.u32 %v4077, 7
    %v4079 = vsub.s32 %v4076, %v4078
    %v4080 = vrot.slane %v4066, %v4079
    %v4081 = vcombine.low %v4073, %v4080
    %v4082 = vcombine.low %v1629, %v1633
    %v4083 = vcombine.low %v1637, %v1641
    %v4084 = vcombine.low %v1645, %v1649
    %v4085 = vcombine.low %v1653, %v1657
    %v4087 = vunpack.c.l.s4 1966171168
    %v4088 = vunpack.c.0.s8 %v4087
    %v4089 = vlaneseq
    %v4090 = vshrl.u32 %v4089, 7
    %v4091 = vsub.s32 %v4088, %v4090
    %v4092 = vrot.slane %v4082, %v4091
    %v4094 = vunpack.c.l.s4 1966171168
    %v4095 = vunpack.c.0.s8 %v4094
    %v4096 = vlaneseq
    %v4097 = vshrl.u32 %v4096, 7
    %v4098 = vsub.s32 %v4095, %v4097
    %v4099 = vrot.slane %v4083, %v4098
    %v4101 = vunpack.c.l.s4 1966171168
    %v4102 = vunpack.c.0.s8 %v4101
    %v4103 = vlaneseq
    %v4104 = vshrl.u32 %v4103, 7
    %v4105 = vsub.s32 %v4102, %v4104
    %v4106 = vrot.slane %v4084, %v4105
    %v4108 = vunpack.c.l.s4 1966171168
    %v4109 = vunpack.c.0.s8 %v4108
    %v4110 = vlaneseq
    %v4111 = vshrl.u32 %v4110, 7
    %v4112 = vsub.s32 %v4109, %v4111
    %v4113 = vrot.slane %v4085, %v4112
    %v4114 = vcombine.low %v4092, %v4099
    %v4115 = vcombine.low %v4106, %v4113
    %v4117 = vunpack.c.l.s4 1966171168
    %v4118 = vunpack.c.0.s8 %v4117
    %v4119 = vlaneseq
    %v4120 = vshrl.u32 %v4119, 7
    %v4121 = vsub.s32 %v4118, %v4120
    %v4122 = vrot.slane %v4114, %v4121
    %v4124 = vunpack.c.l.s4 1966171168
    %v4125 = vunpack.c.0.s8 %v4124
    %v4126 = vlaneseq
    %v4127 = vshrl.u32 %v4126, 7
    %v4128 = vsub.s32 %v4125, %v4127
    %v4129 = vrot.slane %v4115, %v4128
    %v4130 = vcombine.low %v4122, %v4129
    %v4131 = vcombine.low %v1661, %v1665
    %v4132 = vcombine.low %v1669, %v1673
    %v4133 = vcombine.low %v1677, %v1681
    %v4134 = vcombine.low %v1685, %v1689
    %v4136 = vunpack.c.l.s4 1966171168
    %v4137 = vunpack.c.0.s8 %v4136
    %v4138 = vlaneseq
    %v4139 = vshrl.u32 %v4138, 7
    %v4140 = vsub.s32 %v4137, %v4139
    %v4141 = vrot.slane %v4131, %v4140
    %v4143 = vunpack.c.l.s4 1966171168
    %v4144 = vunpack.c.0.s8 %v4143
    %v4145 = vlaneseq
    %v4146 = vshrl.u32 %v4145, 7
    %v4147 = vsub.s32 %v4144, %v4146
    %v4148 = vrot.slane %v4132, %v4147
    %v4150 = vunpack.c.l.s4 1966171168
    %v4151 = vunpack.c.0.s8 %v4150
    %v4152 = vlaneseq
    %v4153 = vshrl.u32 %v4152, 7
    %v4154 = vsub.s32 %v4151, %v4153
    %v4155 = vrot.slane %v4133, %v4154
    %v4157 = vunpack.c.l.s4 1966171168
    %v4158 = vunpack.c.0.s8 %v4157
    %v4159 = vlaneseq
    %v4160 = vshrl.u32 %v4159, 7
    %v4161 = vsub.s32 %v4158, %v4160
    %v4162 = vrot.slane %v4134, %v4161
    %v4163 = vcombine.low %v4141, %v4148
    %v4164 = vcombine.low %v4155, %v4162
    %v4166 = vunpack.c.l.s4 1966171168
    %v4167 = vunpack.c.0.s8 %v4166
    %v4168 = vlaneseq
    %v4169 = vshrl.u32 %v4168, 7
    %v4170 = vsub.s32 %v4167, %v4169
    %v4171 = vrot.slane %v4163, %v4170
    %v4173 = vunpack.c.l.s4 1966171168
    %v4174 = vunpack.c.0.s8 %v4173
    %v4175 = vlaneseq
    %v4176 = vshrl.u32 %v4175, 7
    %v4177 = vsub.s32 %v4174, %v4176
    %v4178 = vrot.slane %v4164, %v4177
    %v4179 = vcombine.low %v4171, %v4178
    %v4180 = vcombine.low %v1693, %v1697
    %v4181 = vcombine.low %v1701, %v1705
    %v4182 = vcombine.low %v1709, %v1713
    %v4183 = vcombine.low %v1717, %v1721
    %v4185 = vunpack.c.l.s4 1966171168
    %v4186 = vunpack.c.0.s8 %v4185
    %v4187 = vlaneseq
    %v4188 = vshrl.u32 %v4187, 7
    %v4189 = vsub.s32 %v4186, %v4188
    %v4190 = vrot.slane %v4180, %v4189
    %v4192 = vunpack.c.l.s4 1966171168
    %v4193 = vunpack.c.0.s8 %v4192
    %v4194 = vlaneseq
    %v4195 = vshrl.u32 %v4194, 7
    %v4196 = vsub.s32 %v4193, %v4195
    %v4197 = vrot.slane %v4181, %v4196
    %v4199 = vunpack.c.l.s4 1966171168
    %v4200 = vunpack.c.0.s8 %v4199
    %v4201 = vlaneseq
    %v4202 = vshrl.u32 %v4201, 7
    %v4203 = vsub.s32 %v4200, %v4202
    %v4204 = vrot.slane %v4182, %v4203
    %v4206 = vunpack.c.l.s4 1966171168
    %v4207 = vunpack.c.0.s8 %v4206
    %v4208 = vlaneseq
    %v4209 = vshrl.u32 %v4208, 7
    %v4210 = vsub.s32 %v4207, %v4209
    %v4211 = vrot.slane %v4183, %v4210
    %v4212 = vcombine.low %v4190, %v4197
    %v4213 = vcombine.low %v4204, %v4211
    %v4215 = vunpack.c.l.s4 1966171168
    %v4216 = vunpack.c.0.s8 %v4215
    %v4217 = vlaneseq
    %v4218 = vshrl.u32 %v4217, 7
    %v4219 = vsub.s32 %v4216, %v4218
    %v4220 = vrot.slane %v4212, %v4219
    %v4222 = vunpack.c.l.s4 1966171168
    %v4223 = vunpack.c.0.s8 %v4222
    %v4224 = vlaneseq
    %v4225 = vshrl.u32 %v4224, 7
    %v4226 = vsub.s32 %v4223, %v4225
    %v4227 = vrot.slane %v4213, %v4226
    %v4228 = vcombine.low %v4220, %v4227
    %v4229 = vcombine.low %v1725, %v1729
    %v4230 = vcombine.low %v1733, %v1737
    %v4231 = vcombine.low %v1741, %v1745
    %v4232 = vcombine.low %v1749, %v1753
    %v4234 = vunpack.c.l.s4 1966171168
    %v4235 = vunpack.c.0.s8 %v4234
    %v4236 = vlaneseq
    %v4237 = vshrl.u32 %v4236, 7
    %v4238 = vsub.s32 %v4235, %v4237
    %v4239 = vrot.slane %v4229, %v4238
    %v4241 = vunpack.c.l.s4 1966171168
    %v4242 = vunpack.c.0.s8 %v4241
    %v4243 = vlaneseq
    %v4244 = vshrl.u32 %v4243, 7
    %v4245 = vsub.s32 %v4242, %v4244
    %v4246 = vrot.slane %v4230, %v4245
    %v4248 = vunpack.c.l.s4 1966171168
    %v4249 = vunpack.c.0.s8 %v4248
    %v4250 = vlaneseq
    %v4251 = vshrl.u32 %v4250, 7
    %v4252 = vsub.s32 %v4249, %v4251
    %v4253 = vrot.slane %v4231, %v4252
    %v4255 = vunpack.c.l.s4 1966171168
    %v4256 = vunpack.c.0.s8 %v4255
    %v4257 = vlaneseq
    %v4258 = vshrl.u32 %v4257, 7
    %v4259 = vsub.s32 %v4256, %v4258
    %v4260 = vrot.slane %v4232, %v4259
    %v4261 = vcombine.low %v4239, %v4246
    %v4262 = vcombine.low %v4253, %v4260
    %v4264 = vunpack.c.l.s4 1966171168
    %v4265 = vunpack.c.0.s8 %v4264
    %v4266 = vlaneseq
    %v4267 = vshrl.u32 %v4266, 7
    %v4268 = vsub.s32 %v4265, %v4267
    %v4269 = vrot.slane %v4261, %v4268
    %v4271 = vunpack.c.l.s4 1966171168
    %v4272 = vunpack.c.0.s8 %v4271
    %v4273 = vlaneseq
    %v4274 = vshrl.u32 %v4273, 7
    %v4275 = vsub.s32 %v4272, %v4274
    %v4276 = vrot.slane %v4262, %v4275
    %v4277 = vcombine.low %v4269, %v4276
    %v4278 = vcombine.low %v1757, %v1761
    %v4279 = vcombine.low %v1765, %v1769
    %v4280 = vcombine.low %v1773, %v1777
    %v4281 = vcombine.low %v1781, %v1785
    %v4283 = vunpack.c.l.s4 1966171168
    %v4284 = vunpack.c.0.s8 %v4283
    %v4285 = vlaneseq
    %v4286 = vshrl.u32 %v4285, 7
    %v4287 = vsub.s32 %v4284, %v4286
    %v4288 = vrot.slane %v4278, %v4287
    %v4290 = vunpack.c.l.s4 1966171168
    %v4291 = vunpack.c.0.s8 %v4290
    %v4292 = vlaneseq
    %v4293 = vshrl.u32 %v4292, 7
    %v4294 = vsub.s32 %v4291, %v4293
    %v4295 = vrot.slane %v4279, %v4294
    %v4297 = vunpack.c.l.s4 1966171168
    %v4298 = vunpack.c.0.s8 %v4297
    %v4299 = vlaneseq
    %v4300 = vshrl.u32 %v4299, 7
    %v4301 = vsub.s32 %v4298, %v4300
    %v4302 = vrot.slane %v4280, %v4301
    %v4304 = vunpack.c.l.s4 1966171168
    %v4305 = vunpack.c.0.s8 %v4304
    %v4306 = vlaneseq
    %v4307 = vshrl.u32 %v4306, 7
    %v4308 = vsub.s32 %v4305, %v4307
    %v4309 = vrot.slane %v4281, %v4308
    %v4310 = vcombine.low %v4288, %v4295
    %v4311 = vcombine.low %v4302, %v4309
    %v4313 = vunpack.c.l.s4 1966171168
    %v4314 = vunpack.c.0.s8 %v4313
    %v4315 = vlaneseq
    %v4316 = vshrl.u32 %v4315, 7
    %v4317 = vsub.s32 %v4314, %v4316
    %v4318 = vrot.slane %v4310, %v4317
    %v4320 = vunpack.c.l.s4 1966171168
    %v4321 = vunpack.c.0.s8 %v4320
    %v4322 = vlaneseq
    %v4323 = vshrl.u32 %v4322, 7
    %v4324 = vsub.s32 %v4321, %v4323
    %v4325 = vrot.slane %v4311, %v4324
    %v4326 = vcombine.low %v4318, %v4325
    %v4327 = vcombine.low %v1789, %v1793
    %v4328 = vcombine.low %v1797, %v1801
    %v4329 = vcombine.low %v1805, %v1809
    %v4330 = vcombine.low %v1813, %v1817
    %v4332 = vunpack.c.l.s4 1966171168
    %v4333 = vunpack.c.0.s8 %v4332
    %v4334 = vlaneseq
    %v4335 = vshrl.u32 %v4334, 7
    %v4336 = vsub.s32 %v4333, %v4335
    %v4337 = vrot.slane %v4327, %v4336
    %v4339 = vunpack.c.l.s4 1966171168
    %v4340 = vunpack.c.0.s8 %v4339
    %v4341 = vlaneseq
    %v4342 = vshrl.u32 %v4341, 7
    %v4343 = vsub.s32 %v4340, %v4342
    %v4344 = vrot.slane %v4328, %v4343
    %v4346 = vunpack.c.l.s4 1966171168
    %v4347 = vunpack.c.0.s8 %v4346
    %v4348 = vlaneseq
    %v4349 = vshrl.u32 %v4348, 7
    %v4350 = vsub.s32 %v4347, %v4349
    %v4351 = vrot.slane %v4329, %v4350
    %v4353 = vunpack.c.l.s4 1966171168
    %v4354 = vunpack.c.0.s8 %v4353
    %v4355 = vlaneseq
    %v4356 = vshrl.u32 %v4355, 7
    %v4357 = vsub.s32 %v4354, %v4356
    %v4358 = vrot.slane %v4330, %v4357
    %v4359 = vcombine.low %v4337, %v4344
    %v4360 = vcombine.low %v4351, %v4358
    %v4362 = vunpack.c.l.s4 1966171168
    %v4363 = vunpack.c.0.s8 %v4362
    %v4364 = vlaneseq
    %v4365 = vshrl.u32 %v4364, 7
    %v4366 = vsub.s32 %v4363, %v4365
    %v4367 = vrot.slane %v4359, %v4366
    %v4369 = vunpack.c.l.s4 1966171168
    %v4370 = vunpack.c.0.s8 %v4369
    %v4371 = vlaneseq
    %v4372 = vshrl.u32 %v4371, 7
    %v4373 = vsub.s32 %v4370, %v4372
    %v4374 = vrot.slane %v4360, %v4373
    %v4375 = vcombine.low %v4367, %v4374
    %v4376 = vcombine.low %v1821, %v1825
    %v4377 = vcombine.low %v1829, %v1833
    %v4378 = vcombine.low %v1837, %v1841
    %v4379 = vcombine.low %v1845, %v1849
    %v4381 = vunpack.c.l.s4 1966171168
    %v4382 = vunpack.c.0.s8 %v4381
    %v4383 = vlaneseq
    %v4384 = vshrl.u32 %v4383, 7
    %v4385 = vsub.s32 %v4382, %v4384
    %v4386 = vrot.slane %v4376, %v4385
    %v4388 = vunpack.c.l.s4 1966171168
    %v4389 = vunpack.c.0.s8 %v4388
    %v4390 = vlaneseq
    %v4391 = vshrl.u32 %v4390, 7
    %v4392 = vsub.s32 %v4389, %v4391
    %v4393 = vrot.slane %v4377, %v4392
    %v4395 = vunpack.c.l.s4 1966171168
    %v4396 = vunpack.c.0.s8 %v4395
    %v4397 = vlaneseq
    %v4398 = vshrl.u32 %v4397, 7
    %v4399 = vsub.s32 %v4396, %v4398
    %v4400 = vrot.slane %v4378, %v4399
    %v4402 = vunpack.c.l.s4 1966171168
    %v4403 = vunpack.c.0.s8 %v4402
    %v4404 = vlaneseq
    %v4405 = vshrl.u32 %v4404, 7
    %v4406 = vsub.s32 %v4403, %v4405
    %v4407 = vrot.slane %v4379, %v4406
    %v4408 = vcombine.low %v4386, %v4393
    %v4409 = vcombine.low %v4400, %v4407
    %v4411 = vunpack.c.l.s4 1966171168
    %v4412 = vunpack.c.0.s8 %v4411
    %v4413 = vlaneseq
    %v4414 = vshrl.u32 %v4413, 7
    %v4415 = vsub.s32 %v4412, %v4414
    %v4416 = vrot.slane %v4408, %v4415
    %v4418 = vunpack.c.l.s4 1966171168
    %v4419 = vunpack.c.0.s8 %v4418
    %v4420 = vlaneseq
    %v4421 = vshrl.u32 %v4420, 7
    %v4422 = vsub.s32 %v4419, %v4421
    %v4423 = vrot.slane %v4409, %v4422
    %v4424 = vcombine.low %v4416, %v4423
    %v4425 = vcombine.low %v1853, %v1857
    %v4426 = vcombine.low %v1861, %v1865
    %v4427 = vcombine.low %v1869, %v1873
    %v4428 = vcombine.low %v1877, %v1881
    %v4430 = vunpack.c.l.s4 1966171168
    %v4431 = vunpack.c.0.s8 %v4430
    %v4432 = vlaneseq
    %v4433 = vshrl.u32 %v4432, 7
    %v4434 = vsub.s32 %v4431, %v4433
    %v4435 = vrot.slane %v4425, %v4434
    %v4437 = vunpack.c.l.s4 1966171168
    %v4438 = vunpack.c.0.s8 %v4437
    %v4439 = vlaneseq
    %v4440 = vshrl.u32 %v4439, 7
    %v4441 = vsub.s32 %v4438, %v4440
    %v4442 = vrot.slane %v4426, %v4441
    %v4444 = vunpack.c.l.s4 1966171168
    %v4445 = vunpack.c.0.s8 %v4444
    %v4446 = vlaneseq
    %v4447 = vshrl.u32 %v4446, 7
    %v4448 = vsub.s32 %v4445, %v4447
    %v4449 = vrot.slane %v4427, %v4448
    %v4451 = vunpack.c.l.s4 1966171168
    %v4452 = vunpack.c.0.s8 %v4451
    %v4453 = vlaneseq
    %v4454 = vshrl.u32 %v4453, 7
    %v4455 = vsub.s32 %v4452, %v4454
    %v4456 = vrot.slane %v4428, %v4455
    %v4457 = vcombine.low %v4435, %v4442
    %v4458 = vcombine.low %v4449, %v4456
    %v4460 = vunpack.c.l.s4 1966171168
    %v4461 = vunpack.c.0.s8 %v4460
    %v4462 = vlaneseq
    %v4463 = vshrl.u32 %v4462, 7
    %v4464 = vsub.s32 %v4461, %v4463
    %v4465 = vrot.slane %v4457, %v4464
    %v4467 = vunpack.c.l.s4 1966171168
    %v4468 = vunpack.c.0.s8 %v4467
    %v4469 = vlaneseq
    %v4470 = vshrl.u32 %v4469, 7
    %v4471 = vsub.s32 %v4468, %v4470
    %v4472 = vrot.slane %v4458, %v4471
    %v4473 = vcombine.low %v4465, %v4472
    %v4474 = vcombine.low %v1885, %v1889
    %v4475 = vcombine.low %v1893, %v1897
    %v4476 = vcombine.low %v1901, %v1905
    %v4477 = vcombine.low %v1909, %v1913
    %v4479 = vunpack.c.l.s4 1966171168
    %v4480 = vunpack.c.0.s8 %v4479
    %v4481 = vlaneseq
    %v4482 = vshrl.u32 %v4481, 7
    %v4483 = vsub.s32 %v4480, %v4482
    %v4484 = vrot.slane %v4474, %v4483
    %v4486 = vunpack.c.l.s4 1966171168
    %v4487 = vunpack.c.0.s8 %v4486
    %v4488 = vlaneseq
    %v4489 = vshrl.u32 %v4488, 7
    %v4490 = vsub.s32 %v4487, %v4489
    %v4491 = vrot.slane %v4475, %v4490
    %v4493 = vunpack.c.l.s4 1966171168
    %v4494 = vunpack.c.0.s8 %v4493
    %v4495 = vlaneseq
    %v4496 = vshrl.u32 %v4495, 7
    %v4497 = vsub.s32 %v4494, %v4496
    %v4498 = vrot.slane %v4476, %v4497
    %v4500 = vunpack.c.l.s4 1966171168
    %v4501 = vunpack.c.0.s8 %v4500
    %v4502 = vlaneseq
    %v4503 = vshrl.u32 %v4502, 7
    %v4504 = vsub.s32 %v4501, %v4503
    %v4505 = vrot.slane %v4477, %v4504
    %v4506 = vcombine.low %v4484, %v4491
    %v4507 = vcombine.low %v4498, %v4505
    %v4509 = vunpack.c.l.s4 1966171168
    %v4510 = vunpack.c.0.s8 %v4509
    %v4511 = vlaneseq
    %v4512 = vshrl.u32 %v4511, 7
    %v4513 = vsub.s32 %v4510, %v4512
    %v4514 = vrot.slane %v4506, %v4513
    %v4516 = vunpack.c.l.s4 1966171168
    %v4517 = vunpack.c.0.s8 %v4516
    %v4518 = vlaneseq
    %v4519 = vshrl.u32 %v4518, 7
    %v4520 = vsub.s32 %v4517, %v4519
    %v4521 = vrot.slane %v4507, %v4520
    %v4522 = vcombine.low %v4514, %v4521
    %v4523 = vcombine.low %v1917, %v1921
    %v4524 = vcombine.low %v1925, %v1929
    %v4525 = vcombine.low %v1933, %v1937
    %v4526 = vcombine.low %v1941, %v1945
    %v4528 = vunpack.c.l.s4 1966171168
    %v4529 = vunpack.c.0.s8 %v4528
    %v4530 = vlaneseq
    %v4531 = vshrl.u32 %v4530, 7
    %v4532 = vsub.s32 %v4529, %v4531
    %v4533 = vrot.slane %v4523, %v4532
    %v4535 = vunpack.c.l.s4 1966171168
    %v4536 = vunpack.c.0.s8 %v4535
    %v4537 = vlaneseq
    %v4538 = vshrl.u32 %v4537, 7
    %v4539 = vsub.s32 %v4536, %v4538
    %v4540 = vrot.slane %v4524, %v4539
    %v4542 = vunpack.c.l.s4 1966171168
    %v4543 = vunpack.c.0.s8 %v4542
    %v4544 = vlaneseq
    %v4545 = vshrl.u32 %v4544, 7
    %v4546 = vsub.s32 %v4543, %v4545
    %v4547 = vrot.slane %v4525, %v4546
    %v4549 = vunpack.c.l.s4 1966171168
    %v4550 = vunpack.c.0.s8 %v4549
    %v4551 = vlaneseq
    %v4552 = vshrl.u32 %v4551, 7
    %v4553 = vsub.s32 %v4550, %v4552
    %v4554 = vrot.slane %v4526, %v4553
    %v4555 = vcombine.low %v4533, %v4540
    %v4556 = vcombine.low %v4547, %v4554
    %v4558 = vunpack.c.l.s4 1966171168
    %v4559 = vunpack.c.0.s8 %v4558
    %v4560 = vlaneseq
    %v4561 = vshrl.u32 %v4560, 7
    %v4562 = vsub.s32 %v4559, %v4561
    %v4563 = vrot.slane %v4555, %v4562
    %v4565 = vunpack.c.l.s4 1966171168
    %v4566 = vunpack.c.0.s8 %v4565
    %v4567 = vlaneseq
    %v4568 = vshrl.u32 %v4567, 7
    %v4569 = vsub.s32 %v4566, %v4568
    %v4570 = vrot.slane %v4556, %v4569
    %v4571 = vcombine.low %v4563, %v4570
    %v4572 = vcombine.low %v1949, %v1953
    %v4573 = vcombine.low %v1957, %v1961
    %v4574 = vcombine.low %v1965, %v1969
    %v4575 = vcombine.low %v1973, %v1977
    %v4577 = vunpack.c.l.s4 1966171168
    %v4578 = vunpack.c.0.s8 %v4577
    %v4579 = vlaneseq
    %v4580 = vshrl.u32 %v4579, 7
    %v4581 = vsub.s32 %v4578, %v4580
    %v4582 = vrot.slane %v4572, %v4581
    %v4584 = vunpack.c.l.s4 1966171168
    %v4585 = vunpack.c.0.s8 %v4584
    %v4586 = vlaneseq
    %v4587 = vshrl.u32 %v4586, 7
    %v4588 = vsub.s32 %v4585, %v4587
    %v4589 = vrot.slane %v4573, %v4588
    %v4591 = vunpack.c.l.s4 1966171168
    %v4592 = vunpack.c.0.s8 %v4591
    %v4593 = vlaneseq
    %v4594 = vshrl.u32 %v4593, 7
    %v4595 = vsub.s32 %v4592, %v4594
    %v4596 = vrot.slane %v4574, %v4595
    %v4598 = vunpack.c.l.s4 1966171168
    %v4599 = vunpack.c.0.s8 %v4598
    %v4600 = vlaneseq
    %v4601 = vshrl.u32 %v4600, 7
    %v4602 = vsub.s32 %v4599, %v4601
    %v4603 = vrot.slane %v4575, %v4602
    %v4604 = vcombine.low %v4582, %v4589
    %v4605 = vcombine.low %v4596, %v4603
    %v4607 = vunpack.c.l.s4 1966171168
    %v4608 = vunpack.c.0.s8 %v4607
    %v4609 = vlaneseq
    %v4610 = vshrl.u32 %v4609, 7
    %v4611 = vsub.s32 %v4608, %v4610
    %v4612 = vrot.slane %v4604, %v4611
    %v4614 = vunpack.c.l.s4 1966171168
    %v4615 = vunpack.c.0.s8 %v4614
    %v4616 = vlaneseq
    %v4617 = vshrl.u32 %v4616, 7
    %v4618 = vsub.s32 %v4615, %v4617
    %v4619 = vrot.slane %v4605, %v4618
    %v4620 = vcombine.low %v4612, %v4619
    %v4621 = vcombine.low %v1981, %v1985
    %v4622 = vcombine.low %v1989, %v1993
    %v4623 = vcombine.low %v1997, %v2001
    %v4624 = vcombine.low %v2005, %v2009
    %v4626 = vunpack.c.l.s4 1966171168
    %v4627 = vunpack.c.0.s8 %v4626
    %v4628 = vlaneseq
    %v4629 = vshrl.u32 %v4628, 7
    %v4630 = vsub.s32 %v4627, %v4629
    %v4631 = vrot.slane %v4621, %v4630
    %v4633 = vunpack.c.l.s4 1966171168
    %v4634 = vunpack.c.0.s8 %v4633
    %v4635 = vlaneseq
    %v4636 = vshrl.u32 %v4635, 7
    %v4637 = vsub.s32 %v4634, %v4636
    %v4638 = vrot.slane %v4622, %v4637
    %v4640 = vunpack.c.l.s4 1966171168
    %v4641 = vunpack.c.0.s8 %v4640
    %v4642 = vlaneseq
    %v4643 = vshrl.u32 %v4642, 7
    %v4644 = vsub.s32 %v4641, %v4643
    %v4645 = vrot.slane %v4623, %v4644
    %v4647 = vunpack.c.l.s4 1966171168
    %v4648 = vunpack.c.0.s8 %v4647
    %v4649 = vlaneseq
    %v4650 = vshrl.u32 %v4649, 7
    %v4651 = vsub.s32 %v4648, %v4650
    %v4652 = vrot.slane %v4624, %v4651
    %v4653 = vcombine.low %v4631, %v4638
    %v4654 = vcombine.low %v4645, %v4652
    %v4656 = vunpack.c.l.s4 1966171168
    %v4657 = vunpack.c.0.s8 %v4656
    %v4658 = vlaneseq
    %v4659 = vshrl.u32 %v4658, 7
    %v4660 = vsub.s32 %v4657, %v4659
    %v4661 = vrot.slane %v4653, %v4660
    %v4663 = vunpack.c.l.s4 1966171168
    %v4664 = vunpack.c.0.s8 %v4663
    %v4665 = vlaneseq
    %v4666 = vshrl.u32 %v4665, 7
    %v4667 = vsub.s32 %v4664, %v4666
    %v4668 = vrot.slane %v4654, %v4667
    %v4669 = vcombine.low %v4661, %v4668
    %v4670 = vcombine.low %v2013, %v2017
    %v4671 = vcombine.low %v2021, %v2025
    %v4672 = vcombine.low %v2029, %v2033
    %v4673 = vcombine.low %v2037, %v2041
    %v4675 = vunpack.c.l.s4 1966171168
    %v4676 = vunpack.c.0.s8 %v4675
    %v4677 = vlaneseq
    %v4678 = vshrl.u32 %v4677, 7
    %v4679 = vsub.s32 %v4676, %v4678
    %v4680 = vrot.slane %v4670, %v4679
    %v4682 = vunpack.c.l.s4 1966171168
    %v4683 = vunpack.c.0.s8 %v4682
    %v4684 = vlaneseq
    %v4685 = vshrl.u32 %v4684, 7
    %v4686 = vsub.s32 %v4683, %v4685
    %v4687 = vrot.slane %v4671, %v4686
    %v4689 = vunpack.c.l.s4 1966171168
    %v4690 = vunpack.c.0.s8 %v4689
    %v4691 = vlaneseq
    %v4692 = vshrl.u32 %v4691, 7
    %v4693 = vsub.s32 %v4690, %v4692
    %v4694 = vrot.slane %v4672, %v4693
    %v4696 = vunpack.c.l.s4 1966171168
    %v4697 = vunpack.c.0.s8 %v4696
    %v4698 = vlaneseq
    %v4699 = vshrl.u32 %v4698, 7
    %v4700 = vsub.s32 %v4697, %v4699
    %v4701 = vrot.slane %v4673, %v4700
    %v4702 = vcombine.low %v4680, %v4687
    %v4703 = vcombine.low %v4694, %v4701
    %v4705 = vunpack.c.l.s4 1966171168
    %v4706 = vunpack.c.0.s8 %v4705
    %v4707 = vlaneseq
    %v4708 = vshrl.u32 %v4707, 7
    %v4709 = vsub.s32 %v4706, %v4708
    %v4710 = vrot.slane %v4702, %v4709
    %v4712 = vunpack.c.l.s4 1966171168
    %v4713 = vunpack.c.0.s8 %v4712
    %v4714 = vlaneseq
    %v4715 = vshrl.u32 %v4714, 7
    %v4716 = vsub.s32 %v4713, %v4715
    %v4717 = vrot.slane %v4703, %v4716
    %v4718 = vcombine.low %v4710, %v4717
    %v4719 = vcombine.low %v2045, %v2049
    %v4720 = vcombine.low %v2053, %v2057
    %v4721 = vcombine.low %v2061, %v2065
    %v4722 = vcombine.low %v2069, %v2073
    %v4724 = vunpack.c.l.s4 1966171168
    %v4725 = vunpack.c.0.s8 %v4724
    %v4726 = vlaneseq
    %v4727 = vshrl.u32 %v4726, 7
    %v4728 = vsub.s32 %v4725, %v4727
    %v4729 = vrot.slane %v4719, %v4728
    %v4731 = vunpack.c.l.s4 1966171168
    %v4732 = vunpack.c.0.s8 %v4731
    %v4733 = vlaneseq
    %v4734 = vshrl.u32 %v4733, 7
    %v4735 = vsub.s32 %v4732, %v4734
    %v4736 = vrot.slane %v4720, %v4735
    %v4738 = vunpack.c.l.s4 1966171168
    %v4739 = vunpack.c.0.s8 %v4738
    %v4740 = vlaneseq
    %v4741 = vshrl.u32 %v4740, 7
    %v4742 = vsub.s32 %v4739, %v4741
    %v4743 = vrot.slane %v4721, %v4742
    %v4745 = vunpack.c.l.s4 1966171168
    %v4746 = vunpack.c.0.s8 %v4745
    %v4747 = vlaneseq
    %v4748 = vshrl.u32 %v4747, 7
    %v4749 = vsub.s32 %v4746, %v4748
    %v4750 = vrot.slane %v4722, %v4749
    %v4751 = vcombine.low %v4729, %v4736
    %v4752 = vcombine.low %v4743, %v4750
    %v4754 = vunpack.c.l.s4 1966171168
    %v4755 = vunpack.c.0.s8 %v4754
    %v4756 = vlaneseq
    %v4757 = vshrl.u32 %v4756, 7
    %v4758 = vsub.s32 %v4755, %v4757
    %v4759 = vrot.slane %v4751, %v4758
    %v4761 = vunpack.c.l.s4 1966171168
    %v4762 = vunpack.c.0.s8 %v4761
    %v4763 = vlaneseq
    %v4764 = vshrl.u32 %v4763, 7
    %v4765 = vsub.s32 %v4762, %v4764
    %v4766 = vrot.slane %v4752, %v4765
    %v4767 = vcombine.low %v4759, %v4766
    %v4768 = vcombine.low %v2077, %v2081
    %v4769 = vcombine.low %v2085, %v2089
    %v4770 = vcombine.low %v2093, %v2097
    %v4771 = vcombine.low %v2101, %v2105
    %v4773 = vunpack.c.l.s4 1966171168
    %v4774 = vunpack.c.0.s8 %v4773
    %v4775 = vlaneseq
    %v4776 = vshrl.u32 %v4775, 7
    %v4777 = vsub.s32 %v4774, %v4776
    %v4778 = vrot.slane %v4768, %v4777
    %v4780 = vunpack.c.l.s4 1966171168
    %v4781 = vunpack.c.0.s8 %v4780
    %v4782 = vlaneseq
    %v4783 = vshrl.u32 %v4782, 7
    %v4784 = vsub.s32 %v4781, %v4783
    %v4785 = vrot.slane %v4769, %v4784
    %v4787 = vunpack.c.l.s4 1966171168
    %v4788 = vunpack.c.0.s8 %v4787
    %v4789 = vlaneseq
    %v4790 = vshrl.u32 %v4789, 7
    %v4791 = vsub.s32 %v4788, %v4790
    %v4792 = vrot.slane %v4770, %v4791
    %v4794 = vunpack.c.l.s4 1966171168
    %v4795 = vunpack.c.0.s8 %v4794
    %v4796 = vlaneseq
    %v4797 = vshrl.u32 %v4796, 7
    %v4798 = vsub.s32 %v4795, %v4797
    %v4799 = vrot.slane %v4771, %v4798
    %v4800 = vcombine.low %v4778, %v4785
    %v4801 = vcombine.low %v4792, %v4799
    %v4803 = vunpack.c.l.s4 1966171168
    %v4804 = vunpack.c.0.s8 %v4803
    %v4805 = vlaneseq
    %v4806 = vshrl.u32 %v4805, 7
    %v4807 = vsub.s32 %v4804, %v4806
    %v4808 = vrot.slane %v4800, %v4807
    %v4810 = vunpack.c.l.s4 1966171168
    %v4811 = vunpack.c.0.s8 %v4810
    %v4812 = vlaneseq
    %v4813 = vshrl.u32 %v4812, 7
    %v4814 = vsub.s32 %v4811, %v4813
    %v4815 = vrot.slane %v4801, %v4814
    %v4816 = vcombine.low %v4808, %v4815
    %v4817 = vcombine.low %v2109, %v2113
    %v4818 = vcombine.low %v2117, %v2121
    %v4819 = vcombine.low %v2125, %v2129
    %v4820 = vcombine.low %v2133, %v2137
    %v4822 = vunpack.c.l.s4 1966171168
    %v4823 = vunpack.c.0.s8 %v4822
    %v4824 = vlaneseq
    %v4825 = vshrl.u32 %v4824, 7
    %v4826 = vsub.s32 %v4823, %v4825
    %v4827 = vrot.slane %v4817, %v4826
    %v4829 = vunpack.c.l.s4 1966171168
    %v4830 = vunpack.c.0.s8 %v4829
    %v4831 = vlaneseq
    %v4832 = vshrl.u32 %v4831, 7
    %v4833 = vsub.s32 %v4830, %v4832
    %v4834 = vrot.slane %v4818, %v4833
    %v4836 = vunpack.c.l.s4 1966171168
    %v4837 = vunpack.c.0.s8 %v4836
    %v4838 = vlaneseq
    %v4839 = vshrl.u32 %v4838, 7
    %v4840 = vsub.s32 %v4837, %v4839
    %v4841 = vrot.slane %v4819, %v4840
    %v4843 = vunpack.c.l.s4 1966171168
    %v4844 = vunpack.c.0.s8 %v4843
    %v4845 = vlaneseq
    %v4846 = vshrl.u32 %v4845, 7
    %v4847 = vsub.s32 %v4844, %v4846
    %v4848 = vrot.slane %v4820, %v4847
    %v4849 = vcombine.low %v4827, %v4834
    %v4850 = vcombine.low %v4841, %v4848
    %v4852 = vunpack.c.l.s4 1966171168
    %v4853 = vunpack.c.0.s8 %v4852
    %v4854 = vlaneseq
    %v4855 = vshrl.u32 %v4854, 7
    %v4856 = vsub.s32 %v4853, %v4855
    %v4857 = vrot.slane %v4849, %v4856
    %v4859 = vunpack.c.l.s4 1966171168
    %v4860 = vunpack.c.0.s8 %v4859
    %v4861 = vlaneseq
    %v4862 = vshrl.u32 %v4861, 7
    %v4863 = vsub.s32 %v4860, %v4862
    %v4864 = vrot.slane %v4850, %v4863
    %v4865 = vcombine.low %v4857, %v4864
    %v4866 = vcombine.low %v2141, %v2145
    %v4867 = vcombine.low %v2149, %v2153
    %v4868 = vcombine.low %v2157, %v2161
    %v4869 = vcombine.low %v2165, %v2169
    %v4871 = vunpack.c.l.s4 1966171168
    %v4872 = vunpack.c.0.s8 %v4871
    %v4873 = vlaneseq
    %v4874 = vshrl.u32 %v4873, 7
    %v4875 = vsub.s32 %v4872, %v4874
    %v4876 = vrot.slane %v4866, %v4875
    %v4878 = vunpack.c.l.s4 1966171168
    %v4879 = vunpack.c.0.s8 %v4878
    %v4880 = vlaneseq
    %v4881 = vshrl.u32 %v4880, 7
    %v4882 = vsub.s32 %v4879, %v4881
    %v4883 = vrot.slane %v4867, %v4882
    %v4885 = vunpack.c.l.s4 1966171168
    %v4886 = vunpack.c.0.s8 %v4885
    %v4887 = vlaneseq
    %v4888 = vshrl.u32 %v4887, 7
    %v4889 = vsub.s32 %v4886, %v4888
    %v4890 = vrot.slane %v4868, %v4889
    %v4892 = vunpack.c.l.s4 1966171168
    %v4893 = vunpack.c.0.s8 %v4892
    %v4894 = vlaneseq
    %v4895 = vshrl.u32 %v4894, 7
    %v4896 = vsub.s32 %v4893, %v4895
    %v4897 = vrot.slane %v4869, %v4896
    %v4898 = vcombine.low %v4876, %v4883
    %v4899 = vcombine.low %v4890, %v4897
    %v4901 = vunpack.c.l.s4 1966171168
    %v4902 = vunpack.c.0.s8 %v4901
    %v4903 = vlaneseq
    %v4904 = vshrl.u32 %v4903, 7
    %v4905 = vsub.s32 %v4902, %v4904
    %v4906 = vrot.slane %v4898, %v4905
    %v4908 = vunpack.c.l.s4 1966171168
    %v4909 = vunpack.c.0.s8 %v4908
    %v4910 = vlaneseq
    %v4911 = vshrl.u32 %v4910, 7
    %v4912 = vsub.s32 %v4909, %v4911
    %v4913 = vrot.slane %v4899, %v4912
    %v4914 = vcombine.low %v4906, %v4913
    %v4915 = vcombine.low %v2173, %v2177
    %v4916 = vcombine.low %v2181, %v2185
    %v4917 = vcombine.low %v2189, %v2193
    %v4918 = vcombine.low %v2197, %v2201
    %v4920 = vunpack.c.l.s4 1966171168
    %v4921 = vunpack.c.0.s8 %v4920
    %v4922 = vlaneseq
    %v4923 = vshrl.u32 %v4922, 7
    %v4924 = vsub.s32 %v4921, %v4923
    %v4925 = vrot.slane %v4915, %v4924
    %v4927 = vunpack.c.l.s4 1966171168
    %v4928 = vunpack.c.0.s8 %v4927
    %v4929 = vlaneseq
    %v4930 = vshrl.u32 %v4929, 7
    %v4931 = vsub.s32 %v4928, %v4930
    %v4932 = vrot.slane %v4916, %v4931
    %v4934 = vunpack.c.l.s4 1966171168
    %v4935 = vunpack.c.0.s8 %v4934
    %v4936 = vlaneseq
    %v4937 = vshrl.u32 %v4936, 7
    %v4938 = vsub.s32 %v4935, %v4937
    %v4939 = vrot.slane %v4917, %v4938
    %v4941 = vunpack.c.l.s4 1966171168
    %v4942 = vunpack.c.0.s8 %v4941
    %v4943 = vlaneseq
    %v4944 = vshrl.u32 %v4943, 7
    %v4945 = vsub.s32 %v4942, %v4944
    %v4946 = vrot.slane %v4918, %v4945
    %v4947 = vcombine.low %v4925, %v4932
    %v4948 = vcombine.low %v4939, %v4946
    %v4950 = vunpack.c.l.s4 1966171168
    %v4951 = vunpack.c.0.s8 %v4950
    %v4952 = vlaneseq
    %v4953 = vshrl.u32 %v4952, 7
    %v4954 = vsub.s32 %v4951, %v4953
    %v4955 = vrot.slane %v4947, %v4954
    %v4957 = vunpack.c.l.s4 1966171168
    %v4958 = vunpack.c.0.s8 %v4957
    %v4959 = vlaneseq
    %v4960 = vshrl.u32 %v4959, 7
    %v4961 = vsub.s32 %v4958, %v4960
    %v4962 = vrot.slane %v4948, %v4961
    %v4963 = vcombine.low %v4955, %v4962
    %v4964 = vcombine.low %v2205, %v2209
    %v4965 = vcombine.low %v2213, %v2217
    %v4966 = vcombine.low %v2221, %v2225
    %v4967 = vcombine.low %v2229, %v2233
    %v4969 = vunpack.c.l.s4 1966171168
    %v4970 = vunpack.c.0.s8 %v4969
    %v4971 = vlaneseq
    %v4972 = vshrl.u32 %v4971, 7
    %v4973 = vsub.s32 %v4970, %v4972
    %v4974 = vrot.slane %v4964, %v4973
    %v4976 = vunpack.c.l.s4 1966171168
    %v4977 = vunpack.c.0.s8 %v4976
    %v4978 = vlaneseq
    %v4979 = vshrl.u32 %v4978, 7
    %v4980 = vsub.s32 %v4977, %v4979
    %v4981 = vrot.slane %v4965, %v4980
    %v4983 = vunpack.c.l.s4 1966171168
    %v4984 = vunpack.c.0.s8 %v4983
    %v4985 = vlaneseq
    %v4986 = vshrl.u32 %v4985, 7
    %v4987 = vsub.s32 %v4984, %v4986
    %v4988 = vrot.slane %v4966, %v4987
    %v4990 = vunpack.c.l.s4 1966171168
    %v4991 = vunpack.c.0.s8 %v4990
    %v4992 = vlaneseq
    %v4993 = vshrl.u32 %v4992, 7
    %v4994 = vsub.s32 %v4991, %v4993
    %v4995 = vrot.slane %v4967, %v4994
    %v4996 = vcombine.low %v4974, %v4981
    %v4997 = vcombine.low %v4988, %v4995
    %v4999 = vunpack.c.l.s4 1966171168
    %v5000 = vunpack.c.0.s8 %v4999
    %v5001 = vlaneseq
    %v5002 = vshrl.u32 %v5001, 7
    %v5003 = vsub.s32 %v5000, %v5002
    %v5004 = vrot.slane %v4996, %v5003
    %v5006 = vunpack.c.l.s4 1966171168
    %v5007 = vunpack.c.0.s8 %v5006
    %v5008 = vlaneseq
    %v5009 = vshrl.u32 %v5008, 7
    %v5010 = vsub.s32 %v5007, %v5009
    %v5011 = vrot.slane %v4997, %v5010
    %v5012 = vcombine.low %v5004, %v5011
    %v5013 = vcombine.low %v2237, %v2241
    %v5014 = vcombine.low %v2245, %v2249
    %v5015 = vcombine.low %v2253, %v2257
    %v5016 = vcombine.low %v2261, %v2265
    %v5018 = vunpack.c.l.s4 1966171168
    %v5019 = vunpack.c.0.s8 %v5018
    %v5020 = vlaneseq
    %v5021 = vshrl.u32 %v5020, 7
    %v5022 = vsub.s32 %v5019, %v5021
    %v5023 = vrot.slane %v5013, %v5022
    %v5025 = vunpack.c.l.s4 1966171168
    %v5026 = vunpack.c.0.s8 %v5025
    %v5027 = vlaneseq
    %v5028 = vshrl.u32 %v5027, 7
    %v5029 = vsub.s32 %v5026, %v5028
    %v5030 = vrot.slane %v5014, %v5029
    %v5032 = vunpack.c.l.s4 1966171168
    %v5033 = vunpack.c.0.s8 %v5032
    %v5034 = vlaneseq
    %v5035 = vshrl.u32 %v5034, 7
    %v5036 = vsub.s32 %v5033, %v5035
    %v5037 = vrot.slane %v5015, %v5036
    %v5039 = vunpack.c.l.s4 1966171168
    %v5040 = vunpack.c.0.s8 %v5039
    %v5041 = vlaneseq
    %v5042 = vshrl.u32 %v5041, 7
    %v5043 = vsub.s32 %v5040, %v5042
    %v5044 = vrot.slane %v5016, %v5043
    %v5045 = vcombine.low %v5023, %v5030
    %v5046 = vcombine.low %v5037, %v5044
    %v5048 = vunpack.c.l.s4 1966171168
    %v5049 = vunpack.c.0.s8 %v5048
    %v5050 = vlaneseq
    %v5051 = vshrl.u32 %v5050, 7
    %v5052 = vsub.s32 %v5049, %v5051
    %v5053 = vrot.slane %v5045, %v5052
    %v5055 = vunpack.c.l.s4 1966171168
    %v5056 = vunpack.c.0.s8 %v5055
    %v5057 = vlaneseq
    %v5058 = vshrl.u32 %v5057, 7
    %v5059 = vsub.s32 %v5056, %v5058
    %v5060 = vrot.slane %v5046, %v5059
    %v5061 = vcombine.low %v5053, %v5060
    %v5062 = vcombine.low %v2269, %v2273
    %v5063 = vcombine.low %v2277, %v2281
    %v5064 = vcombine.low %v2285, %v2289
    %v5065 = vcombine.low %v2293, %v2297
    %v5067 = vunpack.c.l.s4 1966171168
    %v5068 = vunpack.c.0.s8 %v5067
    %v5069 = vlaneseq
    %v5070 = vshrl.u32 %v5069, 7
    %v5071 = vsub.s32 %v5068, %v5070
    %v5072 = vrot.slane %v5062, %v5071
    %v5074 = vunpack.c.l.s4 1966171168
    %v5075 = vunpack.c.0.s8 %v5074
    %v5076 = vlaneseq
    %v5077 = vshrl.u32 %v5076, 7
    %v5078 = vsub.s32 %v5075, %v5077
    %v5079 = vrot.slane %v5063, %v5078
    %v5081 = vunpack.c.l.s4 1966171168
    %v5082 = vunpack.c.0.s8 %v5081
    %v5083 = vlaneseq
    %v5084 = vshrl.u32 %v5083, 7
    %v5085 = vsub.s32 %v5082, %v5084
    %v5086 = vrot.slane %v5064, %v5085
    %v5088 = vunpack.c.l.s4 1966171168
    %v5089 = vunpack.c.0.s8 %v5088
    %v5090 = vlaneseq
    %v5091 = vshrl.u32 %v5090, 7
    %v5092 = vsub.s32 %v5089, %v5091
    %v5093 = vrot.slane %v5065, %v5092
    %v5094 = vcombine.low %v5072, %v5079
    %v5095 = vcombine.low %v5086, %v5093
    %v5097 = vunpack.c.l.s4 1966171168
    %v5098 = vunpack.c.0.s8 %v5097
    %v5099 = vlaneseq
    %v5100 = vshrl.u32 %v5099, 7
    %v5101 = vsub.s32 %v5098, %v5100
    %v5102 = vrot.slane %v5094, %v5101
    %v5104 = vunpack.c.l.s4 1966171168
    %v5105 = vunpack.c.0.s8 %v5104
    %v5106 = vlaneseq
    %v5107 = vshrl.u32 %v5106, 7
    %v5108 = vsub.s32 %v5105, %v5107
    %v5109 = vrot.slane %v5095, %v5108
    %v5110 = vcombine.low %v5102, %v5109
    %v5111 = vcombine.low %v2301, %v2305
    %v5112 = vcombine.low %v2309, %v2313
    %v5113 = vcombine.low %v2317, %v2321
    %v5114 = vcombine.low %v2325, %v2329
    %v5116 = vunpack.c.l.s4 1966171168
    %v5117 = vunpack.c.0.s8 %v5116
    %v5118 = vlaneseq
    %v5119 = vshrl.u32 %v5118, 7
    %v5120 = vsub.s32 %v5117, %v5119
    %v5121 = vrot.slane %v5111, %v5120
    %v5123 = vunpack.c.l.s4 1966171168
    %v5124 = vunpack.c.0.s8 %v5123
    %v5125 = vlaneseq
    %v5126 = vshrl.u32 %v5125, 7
    %v5127 = vsub.s32 %v5124, %v5126
    %v5128 = vrot.slane %v5112, %v5127
    %v5130 = vunpack.c.l.s4 1966171168
    %v5131 = vunpack.c.0.s8 %v5130
    %v5132 = vlaneseq
    %v5133 = vshrl.u32 %v5132, 7
    %v5134 = vsub.s32 %v5131, %v5133
    %v5135 = vrot.slane %v5113, %v5134
    %v5137 = vunpack.c.l.s4 1966171168
    %v5138 = vunpack.c.0.s8 %v5137
    %v5139 = vlaneseq
    %v5140 = vshrl.u32 %v5139, 7
    %v5141 = vsub.s32 %v5138, %v5140
    %v5142 = vrot.slane %v5114, %v5141
    %v5143 = vcombine.low %v5121, %v5128
    %v5144 = vcombine.low %v5135, %v5142
    %v5146 = vunpack.c.l.s4 1966171168
    %v5147 = vunpack.c.0.s8 %v5146
    %v5148 = vlaneseq
    %v5149 = vshrl.u32 %v5148, 7
    %v5150 = vsub.s32 %v5147, %v5149
    %v5151 = vrot.slane %v5143, %v5150
    %v5153 = vunpack.c.l.s4 1966171168
    %v5154 = vunpack.c.0.s8 %v5153
    %v5155 = vlaneseq
    %v5156 = vshrl.u32 %v5155, 7
    %v5157 = vsub.s32 %v5154, %v5156
    %v5158 = vrot.slane %v5144, %v5157
    %v5159 = vcombine.low %v5151, %v5158
    %v5160 = vcombine.low %v2333, %v2337
    %v5161 = vcombine.low %v2341, %v2345
    %v5162 = vcombine.low %v2349, %v2353
    %v5163 = vcombine.low %v2357, %v2361
    %v5165 = vunpack.c.l.s4 1966171168
    %v5166 = vunpack.c.0.s8 %v5165
    %v5167 = vlaneseq
    %v5168 = vshrl.u32 %v5167, 7
    %v5169 = vsub.s32 %v5166, %v5168
    %v5170 = vrot.slane %v5160, %v5169
    %v5172 = vunpack.c.l.s4 1966171168
    %v5173 = vunpack.c.0.s8 %v5172
    %v5174 = vlaneseq
    %v5175 = vshrl.u32 %v5174, 7
    %v5176 = vsub.s32 %v5173, %v5175
    %v5177 = vrot.slane %v5161, %v5176
    %v5179 = vunpack.c.l.s4 1966171168
    %v5180 = vunpack.c.0.s8 %v5179
    %v5181 = vlaneseq
    %v5182 = vshrl.u32 %v5181, 7
    %v5183 = vsub.s32 %v5180, %v5182
    %v5184 = vrot.slane %v5162, %v5183
    %v5186 = vunpack.c.l.s4 1966171168
    %v5187 = vunpack.c.0.s8 %v5186
    %v5188 = vlaneseq
    %v5189 = vshrl.u32 %v5188, 7
    %v5190 = vsub.s32 %v5187, %v5189
    %v5191 = vrot.slane %v5163, %v5190
    %v5192 = vcombine.low %v5170, %v5177
    %v5193 = vcombine.low %v5184, %v5191
    %v5195 = vunpack.c.l.s4 1966171168
    %v5196 = vunpack.c.0.s8 %v5195
    %v5197 = vlaneseq
    %v5198 = vshrl.u32 %v5197, 7
    %v5199 = vsub.s32 %v5196, %v5198
    %v5200 = vrot.slane %v5192, %v5199
    %v5202 = vunpack.c.l.s4 1966171168
    %v5203 = vunpack.c.0.s8 %v5202
    %v5204 = vlaneseq
    %v5205 = vshrl.u32 %v5204, 7
    %v5206 = vsub.s32 %v5203, %v5205
    %v5207 = vrot.slane %v5193, %v5206
    %v5208 = vcombine.low %v5200, %v5207
    %v5209 = vcombine.low %v2365, %v2369
    %v5210 = vcombine.low %v2373, %v2377
    %v5211 = vcombine.low %v2381, %v2385
    %v5212 = vcombine.low %v2389, %v2393
    %v5214 = vunpack.c.l.s4 1966171168
    %v5215 = vunpack.c.0.s8 %v5214
    %v5216 = vlaneseq
    %v5217 = vshrl.u32 %v5216, 7
    %v5218 = vsub.s32 %v5215, %v5217
    %v5219 = vrot.slane %v5209, %v5218
    %v5221 = vunpack.c.l.s4 1966171168
    %v5222 = vunpack.c.0.s8 %v5221
    %v5223 = vlaneseq
    %v5224 = vshrl.u32 %v5223, 7
    %v5225 = vsub.s32 %v5222, %v5224
    %v5226 = vrot.slane %v5210, %v5225
    %v5228 = vunpack.c.l.s4 1966171168
    %v5229 = vunpack.c.0.s8 %v5228
    %v5230 = vlaneseq
    %v5231 = vshrl.u32 %v5230, 7
    %v5232 = vsub.s32 %v5229, %v5231
    %v5233 = vrot.slane %v5211, %v5232
    %v5235 = vunpack.c.l.s4 1966171168
    %v5236 = vunpack.c.0.s8 %v5235
    %v5237 = vlaneseq
    %v5238 = vshrl.u32 %v5237, 7
    %v5239 = vsub.s32 %v5236, %v5238
    %v5240 = vrot.slane %v5212, %v5239
    %v5241 = vcombine.low %v5219, %v5226
    %v5242 = vcombine.low %v5233, %v5240
    %v5244 = vunpack.c.l.s4 1966171168
    %v5245 = vunpack.c.0.s8 %v5244
    %v5246 = vlaneseq
    %v5247 = vshrl.u32 %v5246, 7
    %v5248 = vsub.s32 %v5245, %v5247
    %v5249 = vrot.slane %v5241, %v5248
    %v5251 = vunpack.c.l.s4 1966171168
    %v5252 = vunpack.c.0.s8 %v5251
    %v5253 = vlaneseq
    %v5254 = vshrl.u32 %v5253, 7
    %v5255 = vsub.s32 %v5252, %v5254
    %v5256 = vrot.slane %v5242, %v5255
    %v5257 = vcombine.low %v5249, %v5256
    %v5258 = vcombine.low %v2397, %v2401
    %v5259 = vcombine.low %v2405, %v2409
    %v5260 = vcombine.low %v2413, %v2417
    %v5261 = vcombine.low %v2421, %v2425
    %v5263 = vunpack.c.l.s4 1966171168
    %v5264 = vunpack.c.0.s8 %v5263
    %v5265 = vlaneseq
    %v5266 = vshrl.u32 %v5265, 7
    %v5267 = vsub.s32 %v5264, %v5266
    %v5268 = vrot.slane %v5258, %v5267
    %v5270 = vunpack.c.l.s4 1966171168
    %v5271 = vunpack.c.0.s8 %v5270
    %v5272 = vlaneseq
    %v5273 = vshrl.u32 %v5272, 7
    %v5274 = vsub.s32 %v5271, %v5273
    %v5275 = vrot.slane %v5259, %v5274
    %v5277 = vunpack.c.l.s4 1966171168
    %v5278 = vunpack.c.0.s8 %v5277
    %v5279 = vlaneseq
    %v5280 = vshrl.u32 %v5279, 7
    %v5281 = vsub.s32 %v5278, %v5280
    %v5282 = vrot.slane %v5260, %v5281
    %v5284 = vunpack.c.l.s4 1966171168
    %v5285 = vunpack.c.0.s8 %v5284
    %v5286 = vlaneseq
    %v5287 = vshrl.u32 %v5286, 7
    %v5288 = vsub.s32 %v5285, %v5287
    %v5289 = vrot.slane %v5261, %v5288
    %v5290 = vcombine.low %v5268, %v5275
    %v5291 = vcombine.low %v5282, %v5289
    %v5293 = vunpack.c.l.s4 1966171168
    %v5294 = vunpack.c.0.s8 %v5293
    %v5295 = vlaneseq
    %v5296 = vshrl.u32 %v5295, 7
    %v5297 = vsub.s32 %v5294, %v5296
    %v5298 = vrot.slane %v5290, %v5297
    %v5300 = vunpack.c.l.s4 1966171168
    %v5301 = vunpack.c.0.s8 %v5300
    %v5302 = vlaneseq
    %v5303 = vshrl.u32 %v5302, 7
    %v5304 = vsub.s32 %v5301, %v5303
    %v5305 = vrot.slane %v5291, %v5304
    %v5306 = vcombine.low %v5298, %v5305
    %v5307 = vcombine.low %v2429, %v2433
    %v5308 = vcombine.low %v2437, %v2441
    %v5309 = vcombine.low %v2445, %v2449
    %v5310 = vcombine.low %v2453, %v2457
    %v5312 = vunpack.c.l.s4 1966171168
    %v5313 = vunpack.c.0.s8 %v5312
    %v5314 = vlaneseq
    %v5315 = vshrl.u32 %v5314, 7
    %v5316 = vsub.s32 %v5313, %v5315
    %v5317 = vrot.slane %v5307, %v5316
    %v5319 = vunpack.c.l.s4 1966171168
    %v5320 = vunpack.c.0.s8 %v5319
    %v5321 = vlaneseq
    %v5322 = vshrl.u32 %v5321, 7
    %v5323 = vsub.s32 %v5320, %v5322
    %v5324 = vrot.slane %v5308, %v5323
    %v5326 = vunpack.c.l.s4 1966171168
    %v5327 = vunpack.c.0.s8 %v5326
    %v5328 = vlaneseq
    %v5329 = vshrl.u32 %v5328, 7
    %v5330 = vsub.s32 %v5327, %v5329
    %v5331 = vrot.slane %v5309, %v5330
    %v5333 = vunpack.c.l.s4 1966171168
    %v5334 = vunpack.c.0.s8 %v5333
    %v5335 = vlaneseq
    %v5336 = vshrl.u32 %v5335, 7
    %v5337 = vsub.s32 %v5334, %v5336
    %v5338 = vrot.slane %v5310, %v5337
    %v5339 = vcombine.low %v5317, %v5324
    %v5340 = vcombine.low %v5331, %v5338
    %v5342 = vunpack.c.l.s4 1966171168
    %v5343 = vunpack.c.0.s8 %v5342
    %v5344 = vlaneseq
    %v5345 = vshrl.u32 %v5344, 7
    %v5346 = vsub.s32 %v5343, %v5345
    %v5347 = vrot.slane %v5339, %v5346
    %v5349 = vunpack.c.l.s4 1966171168
    %v5350 = vunpack.c.0.s8 %v5349
    %v5351 = vlaneseq
    %v5352 = vshrl.u32 %v5351, 7
    %v5353 = vsub.s32 %v5350, %v5352
    %v5354 = vrot.slane %v5340, %v5353
    %v5355 = vcombine.low %v5347, %v5354
    %v5356 = vcombine.low %v2461, %v2465
    %v5357 = vcombine.low %v2469, %v2473
    %v5358 = vcombine.low %v2477, %v2481
    %v5359 = vcombine.low %v2485, %v2489
    %v5361 = vunpack.c.l.s4 1966171168
    %v5362 = vunpack.c.0.s8 %v5361
    %v5363 = vlaneseq
    %v5364 = vshrl.u32 %v5363, 7
    %v5365 = vsub.s32 %v5362, %v5364
    %v5366 = vrot.slane %v5356, %v5365
    %v5368 = vunpack.c.l.s4 1966171168
    %v5369 = vunpack.c.0.s8 %v5368
    %v5370 = vlaneseq
    %v5371 = vshrl.u32 %v5370, 7
    %v5372 = vsub.s32 %v5369, %v5371
    %v5373 = vrot.slane %v5357, %v5372
    %v5375 = vunpack.c.l.s4 1966171168
    %v5376 = vunpack.c.0.s8 %v5375
    %v5377 = vlaneseq
    %v5378 = vshrl.u32 %v5377, 7
    %v5379 = vsub.s32 %v5376, %v5378
    %v5380 = vrot.slane %v5358, %v5379
    %v5382 = vunpack.c.l.s4 1966171168
    %v5383 = vunpack.c.0.s8 %v5382
    %v5384 = vlaneseq
    %v5385 = vshrl.u32 %v5384, 7
    %v5386 = vsub.s32 %v5383, %v5385
    %v5387 = vrot.slane %v5359, %v5386
    %v5388 = vcombine.low %v5366, %v5373
    %v5389 = vcombine.low %v5380, %v5387
    %v5391 = vunpack.c.l.s4 1966171168
    %v5392 = vunpack.c.0.s8 %v5391
    %v5393 = vlaneseq
    %v5394 = vshrl.u32 %v5393, 7
    %v5395 = vsub.s32 %v5392, %v5394
    %v5396 = vrot.slane %v5388, %v5395
    %v5398 = vunpack.c.l.s4 1966171168
    %v5399 = vunpack.c.0.s8 %v5398
    %v5400 = vlaneseq
    %v5401 = vshrl.u32 %v5400, 7
    %v5402 = vsub.s32 %v5399, %v5401
    %v5403 = vrot.slane %v5389, %v5402
    %v5404 = vcombine.low %v5396, %v5403
    %v5405 = vcombine.low %v2493, %v2497
    %v5406 = vcombine.low %v2501, %v2505
    %v5407 = vcombine.low %v2509, %v2513
    %v5408 = vcombine.low %v2517, %v2521
    %v5410 = vunpack.c.l.s4 1966171168
    %v5411 = vunpack.c.0.s8 %v5410
    %v5412 = vlaneseq
    %v5413 = vshrl.u32 %v5412, 7
    %v5414 = vsub.s32 %v5411, %v5413
    %v5415 = vrot.slane %v5405, %v5414
    %v5417 = vunpack.c.l.s4 1966171168
    %v5418 = vunpack.c.0.s8 %v5417
    %v5419 = vlaneseq
    %v5420 = vshrl.u32 %v5419, 7
    %v5421 = vsub.s32 %v5418, %v5420
    %v5422 = vrot.slane %v5406, %v5421
    %v5424 = vunpack.c.l.s4 1966171168
    %v5425 = vunpack.c.0.s8 %v5424
    %v5426 = vlaneseq
    %v5427 = vshrl.u32 %v5426, 7
    %v5428 = vsub.s32 %v5425, %v5427
    %v5429 = vrot.slane %v5407, %v5428
    %v5431 = vunpack.c.l.s4 1966171168
    %v5432 = vunpack.c.0.s8 %v5431
    %v5433 = vlaneseq
    %v5434 = vshrl.u32 %v5433, 7
    %v5435 = vsub.s32 %v5432, %v5434
    %v5436 = vrot.slane %v5408, %v5435
    %v5437 = vcombine.low %v5415, %v5422
    %v5438 = vcombine.low %v5429, %v5436
    %v5440 = vunpack.c.l.s4 1966171168
    %v5441 = vunpack.c.0.s8 %v5440
    %v5442 = vlaneseq
    %v5443 = vshrl.u32 %v5442, 7
    %v5444 = vsub.s32 %v5441, %v5443
    %v5445 = vrot.slane %v5437, %v5444
    %v5447 = vunpack.c.l.s4 1966171168
    %v5448 = vunpack.c.0.s8 %v5447
    %v5449 = vlaneseq
    %v5450 = vshrl.u32 %v5449, 7
    %v5451 = vsub.s32 %v5448, %v5450
    %v5452 = vrot.slane %v5438, %v5451
    %v5453 = vcombine.low %v5445, %v5452
    %v5454 = vcombine.low %v2525, %v2529
    %v5455 = vcombine.low %v2533, %v2537
    %v5456 = vcombine.low %v2541, %v2545
    %v5457 = vcombine.low %v2549, %v2553
    %v5459 = vunpack.c.l.s4 1966171168
    %v5460 = vunpack.c.0.s8 %v5459
    %v5461 = vlaneseq
    %v5462 = vshrl.u32 %v5461, 7
    %v5463 = vsub.s32 %v5460, %v5462
    %v5464 = vrot.slane %v5454, %v5463
    %v5466 = vunpack.c.l.s4 1966171168
    %v5467 = vunpack.c.0.s8 %v5466
    %v5468 = vlaneseq
    %v5469 = vshrl.u32 %v5468, 7
    %v5470 = vsub.s32 %v5467, %v5469
    %v5471 = vrot.slane %v5455, %v5470
    %v5473 = vunpack.c.l.s4 1966171168
    %v5474 = vunpack.c.0.s8 %v5473
    %v5475 = vlaneseq
    %v5476 = vshrl.u32 %v5475, 7
    %v5477 = vsub.s32 %v5474, %v5476
    %v5478 = vrot.slane %v5456, %v5477
    %v5480 = vunpack.c.l.s4 1966171168
    %v5481 = vunpack.c.0.s8 %v5480
    %v5482 = vlaneseq
    %v5483 = vshrl.u32 %v5482, 7
    %v5484 = vsub.s32 %v5481, %v5483
    %v5485 = vrot.slane %v5457, %v5484
    %v5486 = vcombine.low %v5464, %v5471
    %v5487 = vcombine.low %v5478, %v5485
    %v5489 = vunpack.c.l.s4 1966171168
    %v5490 = vunpack.c.0.s8 %v5489
    %v5491 = vlaneseq
    %v5492 = vshrl.u32 %v5491, 7
    %v5493 = vsub.s32 %v5490, %v5492
    %v5494 = vrot.slane %v5486, %v5493
    %v5496 = vunpack.c.l.s4 1966171168
    %v5497 = vunpack.c.0.s8 %v5496
    %v5498 = vlaneseq
    %v5499 = vshrl.u32 %v5498, 7
    %v5500 = vsub.s32 %v5497, %v5499
    %v5501 = vrot.slane %v5487, %v5500
    %v5502 = vcombine.low %v5494, %v5501
    %v5503 = vcombine.low %v2557, %v2561
    %v5504 = vcombine.low %v2565, %v2569
    %v5505 = vcombine.low %v2573, %v2577
    %v5506 = vcombine.low %v2581, %v2585
    %v5508 = vunpack.c.l.s4 1966171168
    %v5509 = vunpack.c.0.s8 %v5508
    %v5510 = vlaneseq
    %v5511 = vshrl.u32 %v5510, 7
    %v5512 = vsub.s32 %v5509, %v5511
    %v5513 = vrot.slane %v5503, %v5512
    %v5515 = vunpack.c.l.s4 1966171168
    %v5516 = vunpack.c.0.s8 %v5515
    %v5517 = vlaneseq
    %v5518 = vshrl.u32 %v5517, 7
    %v5519 = vsub.s32 %v5516, %v5518
    %v5520 = vrot.slane %v5504, %v5519
    %v5522 = vunpack.c.l.s4 1966171168
    %v5523 = vunpack.c.0.s8 %v5522
    %v5524 = vlaneseq
    %v5525 = vshrl.u32 %v5524, 7
    %v5526 = vsub.s32 %v5523, %v5525
    %v5527 = vrot.slane %v5505, %v5526
    %v5529 = vunpack.c.l.s4 1966171168
    %v5530 = vunpack.c.0.s8 %v5529
    %v5531 = vlaneseq
    %v5532 = vshrl.u32 %v5531, 7
    %v5533 = vsub.s32 %v5530, %v5532
    %v5534 = vrot.slane %v5506, %v5533
    %v5535 = vcombine.low %v5513, %v5520
    %v5536 = vcombine.low %v5527, %v5534
    %v5538 = vunpack.c.l.s4 1966171168
    %v5539 = vunpack.c.0.s8 %v5538
    %v5540 = vlaneseq
    %v5541 = vshrl.u32 %v5540, 7
    %v5542 = vsub.s32 %v5539, %v5541
    %v5543 = vrot.slane %v5535, %v5542
    %v5545 = vunpack.c.l.s4 1966171168
    %v5546 = vunpack.c.0.s8 %v5545
    %v5547 = vlaneseq
    %v5548 = vshrl.u32 %v5547, 7
    %v5549 = vsub.s32 %v5546, %v5548
    %v5550 = vrot.slane %v5536, %v5549
    %v5551 = vcombine.low %v5543, %v5550
    %v5552 = vcombine.low %v2589, %v2593
    %v5553 = vcombine.low %v2597, %v2601
    %v5554 = vcombine.low %v2605, %v2609
    %v5555 = vcombine.low %v2613, %v2617
    %v5557 = vunpack.c.l.s4 1966171168
    %v5558 = vunpack.c.0.s8 %v5557
    %v5559 = vlaneseq
    %v5560 = vshrl.u32 %v5559, 7
    %v5561 = vsub.s32 %v5558, %v5560
    %v5562 = vrot.slane %v5552, %v5561
    %v5564 = vunpack.c.l.s4 1966171168
    %v5565 = vunpack.c.0.s8 %v5564
    %v5566 = vlaneseq
    %v5567 = vshrl.u32 %v5566, 7
    %v5568 = vsub.s32 %v5565, %v5567
    %v5569 = vrot.slane %v5553, %v5568
    %v5571 = vunpack.c.l.s4 1966171168
    %v5572 = vunpack.c.0.s8 %v5571
    %v5573 = vlaneseq
    %v5574 = vshrl.u32 %v5573, 7
    %v5575 = vsub.s32 %v5572, %v5574
    %v5576 = vrot.slane %v5554, %v5575
    %v5578 = vunpack.c.l.s4 1966171168
    %v5579 = vunpack.c.0.s8 %v5578
    %v5580 = vlaneseq
    %v5581 = vshrl.u32 %v5580, 7
    %v5582 = vsub.s32 %v5579, %v5581
    %v5583 = vrot.slane %v5555, %v5582
    %v5584 = vcombine.low %v5562, %v5569
    %v5585 = vcombine.low %v5576, %v5583
    %v5587 = vunpack.c.l.s4 1966171168
    %v5588 = vunpack.c.0.s8 %v5587
    %v5589 = vlaneseq
    %v5590 = vshrl.u32 %v5589, 7
    %v5591 = vsub.s32 %v5588, %v5590
    %v5592 = vrot.slane %v5584, %v5591
    %v5594 = vunpack.c.l.s4 1966171168
    %v5595 = vunpack.c.0.s8 %v5594
    %v5596 = vlaneseq
    %v5597 = vshrl.u32 %v5596, 7
    %v5598 = vsub.s32 %v5595, %v5597
    %v5599 = vrot.slane %v5585, %v5598
    %v5600 = vcombine.low %v5592, %v5599
    %v5601 = vcombine.low %v2621, %v2625
    %v5602 = vcombine.low %v2629, %v2633
    %v5603 = vcombine.low %v2637, %v2641
    %v5604 = vcombine.low %v2645, %v2649
    %v5606 = vunpack.c.l.s4 1966171168
    %v5607 = vunpack.c.0.s8 %v5606
    %v5608 = vlaneseq
    %v5609 = vshrl.u32 %v5608, 7
    %v5610 = vsub.s32 %v5607, %v5609
    %v5611 = vrot.slane %v5601, %v5610
    %v5613 = vunpack.c.l.s4 1966171168
    %v5614 = vunpack.c.0.s8 %v5613
    %v5615 = vlaneseq
    %v5616 = vshrl.u32 %v5615, 7
    %v5617 = vsub.s32 %v5614, %v5616
    %v5618 = vrot.slane %v5602, %v5617
    %v5620 = vunpack.c.l.s4 1966171168
    %v5621 = vunpack.c.0.s8 %v5620
    %v5622 = vlaneseq
    %v5623 = vshrl.u32 %v5622, 7
    %v5624 = vsub.s32 %v5621, %v5623
    %v5625 = vrot.slane %v5603, %v5624
    %v5627 = vunpack.c.l.s4 1966171168
    %v5628 = vunpack.c.0.s8 %v5627
    %v5629 = vlaneseq
    %v5630 = vshrl.u32 %v5629, 7
    %v5631 = vsub.s32 %v5628, %v5630
    %v5632 = vrot.slane %v5604, %v5631
    %v5633 = vcombine.low %v5611, %v5618
    %v5634 = vcombine.low %v5625, %v5632
    %v5636 = vunpack.c.l.s4 1966171168
    %v5637 = vunpack.c.0.s8 %v5636
    %v5638 = vlaneseq
    %v5639 = vshrl.u32 %v5638, 7
    %v5640 = vsub.s32 %v5637, %v5639
    %v5641 = vrot.slane %v5633, %v5640
    %v5643 = vunpack.c.l.s4 1966171168
    %v5644 = vunpack.c.0.s8 %v5643
    %v5645 = vlaneseq
    %v5646 = vshrl.u32 %v5645, 7
    %v5647 = vsub.s32 %v5644, %v5646
    %v5648 = vrot.slane %v5634, %v5647
    %v5649 = vcombine.low %v5641, %v5648
    %v5650 = vcombine.low %v2653, %v2657
    %v5651 = vcombine.low %v2661, %v2665
    %v5652 = vcombine.low %v2669, %v2673
    %v5653 = vcombine.low %v2677, %v2681
    %v5655 = vunpack.c.l.s4 1966171168
    %v5656 = vunpack.c.0.s8 %v5655
    %v5657 = vlaneseq
    %v5658 = vshrl.u32 %v5657, 7
    %v5659 = vsub.s32 %v5656, %v5658
    %v5660 = vrot.slane %v5650, %v5659
    %v5662 = vunpack.c.l.s4 1966171168
    %v5663 = vunpack.c.0.s8 %v5662
    %v5664 = vlaneseq
    %v5665 = vshrl.u32 %v5664, 7
    %v5666 = vsub.s32 %v5663, %v5665
    %v5667 = vrot.slane %v5651, %v5666
    %v5669 = vunpack.c.l.s4 1966171168
    %v5670 = vunpack.c.0.s8 %v5669
    %v5671 = vlaneseq
    %v5672 = vshrl.u32 %v5671, 7
    %v5673 = vsub.s32 %v5670, %v5672
    %v5674 = vrot.slane %v5652, %v5673
    %v5676 = vunpack.c.l.s4 1966171168
    %v5677 = vunpack.c.0.s8 %v5676
    %v5678 = vlaneseq
    %v5679 = vshrl.u32 %v5678, 7
    %v5680 = vsub.s32 %v5677, %v5679
    %v5681 = vrot.slane %v5653, %v5680
    %v5682 = vcombine.low %v5660, %v5667
    %v5683 = vcombine.low %v5674, %v5681
    %v5685 = vunpack.c.l.s4 1966171168
    %v5686 = vunpack.c.0.s8 %v5685
    %v5687 = vlaneseq
    %v5688 = vshrl.u32 %v5687, 7
    %v5689 = vsub.s32 %v5686, %v5688
    %v5690 = vrot.slane %v5682, %v5689
    %v5692 = vunpack.c.l.s4 1966171168
    %v5693 = vunpack.c.0.s8 %v5692
    %v5694 = vlaneseq
    %v5695 = vshrl.u32 %v5694, 7
    %v5696 = vsub.s32 %v5693, %v5695
    %v5697 = vrot.slane %v5683, %v5696
    %v5698 = vcombine.low %v5690, %v5697
    %v5699 = vcombine.low %v2685, %v2689
    %v5700 = vcombine.low %v2693, %v2697
    %v5701 = vcombine.low %v2701, %v2705
    %v5702 = vcombine.low %v2709, %v2713
    %v5704 = vunpack.c.l.s4 1966171168
    %v5705 = vunpack.c.0.s8 %v5704
    %v5706 = vlaneseq
    %v5707 = vshrl.u32 %v5706, 7
    %v5708 = vsub.s32 %v5705, %v5707
    %v5709 = vrot.slane %v5699, %v5708
    %v5711 = vunpack.c.l.s4 1966171168
    %v5712 = vunpack.c.0.s8 %v5711
    %v5713 = vlaneseq
    %v5714 = vshrl.u32 %v5713, 7
    %v5715 = vsub.s32 %v5712, %v5714
    %v5716 = vrot.slane %v5700, %v5715
    %v5718 = vunpack.c.l.s4 1966171168
    %v5719 = vunpack.c.0.s8 %v5718
    %v5720 = vlaneseq
    %v5721 = vshrl.u32 %v5720, 7
    %v5722 = vsub.s32 %v5719, %v5721
    %v5723 = vrot.slane %v5701, %v5722
    %v5725 = vunpack.c.l.s4 1966171168
    %v5726 = vunpack.c.0.s8 %v5725
    %v5727 = vlaneseq
    %v5728 = vshrl.u32 %v5727, 7
    %v5729 = vsub.s32 %v5726, %v5728
    %v5730 = vrot.slane %v5702, %v5729
    %v5731 = vcombine.low %v5709, %v5716
    %v5732 = vcombine.low %v5723, %v5730
    %v5734 = vunpack.c.l.s4 1966171168
    %v5735 = vunpack.c.0.s8 %v5734
    %v5736 = vlaneseq
    %v5737 = vshrl.u32 %v5736, 7
    %v5738 = vsub.s32 %v5735, %v5737
    %v5739 = vrot.slane %v5731, %v5738
    %v5741 = vunpack.c.l.s4 1966171168
    %v5742 = vunpack.c.0.s8 %v5741
    %v5743 = vlaneseq
    %v5744 = vshrl.u32 %v5743, 7
    %v5745 = vsub.s32 %v5742, %v5744
    %v5746 = vrot.slane %v5732, %v5745
    %v5747 = vcombine.low %v5739, %v5746
    %v5748 = vcombine.low %v2717, %v2721
    %v5749 = vcombine.low %v2725, %v2729
    %v5750 = vcombine.low %v2733, %v2737
    %v5751 = vcombine.low %v2741, %v2745
    %v5753 = vunpack.c.l.s4 1966171168
    %v5754 = vunpack.c.0.s8 %v5753
    %v5755 = vlaneseq
    %v5756 = vshrl.u32 %v5755, 7
    %v5757 = vsub.s32 %v5754, %v5756
    %v5758 = vrot.slane %v5748, %v5757
    %v5760 = vunpack.c.l.s4 1966171168
    %v5761 = vunpack.c.0.s8 %v5760
    %v5762 = vlaneseq
    %v5763 = vshrl.u32 %v5762, 7
    %v5764 = vsub.s32 %v5761, %v5763
    %v5765 = vrot.slane %v5749, %v5764
    %v5767 = vunpack.c.l.s4 1966171168
    %v5768 = vunpack.c.0.s8 %v5767
    %v5769 = vlaneseq
    %v5770 = vshrl.u32 %v5769, 7
    %v5771 = vsub.s32 %v5768, %v5770
    %v5772 = vrot.slane %v5750, %v5771
    %v5774 = vunpack.c.l.s4 1966171168
    %v5775 = vunpack.c.0.s8 %v5774
    %v5776 = vlaneseq
    %v5777 = vshrl.u32 %v5776, 7
    %v5778 = vsub.s32 %v5775, %v5777
    %v5779 = vrot.slane %v5751, %v5778
    %v5780 = vcombine.low %v5758, %v5765
    %v5781 = vcombine.low %v5772, %v5779
    %v5783 = vunpack.c.l.s4 1966171168
    %v5784 = vunpack.c.0.s8 %v5783
    %v5785 = vlaneseq
    %v5786 = vshrl.u32 %v5785, 7
    %v5787 = vsub.s32 %v5784, %v5786
    %v5788 = vrot.slane %v5780, %v5787
    %v5790 = vunpack.c.l.s4 1966171168
    %v5791 = vunpack.c.0.s8 %v5790
    %v5792 = vlaneseq
    %v5793 = vshrl.u32 %v5792, 7
    %v5794 = vsub.s32 %v5791, %v5793
    %v5795 = vrot.slane %v5781, %v5794
    %v5796 = vcombine.low %v5788, %v5795
    %v5797 = vcombine.low %v2749, %v2753
    %v5798 = vcombine.low %v2757, %v2761
    %v5799 = vcombine.low %v2765, %v2769
    %v5800 = vcombine.low %v2773, %v2777
    %v5802 = vunpack.c.l.s4 1966171168
    %v5803 = vunpack.c.0.s8 %v5802
    %v5804 = vlaneseq
    %v5805 = vshrl.u32 %v5804, 7
    %v5806 = vsub.s32 %v5803, %v5805
    %v5807 = vrot.slane %v5797, %v5806
    %v5809 = vunpack.c.l.s4 1966171168
    %v5810 = vunpack.c.0.s8 %v5809
    %v5811 = vlaneseq
    %v5812 = vshrl.u32 %v5811, 7
    %v5813 = vsub.s32 %v5810, %v5812
    %v5814 = vrot.slane %v5798, %v5813
    %v5816 = vunpack.c.l.s4 1966171168
    %v5817 = vunpack.c.0.s8 %v5816
    %v5818 = vlaneseq
    %v5819 = vshrl.u32 %v5818, 7
    %v5820 = vsub.s32 %v5817, %v5819
    %v5821 = vrot.slane %v5799, %v5820
    %v5823 = vunpack.c.l.s4 1966171168
    %v5824 = vunpack.c.0.s8 %v5823
    %v5825 = vlaneseq
    %v5826 = vshrl.u32 %v5825, 7
    %v5827 = vsub.s32 %v5824, %v5826
    %v5828 = vrot.slane %v5800, %v5827
    %v5829 = vcombine.low %v5807, %v5814
    %v5830 = vcombine.low %v5821, %v5828
    %v5832 = vunpack.c.l.s4 1966171168
    %v5833 = vunpack.c.0.s8 %v5832
    %v5834 = vlaneseq
    %v5835 = vshrl.u32 %v5834, 7
    %v5836 = vsub.s32 %v5833, %v5835
    %v5837 = vrot.slane %v5829, %v5836
    %v5839 = vunpack.c.l.s4 1966171168
    %v5840 = vunpack.c.0.s8 %v5839
    %v5841 = vlaneseq
    %v5842 = vshrl.u32 %v5841, 7
    %v5843 = vsub.s32 %v5840, %v5842
    %v5844 = vrot.slane %v5830, %v5843
    %v5845 = vcombine.low %v5837, %v5844
    %v5846 = vcombine.low %v2781, %v2785
    %v5847 = vcombine.low %v2789, %v2793
    %v5848 = vcombine.low %v2797, %v2801
    %v5849 = vcombine.low %v2805, %v2809
    %v5851 = vunpack.c.l.s4 1966171168
    %v5852 = vunpack.c.0.s8 %v5851
    %v5853 = vlaneseq
    %v5854 = vshrl.u32 %v5853, 7
    %v5855 = vsub.s32 %v5852, %v5854
    %v5856 = vrot.slane %v5846, %v5855
    %v5858 = vunpack.c.l.s4 1966171168
    %v5859 = vunpack.c.0.s8 %v5858
    %v5860 = vlaneseq
    %v5861 = vshrl.u32 %v5860, 7
    %v5862 = vsub.s32 %v5859, %v5861
    %v5863 = vrot.slane %v5847, %v5862
    %v5865 = vunpack.c.l.s4 1966171168
    %v5866 = vunpack.c.0.s8 %v5865
    %v5867 = vlaneseq
    %v5868 = vshrl.u32 %v5867, 7
    %v5869 = vsub.s32 %v5866, %v5868
    %v5870 = vrot.slane %v5848, %v5869
    %v5872 = vunpack.c.l.s4 1966171168
    %v5873 = vunpack.c.0.s8 %v5872
    %v5874 = vlaneseq
    %v5875 = vshrl.u32 %v5874, 7
    %v5876 = vsub.s32 %v5873, %v5875
    %v5877 = vrot.slane %v5849, %v5876
    %v5878 = vcombine.low %v5856, %v5863
    %v5879 = vcombine.low %v5870, %v5877
    %v5881 = vunpack.c.l.s4 1966171168
    %v5882 = vunpack.c.0.s8 %v5881
    %v5883 = vlaneseq
    %v5884 = vshrl.u32 %v5883, 7
    %v5885 = vsub.s32 %v5882, %v5884
    %v5886 = vrot.slane %v5878, %v5885
    %v5888 = vunpack.c.l.s4 1966171168
    %v5889 = vunpack.c.0.s8 %v5888
    %v5890 = vlaneseq
    %v5891 = vshrl.u32 %v5890, 7
    %v5892 = vsub.s32 %v5889, %v5891
    %v5893 = vrot.slane %v5879, %v5892
    %v5894 = vcombine.low %v5886, %v5893
    %v5895 = vcombine.low %v2813, %v2817
    %v5896 = vcombine.low %v2821, %v2825
    %v5897 = vcombine.low %v2829, %v2833
    %v5898 = vcombine.low %v2837, %v2841
    %v5900 = vunpack.c.l.s4 1966171168
    %v5901 = vunpack.c.0.s8 %v5900
    %v5902 = vlaneseq
    %v5903 = vshrl.u32 %v5902, 7
    %v5904 = vsub.s32 %v5901, %v5903
    %v5905 = vrot.slane %v5895, %v5904
    %v5907 = vunpack.c.l.s4 1966171168
    %v5908 = vunpack.c.0.s8 %v5907
    %v5909 = vlaneseq
    %v5910 = vshrl.u32 %v5909, 7
    %v5911 = vsub.s32 %v5908, %v5910
    %v5912 = vrot.slane %v5896, %v5911
    %v5914 = vunpack.c.l.s4 1966171168
    %v5915 = vunpack.c.0.s8 %v5914
    %v5916 = vlaneseq
    %v5917 = vshrl.u32 %v5916, 7
    %v5918 = vsub.s32 %v5915, %v5917
    %v5919 = vrot.slane %v5897, %v5918
    %v5921 = vunpack.c.l.s4 1966171168
    %v5922 = vunpack.c.0.s8 %v5921
    %v5923 = vlaneseq
    %v5924 = vshrl.u32 %v5923, 7
    %v5925 = vsub.s32 %v5922, %v5924
    %v5926 = vrot.slane %v5898, %v5925
    %v5927 = vcombine.low %v5905, %v5912
    %v5928 = vcombine.low %v5919, %v5926
    %v5930 = vunpack.c.l.s4 1966171168
    %v5931 = vunpack.c.0.s8 %v5930
    %v5932 = vlaneseq
    %v5933 = vshrl.u32 %v5932, 7
    %v5934 = vsub.s32 %v5931, %v5933
    %v5935 = vrot.slane %v5927, %v5934
    %v5937 = vunpack.c.l.s4 1966171168
    %v5938 = vunpack.c.0.s8 %v5937
    %v5939 = vlaneseq
    %v5940 = vshrl.u32 %v5939, 7
    %v5941 = vsub.s32 %v5938, %v5940
    %v5942 = vrot.slane %v5928, %v5941
    %v5943 = vcombine.low %v5935, %v5942
    %v5944 = vcombine.low %v2845, %v2849
    %v5945 = vcombine.low %v2853, %v2857
    %v5946 = vcombine.low %v2861, %v2865
    %v5947 = vcombine.low %v2869, %v2873
    %v5949 = vunpack.c.l.s4 1966171168
    %v5950 = vunpack.c.0.s8 %v5949
    %v5951 = vlaneseq
    %v5952 = vshrl.u32 %v5951, 7
    %v5953 = vsub.s32 %v5950, %v5952
    %v5954 = vrot.slane %v5944, %v5953
    %v5956 = vunpack.c.l.s4 1966171168
    %v5957 = vunpack.c.0.s8 %v5956
    %v5958 = vlaneseq
    %v5959 = vshrl.u32 %v5958, 7
    %v5960 = vsub.s32 %v5957, %v5959
    %v5961 = vrot.slane %v5945, %v5960
    %v5963 = vunpack.c.l.s4 1966171168
    %v5964 = vunpack.c.0.s8 %v5963
    %v5965 = vlaneseq
    %v5966 = vshrl.u32 %v5965, 7
    %v5967 = vsub.s32 %v5964, %v5966
    %v5968 = vrot.slane %v5946, %v5967
    %v5970 = vunpack.c.l.s4 1966171168
    %v5971 = vunpack.c.0.s8 %v5970
    %v5972 = vlaneseq
    %v5973 = vshrl.u32 %v5972, 7
    %v5974 = vsub.s32 %v5971, %v5973
    %v5975 = vrot.slane %v5947, %v5974
    %v5976 = vcombine.low %v5954, %v5961
    %v5977 = vcombine.low %v5968, %v5975
    %v5979 = vunpack.c.l.s4 1966171168
    %v5980 = vunpack.c.0.s8 %v5979
    %v5981 = vlaneseq
    %v5982 = vshrl.u32 %v5981, 7
    %v5983 = vsub.s32 %v5980, %v5982
    %v5984 = vrot.slane %v5976, %v5983
    %v5986 = vunpack.c.l.s4 1966171168
    %v5987 = vunpack.c.0.s8 %v5986
    %v5988 = vlaneseq
    %v5989 = vshrl.u32 %v5988, 7
    %v5990 = vsub.s32 %v5987, %v5989
    %v5991 = vrot.slane %v5977, %v5990
    %v5992 = vcombine.low %v5984, %v5991
    %v5993 = vcombine.low %v2877, %v2881
    %v5994 = vcombine.low %v2885, %v2889
    %v5995 = vcombine.low %v2893, %v2897
    %v5996 = vcombine.low %v2901, %v2905
    %v5998 = vunpack.c.l.s4 1966171168
    %v5999 = vunpack.c.0.s8 %v5998
    %v6000 = vlaneseq
    %v6001 = vshrl.u32 %v6000, 7
    %v6002 = vsub.s32 %v5999, %v6001
    %v6003 = vrot.slane %v5993, %v6002
    %v6005 = vunpack.c.l.s4 1966171168
    %v6006 = vunpack.c.0.s8 %v6005
    %v6007 = vlaneseq
    %v6008 = vshrl.u32 %v6007, 7
    %v6009 = vsub.s32 %v6006, %v6008
    %v6010 = vrot.slane %v5994, %v6009
    %v6012 = vunpack.c.l.s4 1966171168
    %v6013 = vunpack.c.0.s8 %v6012
    %v6014 = vlaneseq
    %v6015 = vshrl.u32 %v6014, 7
    %v6016 = vsub.s32 %v6013, %v6015
    %v6017 = vrot.slane %v5995, %v6016
    %v6019 = vunpack.c.l.s4 1966171168
    %v6020 = vunpack.c.0.s8 %v6019
    %v6021 = vlaneseq
    %v6022 = vshrl.u32 %v6021, 7
    %v6023 = vsub.s32 %v6020, %v6022
    %v6024 = vrot.slane %v5996, %v6023
    %v6025 = vcombine.low %v6003, %v6010
    %v6026 = vcombine.low %v6017, %v6024
    %v6028 = vunpack.c.l.s4 1966171168
    %v6029 = vunpack.c.0.s8 %v6028
    %v6030 = vlaneseq
    %v6031 = vshrl.u32 %v6030, 7
    %v6032 = vsub.s32 %v6029, %v6031
    %v6033 = vrot.slane %v6025, %v6032
    %v6035 = vunpack.c.l.s4 1966171168
    %v6036 = vunpack.c.0.s8 %v6035
    %v6037 = vlaneseq
    %v6038 = vshrl.u32 %v6037, 7
    %v6039 = vsub.s32 %v6036, %v6038
    %v6040 = vrot.slane %v6026, %v6039
    %v6041 = vcombine.low %v6033, %v6040
    %6042 = vset.pattern.permute.xlu0 0
    %6043 = vperm.xlu0 %6042, %v2954
    %v6044 = vpop.permute.xlu0 %6043
    %6045 = vset.pattern.permute.xlu0 0
    %6046 = vperm.xlu0 %6045, %v3003
    %v6047 = vpop.permute.xlu0 %6046
    %6048 = vset.pattern.permute.xlu0 0
    %6049 = vperm.xlu0 %6048, %v3052
    %v6050 = vpop.permute.xlu0 %6049
    %6051 = vset.pattern.permute.xlu0 0
    %6052 = vperm.xlu0 %6051, %v3101
    %v6053 = vpop.permute.xlu0 %6052
    %6054 = vset.pattern.permute.xlu0 0
    %6055 = vperm.xlu0 %6054, %v3150
    %v6056 = vpop.permute.xlu0 %6055
    %6057 = vset.pattern.permute.xlu0 0
    %6058 = vperm.xlu0 %6057, %v3199
    %v6059 = vpop.permute.xlu0 %6058
    %6060 = vset.pattern.permute.xlu0 0
    %6061 = vperm.xlu0 %6060, %v3248
    %v6062 = vpop.permute.xlu0 %6061
    %6063 = vset.pattern.permute.xlu0 0
    %6064 = vperm.xlu0 %6063, %v3297
    %v6065 = vpop.permute.xlu0 %6064
    %6066 = vset.pattern.permute.xlu0 0
    %6067 = vperm.xlu0 %6066, %v3346
    %v6068 = vpop.permute.xlu0 %6067
    %6069 = vset.pattern.permute.xlu0 0
    %6070 = vperm.xlu0 %6069, %v3395
    %v6071 = vpop.permute.xlu0 %6070
    %6072 = vset.pattern.permute.xlu0 0
    %6073 = vperm.xlu0 %6072, %v3444
    %v6074 = vpop.permute.xlu0 %6073
    %6075 = vset.pattern.permute.xlu0 0
    %6076 = vperm.xlu0 %6075, %v3493
    %v6077 = vpop.permute.xlu0 %6076
    %6078 = vset.pattern.permute.xlu0 0
    %6079 = vperm.xlu0 %6078, %v3542
    %v6080 = vpop.permute.xlu0 %6079
    %6081 = vset.pattern.permute.xlu0 0
    %6082 = vperm.xlu0 %6081, %v3591
    %v6083 = vpop.permute.xlu0 %6082
    %6084 = vset.pattern.permute.xlu0 0
    %6085 = vperm.xlu0 %6084, %v3640
    %v6086 = vpop.permute.xlu0 %6085
    %6087 = vset.pattern.permute.xlu0 0
    %6088 = vperm.xlu0 %6087, %v3689
    %v6089 = vpop.permute.xlu0 %6088
    %6090 = vset.pattern.permute.xlu0 0
    %6091 = vperm.xlu0 %6090, %v3738
    %v6092 = vpop.permute.xlu0 %6091
    %6093 = vset.pattern.permute.xlu0 0
    %6094 = vperm.xlu0 %6093, %v3787
    %v6095 = vpop.permute.xlu0 %6094
    %6096 = vset.pattern.permute.xlu0 0
    %6097 = vperm.xlu0 %6096, %v3836
    %v6098 = vpop.permute.xlu0 %6097
    %6099 = vset.pattern.permute.xlu0 0
    %6100 = vperm.xlu0 %6099, %v3885
    %v6101 = vpop.permute.xlu0 %6100
    %6102 = vset.pattern.permute.xlu0 0
    %6103 = vperm.xlu0 %6102, %v3934
    %v6104 = vpop.permute.xlu0 %6103
    %6105 = vset.pattern.permute.xlu0 0
    %6106 = vperm.xlu0 %6105, %v3983
    %v6107 = vpop.permute.xlu0 %6106
    %6108 = vset.pattern.permute.xlu0 0
    %6109 = vperm.xlu0 %6108, %v4032
    %v6110 = vpop.permute.xlu0 %6109
    %6111 = vset.pattern.permute.xlu0 0
    %6112 = vperm.xlu0 %6111, %v4081
    %v6113 = vpop.permute.xlu0 %6112
    %6114 = vset.pattern.permute.xlu0 0
    %6115 = vperm.xlu0 %6114, %v4130
    %v6116 = vpop.permute.xlu0 %6115
    %6117 = vset.pattern.permute.xlu0 0
    %6118 = vperm.xlu0 %6117, %v4179
    %v6119 = vpop.permute.xlu0 %6118
    %6120 = vset.pattern.permute.xlu0 0
    %6121 = vperm.xlu0 %6120, %v4228
    %v6122 = vpop.permute.xlu0 %6121
    %6123 = vset.pattern.permute.xlu0 0
    %6124 = vperm.xlu0 %6123, %v4277
    %v6125 = vpop.permute.xlu0 %6124
    %6126 = vset.pattern.permute.xlu0 0
    %6127 = vperm.xlu0 %6126, %v4326
    %v6128 = vpop.permute.xlu0 %6127
    %6129 = vset.pattern.permute.xlu0 0
    %6130 = vperm.xlu0 %6129, %v4375
    %v6131 = vpop.permute.xlu0 %6130
    %6132 = vset.pattern.permute.xlu0 0
    %6133 = vperm.xlu0 %6132, %v4424
    %v6134 = vpop.permute.xlu0 %6133
    %6135 = vset.pattern.permute.xlu0 0
    %6136 = vperm.xlu0 %6135, %v4473
    %v6137 = vpop.permute.xlu0 %6136
    %6138 = vset.pattern.permute.xlu0 0
    %6139 = vperm.xlu0 %6138, %v4522
    %v6140 = vpop.permute.xlu0 %6139
    %6141 = vset.pattern.permute.xlu0 0
    %6142 = vperm.xlu0 %6141, %v4571
    %v6143 = vpop.permute.xlu0 %6142
    %6144 = vset.pattern.permute.xlu0 0
    %6145 = vperm.xlu0 %6144, %v4620
    %v6146 = vpop.permute.xlu0 %6145
    %6147 = vset.pattern.permute.xlu0 0
    %6148 = vperm.xlu0 %6147, %v4669
    %v6149 = vpop.permute.xlu0 %6148
    %6150 = vset.pattern.permute.xlu0 0
    %6151 = vperm.xlu0 %6150, %v4718
    %v6152 = vpop.permute.xlu0 %6151
    %6153 = vset.pattern.permute.xlu0 0
    %6154 = vperm.xlu0 %6153, %v4767
    %v6155 = vpop.permute.xlu0 %6154
    %6156 = vset.pattern.permute.xlu0 0
    %6157 = vperm.xlu0 %6156, %v4816
    %v6158 = vpop.permute.xlu0 %6157
    %6159 = vset.pattern.permute.xlu0 0
    %6160 = vperm.xlu0 %6159, %v4865
    %v6161 = vpop.permute.xlu0 %6160
    %6162 = vset.pattern.permute.xlu0 0
    %6163 = vperm.xlu0 %6162, %v4914
    %v6164 = vpop.permute.xlu0 %6163
    %6165 = vset.pattern.permute.xlu0 0
    %6166 = vperm.xlu0 %6165, %v4963
    %v6167 = vpop.permute.xlu0 %6166
    %6168 = vset.pattern.permute.xlu0 0
    %6169 = vperm.xlu0 %6168, %v5012
    %v6170 = vpop.permute.xlu0 %6169
    %6171 = vset.pattern.permute.xlu0 0
    %6172 = vperm.xlu0 %6171, %v5061
    %v6173 = vpop.permute.xlu0 %6172
    %6174 = vset.pattern.permute.xlu0 0
    %6175 = vperm.xlu0 %6174, %v5110
    %v6176 = vpop.permute.xlu0 %6175
    %6177 = vset.pattern.permute.xlu0 0
    %6178 = vperm.xlu0 %6177, %v5159
    %v6179 = vpop.permute.xlu0 %6178
    %6180 = vset.pattern.permute.xlu0 0
    %6181 = vperm.xlu0 %6180, %v5208
    %v6182 = vpop.permute.xlu0 %6181
    %6183 = vset.pattern.permute.xlu0 0
    %6184 = vperm.xlu0 %6183, %v5257
    %v6185 = vpop.permute.xlu0 %6184
    %6186 = vset.pattern.permute.xlu0 0
    %6187 = vperm.xlu0 %6186, %v5306
    %v6188 = vpop.permute.xlu0 %6187
    %6189 = vset.pattern.permute.xlu0 0
    %6190 = vperm.xlu0 %6189, %v5355
    %v6191 = vpop.permute.xlu0 %6190
    %6192 = vset.pattern.permute.xlu0 0
    %6193 = vperm.xlu0 %6192, %v5404
    %v6194 = vpop.permute.xlu0 %6193
    %6195 = vset.pattern.permute.xlu0 0
    %6196 = vperm.xlu0 %6195, %v5453
    %v6197 = vpop.permute.xlu0 %6196
    %6198 = vset.pattern.permute.xlu0 0
    %6199 = vperm.xlu0 %6198, %v5502
    %v6200 = vpop.permute.xlu0 %6199
    %6201 = vset.pattern.permute.xlu0 0
    %6202 = vperm.xlu0 %6201, %v5551
    %v6203 = vpop.permute.xlu0 %6202
    %6204 = vset.pattern.permute.xlu0 0
    %6205 = vperm.xlu0 %6204, %v5600
    %v6206 = vpop.permute.xlu0 %6205
    %6207 = vset.pattern.permute.xlu0 0
    %6208 = vperm.xlu0 %6207, %v5649
    %v6209 = vpop.permute.xlu0 %6208
    %6210 = vset.pattern.permute.xlu0 0
    %6211 = vperm.xlu0 %6210, %v5698
    %v6212 = vpop.permute.xlu0 %6211
    %6213 = vset.pattern.permute.xlu0 0
    %6214 = vperm.xlu0 %6213, %v5747
    %v6215 = vpop.permute.xlu0 %6214
    %6216 = vset.pattern.permute.xlu0 0
    %6217 = vperm.xlu0 %6216, %v5796
    %v6218 = vpop.permute.xlu0 %6217
    %6219 = vset.pattern.permute.xlu0 0
    %6220 = vperm.xlu0 %6219, %v5845
    %v6221 = vpop.permute.xlu0 %6220
    %6222 = vset.pattern.permute.xlu0 0
    %6223 = vperm.xlu0 %6222, %v5894
    %v6224 = vpop.permute.xlu0 %6223
    %6225 = vset.pattern.permute.xlu0 0
    %6226 = vperm.xlu0 %6225, %v5943
    %v6227 = vpop.permute.xlu0 %6226
    %6228 = vset.pattern.permute.xlu0 0
    %6229 = vperm.xlu0 %6228, %v5992
    %v6230 = vpop.permute.xlu0 %6229
    %6231 = vset.pattern.permute.xlu0 0
    %6232 = vperm.xlu0 %6231, %v6041
    %v6233 = vpop.permute.xlu0 %6232
    %v6234 = vlaneseq
    %v6235 = vand.u32 %v6234, 127
    %v6236 = vlaneseq
    %v6237 = vshrl.u32 %v6236, 7
    %v6238 = vsub.s32 %v6235, %v6237
    %v6239 = vrot.slane %v6044, %v6238
    %v6240 = vadd.s32 %v6235, 4294967288
    %v6241 = vlaneseq
    %v6242 = vshrl.u32 %v6241, 7
    %v6243 = vsub.s32 %v6240, %v6242
    %v6244 = vrot.slane %v6047, %v6243
    %vm6245 = vcmask 130112
    %v6246 = vsel %vm6245, %v6244, %v6239
    %v6247 = vadd.s32 %v6235, 4294967280
    %v6248 = vlaneseq
    %v6249 = vshrl.u32 %v6248, 7
    %v6250 = vsub.s32 %v6247, %v6249
    %v6251 = vrot.slane %v6050, %v6250
    %vm6252 = vcmask 195712
    %v6253 = vsel %vm6252, %v6251, %v6246
    %v6254 = vadd.s32 %v6235, 4294967272
    %v6255 = vlaneseq
    %v6256 = vshrl.u32 %v6255, 7
    %v6257 = vsub.s32 %v6254, %v6256
    %v6258 = vrot.slane %v6053, %v6257
    %vm6259 = vcmask 261312
    %v6260 = vsel %vm6259, %v6258, %v6253
    %v6261 = vadd.s32 %v6235, 4294967264
    %v6262 = vlaneseq
    %v6263 = vshrl.u32 %v6262, 7
    %v6264 = vsub.s32 %v6261, %v6263
    %v6265 = vrot.slane %v6056, %v6264
    %vm6266 = vcmask 326912
    %v6267 = vsel %vm6266, %v6265, %v6260
    %v6268 = vadd.s32 %v6235, 4294967256
    %v6269 = vlaneseq
    %v6270 = vshrl.u32 %v6269, 7
    %v6271 = vsub.s32 %v6268, %v6270
    %v6272 = vrot.slane %v6059, %v6271
    %vm6273 = vcmask 392512
    %v6274 = vsel %vm6273, %v6272, %v6267
    %v6275 = vadd.s32 %v6235, 4294967248
    %v6276 = vlaneseq
    %v6277 = vshrl.u32 %v6276, 7
    %v6278 = vsub.s32 %v6275, %v6277
    %v6279 = vrot.slane %v6062, %v6278
    %vm6280 = vcmask 458112
    %v6281 = vsel %vm6280, %v6279, %v6274
    %v6282 = vadd.s32 %v6235, 4294967240
    %v6283 = vlaneseq
    %v6284 = vshrl.u32 %v6283, 7
    %v6285 = vsub.s32 %v6282, %v6284
    %v6286 = vrot.slane %v6065, %v6285
    %vm6287 = vcmask 523712
    %v6288 = vsel %vm6287, %v6286, %v6281
    %v6289 = vadd.s32 %v6235, 4294967232
    %v6290 = vlaneseq
    %v6291 = vshrl.u32 %v6290, 7
    %v6292 = vsub.s32 %v6289, %v6291
    %v6293 = vrot.slane %v6068, %v6292
    %vm6294 = vcmask 589312
    %v6295 = vsel %vm6294, %v6293, %v6288
    %v6296 = vadd.s32 %v6235, 4294967224
    %v6297 = vlaneseq
    %v6298 = vshrl.u32 %v6297, 7
    %v6299 = vsub.s32 %v6296, %v6298
    %v6300 = vrot.slane %v6071, %v6299
    %vm6301 = vcmask 654912
    %v6302 = vsel %vm6301, %v6300, %v6295
    %v6303 = vadd.s32 %v6235, 4294967216
    %v6304 = vlaneseq
    %v6305 = vshrl.u32 %v6304, 7
    %v6306 = vsub.s32 %v6303, %v6305
    %v6307 = vrot.slane %v6074, %v6306
    %vm6308 = vcmask 720512
    %v6309 = vsel %vm6308, %v6307, %v6302
    %v6310 = vadd.s32 %v6235, 4294967208
    %v6311 = vlaneseq
    %v6312 = vshrl.u32 %v6311, 7
    %v6313 = vsub.s32 %v6310, %v6312
    %v6314 = vrot.slane %v6077, %v6313
    %vm6315 = vcmask 786112
    %v6316 = vsel %vm6315, %v6314, %v6309
    %v6317 = vadd.s32 %v6235, 4294967200
    %v6318 = vlaneseq
    %v6319 = vshrl.u32 %v6318, 7
    %v6320 = vsub.s32 %v6317, %v6319
    %v6321 = vrot.slane %v6080, %v6320
    %vm6322 = vcmask 851712
    %v6323 = vsel %vm6322, %v6321, %v6316
    %v6324 = vadd.s32 %v6235, 4294967192
    %v6325 = vlaneseq
    %v6326 = vshrl.u32 %v6325, 7
    %v6327 = vsub.s32 %v6324, %v6326
    %v6328 = vrot.slane %v6083, %v6327
    %vm6329 = vcmask 917312
    %v6330 = vsel %vm6329, %v6328, %v6323
    %v6331 = vadd.s32 %v6235, 4294967184
    %v6332 = vlaneseq
    %v6333 = vshrl.u32 %v6332, 7
    %v6334 = vsub.s32 %v6331, %v6333
    %v6335 = vrot.slane %v6086, %v6334
    %vm6336 = vcmask 982912
    %v6337 = vsel %vm6336, %v6335, %v6330
    %v6338 = vadd.s32 %v6235, 4294967176
    %v6339 = vlaneseq
    %v6340 = vshrl.u32 %v6339, 7
    %v6341 = vsub.s32 %v6338, %v6340
    %v6342 = vrot.slane %v6089, %v6341
    %vm6343 = vcmask 1048512
    %v6344 = vsel %vm6343, %v6342, %v6337
    %v6345 = vlaneseq
    %v6346 = vshrl.u32 %v6345, 7
    %v6347 = vsub.s32 %v6235, %v6346
    %v6348 = vrot.slane %v6092, %v6347
    %v6349 = vlaneseq
    %v6350 = vshrl.u32 %v6349, 7
    %v6351 = vsub.s32 %v6240, %v6350
    %v6352 = vrot.slane %v6095, %v6351
    %v6353 = vsel %vm6245, %v6352, %v6348
    %v6354 = vlaneseq
    %v6355 = vshrl.u32 %v6354, 7
    %v6356 = vsub.s32 %v6247, %v6355
    %v6357 = vrot.slane %v6098, %v6356
    %v6358 = vsel %vm6252, %v6357, %v6353
    %v6359 = vlaneseq
    %v6360 = vshrl.u32 %v6359, 7
    %v6361 = vsub.s32 %v6254, %v6360
    %v6362 = vrot.slane %v6101, %v6361
    %v6363 = vsel %vm6259, %v6362, %v6358
    %v6364 = vlaneseq
    %v6365 = vshrl.u32 %v6364, 7
    %v6366 = vsub.s32 %v6261, %v6365
    %v6367 = vrot.slane %v6104, %v6366
    %v6368 = vsel %vm6266, %v6367, %v6363
    %v6369 = vlaneseq
    %v6370 = vshrl.u32 %v6369, 7
    %v6371 = vsub.s32 %v6268, %v6370
    %v6372 = vrot.slane %v6107, %v6371
    %v6373 = vsel %vm6273, %v6372, %v6368
    %v6374 = vlaneseq
    %v6375 = vshrl.u32 %v6374, 7
    %v6376 = vsub.s32 %v6275, %v6375
    %v6377 = vrot.slane %v6110, %v6376
    %v6378 = vsel %vm6280, %v6377, %v6373
    %v6379 = vlaneseq
    %v6380 = vshrl.u32 %v6379, 7
    %v6381 = vsub.s32 %v6282, %v6380
    %v6382 = vrot.slane %v6113, %v6381
    %v6383 = vsel %vm6287, %v6382, %v6378
    %v6384 = vlaneseq
    %v6385 = vshrl.u32 %v6384, 7
    %v6386 = vsub.s32 %v6289, %v6385
    %v6387 = vrot.slane %v6116, %v6386
    %v6388 = vsel %vm6294, %v6387, %v6383
    %v6389 = vlaneseq
    %v6390 = vshrl.u32 %v6389, 7
    %v6391 = vsub.s32 %v6296, %v6390
    %v6392 = vrot.slane %v6119, %v6391
    %v6393 = vsel %vm6301, %v6392, %v6388
    %v6394 = vlaneseq
    %v6395 = vshrl.u32 %v6394, 7
    %v6396 = vsub.s32 %v6303, %v6395
    %v6397 = vrot.slane %v6122, %v6396
    %v6398 = vsel %vm6308, %v6397, %v6393
    %v6399 = vlaneseq
    %v6400 = vshrl.u32 %v6399, 7
    %v6401 = vsub.s32 %v6310, %v6400
    %v6402 = vrot.slane %v6125, %v6401
    %v6403 = vsel %vm6315, %v6402, %v6398
    %v6404 = vlaneseq
    %v6405 = vshrl.u32 %v6404, 7
    %v6406 = vsub.s32 %v6317, %v6405
    %v6407 = vrot.slane %v6128, %v6406
    %v6408 = vsel %vm6322, %v6407, %v6403
    %v6409 = vlaneseq
    %v6410 = vshrl.u32 %v6409, 7
    %v6411 = vsub.s32 %v6324, %v6410
    %v6412 = vrot.slane %v6131, %v6411
    %v6413 = vsel %vm6329, %v6412, %v6408
    %v6414 = vlaneseq
    %v6415 = vshrl.u32 %v6414, 7
    %v6416 = vsub.s32 %v6331, %v6415
    %v6417 = vrot.slane %v6134, %v6416
    %v6418 = vsel %vm6336, %v6417, %v6413
    %v6419 = vlaneseq
    %v6420 = vshrl.u32 %v6419, 7
    %v6421 = vsub.s32 %v6338, %v6420
    %v6422 = vrot.slane %v6137, %v6421
    %v6423 = vsel %vm6343, %v6422, %v6418
    %v6424 = vlaneseq
    %v6425 = vshrl.u32 %v6424, 7
    %v6426 = vsub.s32 %v6235, %v6425
    %v6427 = vrot.slane %v6140, %v6426
    %v6428 = vlaneseq
    %v6429 = vshrl.u32 %v6428, 7
    %v6430 = vsub.s32 %v6240, %v6429
    %v6431 = vrot.slane %v6143, %v6430
    %v6432 = vsel %vm6245, %v6431, %v6427
    %v6433 = vlaneseq
    %v6434 = vshrl.u32 %v6433, 7
    %v6435 = vsub.s32 %v6247, %v6434
    %v6436 = vrot.slane %v6146, %v6435
    %v6437 = vsel %vm6252, %v6436, %v6432
    %v6438 = vlaneseq
    %v6439 = vshrl.u32 %v6438, 7
    %v6440 = vsub.s32 %v6254, %v6439
    %v6441 = vrot.slane %v6149, %v6440
    %v6442 = vsel %vm6259, %v6441, %v6437
    %v6443 = vlaneseq
    %v6444 = vshrl.u32 %v6443, 7
    %v6445 = vsub.s32 %v6261, %v6444
    %v6446 = vrot.slane %v6152, %v6445
    %v6447 = vsel %vm6266, %v6446, %v6442
    %v6448 = vlaneseq
    %v6449 = vshrl.u32 %v6448, 7
    %v6450 = vsub.s32 %v6268, %v6449
    %v6451 = vrot.slane %v6155, %v6450
    %v6452 = vsel %vm6273, %v6451, %v6447
    %v6453 = vlaneseq
    %v6454 = vshrl.u32 %v6453, 7
    %v6455 = vsub.s32 %v6275, %v6454
    %v6456 = vrot.slane %v6158, %v6455
    %v6457 = vsel %vm6280, %v6456, %v6452
    %v6458 = vlaneseq
    %v6459 = vshrl.u32 %v6458, 7
    %v6460 = vsub.s32 %v6282, %v6459
    %v6461 = vrot.slane %v6161, %v6460
    %v6462 = vsel %vm6287, %v6461, %v6457
    %v6463 = vlaneseq
    %v6464 = vshrl.u32 %v6463, 7
    %v6465 = vsub.s32 %v6289, %v6464
    %v6466 = vrot.slane %v6164, %v6465
    %v6467 = vsel %vm6294, %v6466, %v6462
    %v6468 = vlaneseq
    %v6469 = vshrl.u32 %v6468, 7
    %v6470 = vsub.s32 %v6296, %v6469
    %v6471 = vrot.slane %v6167, %v6470
    %v6472 = vsel %vm6301, %v6471, %v6467
    %v6473 = vlaneseq
    %v6474 = vshrl.u32 %v6473, 7
    %v6475 = vsub.s32 %v6303, %v6474
    %v6476 = vrot.slane %v6170, %v6475
    %v6477 = vsel %vm6308, %v6476, %v6472
    %v6478 = vlaneseq
    %v6479 = vshrl.u32 %v6478, 7
    %v6480 = vsub.s32 %v6310, %v6479
    %v6481 = vrot.slane %v6173, %v6480
    %v6482 = vsel %vm6315, %v6481, %v6477
    %v6483 = vlaneseq
    %v6484 = vshrl.u32 %v6483, 7
    %v6485 = vsub.s32 %v6317, %v6484
    %v6486 = vrot.slane %v6176, %v6485
    %v6487 = vsel %vm6322, %v6486, %v6482
    %v6488 = vlaneseq
    %v6489 = vshrl.u32 %v6488, 7
    %v6490 = vsub.s32 %v6324, %v6489
    %v6491 = vrot.slane %v6179, %v6490
    %v6492 = vsel %vm6329, %v6491, %v6487
    %v6493 = vlaneseq
    %v6494 = vshrl.u32 %v6493, 7
    %v6495 = vsub.s32 %v6331, %v6494
    %v6496 = vrot.slane %v6182, %v6495
    %v6497 = vsel %vm6336, %v6496, %v6492
    %v6498 = vlaneseq
    %v6499 = vshrl.u32 %v6498, 7
    %v6500 = vsub.s32 %v6338, %v6499
    %v6501 = vrot.slane %v6185, %v6500
    %v6502 = vsel %vm6343, %v6501, %v6497
    %v6503 = vlaneseq
    %v6504 = vshrl.u32 %v6503, 7
    %v6505 = vsub.s32 %v6235, %v6504
    %v6506 = vrot.slane %v6188, %v6505
    %v6507 = vlaneseq
    %v6508 = vshrl.u32 %v6507, 7
    %v6509 = vsub.s32 %v6240, %v6508
    %v6510 = vrot.slane %v6191, %v6509
    %v6511 = vsel %vm6245, %v6510, %v6506
    %v6512 = vlaneseq
    %v6513 = vshrl.u32 %v6512, 7
    %v6514 = vsub.s32 %v6247, %v6513
    %v6515 = vrot.slane %v6194, %v6514
    %v6516 = vsel %vm6252, %v6515, %v6511
    %v6517 = vlaneseq
    %v6518 = vshrl.u32 %v6517, 7
    %v6519 = vsub.s32 %v6254, %v6518
    %v6520 = vrot.slane %v6197, %v6519
    %v6521 = vsel %vm6259, %v6520, %v6516
    %v6522 = vlaneseq
    %v6523 = vshrl.u32 %v6522, 7
    %v6524 = vsub.s32 %v6261, %v6523
    %v6525 = vrot.slane %v6200, %v6524
    %v6526 = vsel %vm6266, %v6525, %v6521
    %v6527 = vlaneseq
    %v6528 = vshrl.u32 %v6527, 7
    %v6529 = vsub.s32 %v6268, %v6528
    %v6530 = vrot.slane %v6203, %v6529
    %v6531 = vsel %vm6273, %v6530, %v6526
    %v6532 = vlaneseq
    %v6533 = vshrl.u32 %v6532, 7
    %v6534 = vsub.s32 %v6275, %v6533
    %v6535 = vrot.slane %v6206, %v6534
    %v6536 = vsel %vm6280, %v6535, %v6531
    %v6537 = vlaneseq
    %v6538 = vshrl.u32 %v6537, 7
    %v6539 = vsub.s32 %v6282, %v6538
    %v6540 = vrot.slane %v6209, %v6539
    %v6541 = vsel %vm6287, %v6540, %v6536
    %v6542 = vlaneseq
    %v6543 = vshrl.u32 %v6542, 7
    %v6544 = vsub.s32 %v6289, %v6543
    %v6545 = vrot.slane %v6212, %v6544
    %v6546 = vsel %vm6294, %v6545, %v6541
    %v6547 = vlaneseq
    %v6548 = vshrl.u32 %v6547, 7
    %v6549 = vsub.s32 %v6296, %v6548
    %v6550 = vrot.slane %v6215, %v6549
    %v6551 = vsel %vm6301, %v6550, %v6546
    %v6552 = vlaneseq
    %v6553 = vshrl.u32 %v6552, 7
    %v6554 = vsub.s32 %v6303, %v6553
    %v6555 = vrot.slane %v6218, %v6554
    %v6556 = vsel %vm6308, %v6555, %v6551
    %v6557 = vlaneseq
    %v6558 = vshrl.u32 %v6557, 7
    %v6559 = vsub.s32 %v6310, %v6558
    %v6560 = vrot.slane %v6221, %v6559
    %v6561 = vsel %vm6315, %v6560, %v6556
    %v6562 = vlaneseq
    %v6563 = vshrl.u32 %v6562, 7
    %v6564 = vsub.s32 %v6317, %v6563
    %v6565 = vrot.slane %v6224, %v6564
    %v6566 = vsel %vm6322, %v6565, %v6561
    %v6567 = vlaneseq
    %v6568 = vshrl.u32 %v6567, 7
    %v6569 = vsub.s32 %v6324, %v6568
    %v6570 = vrot.slane %v6227, %v6569
    %v6571 = vsel %vm6329, %v6570, %v6566
    %v6572 = vlaneseq
    %v6573 = vshrl.u32 %v6572, 7
    %v6574 = vsub.s32 %v6331, %v6573
    %v6575 = vrot.slane %v6230, %v6574
    %v6576 = vsel %vm6336, %v6575, %v6571
    %v6577 = vlaneseq
    %v6578 = vshrl.u32 %v6577, 7
    %v6579 = vsub.s32 %v6338, %v6578
    %v6580 = vrot.slane %v6233, %v6579
    %v6581 = vsel %vm6343, %v6580, %v6576
    %v6582 = vcombine.low %v6344, %v6423
    %v6583 = vcombine.low %v6502, %v6581
    %v6585 = vunpack.c.l.s4 1966171168
    %v6586 = vunpack.c.0.s8 %v6585
    %v6587 = vlaneseq
    %v6588 = vshrl.u32 %v6587, 7
    %v6589 = vsub.s32 %v6586, %v6588
    %v6590 = vrot.slane %v6582, %v6589
    %v6592 = vunpack.c.l.s4 1966171168
    %v6593 = vunpack.c.0.s8 %v6592
    %v6594 = vlaneseq
    %v6595 = vshrl.u32 %v6594, 7
    %v6596 = vsub.s32 %v6593, %v6595
    %v6597 = vrot.slane %v6583, %v6596
    %v6598 = vcombine.low %v6590, %v6597
    %v6600 = vunpack.c.l.s4 1966171168
    %v6601 = vunpack.c.0.s8 %v6600
    %v6602 = vlaneseq
    %v6603 = vshrl.u32 %v6602, 7
    %v6604 = vsub.s32 %v6601, %v6603
    %v6605 = vrot.slane %v6598, %v6604
    %v6607 = vlaneseq
    %vm6608 = vcmp.ge.s32.totalorder %v6607, 0
    %vm6609 = vcmp.lt.s32.totalorder %v6607, 512
    %vm6610 = vmand %vm6608, %vm6609
    %6611 = vst.msk [vmem:[#allocation3] sm:$0xf] %vm6610, %v6605
    // Predicated region
    $region14: #{tpu_custom_call.1} parent=1 // pred_check
      _
    $region15: #{tpu_custom_call.1} parent=1 // pred_check_branch
      %6613 = sbr.rel (0) target = $region17
    $region16: #{tpu_custom_call.1} parent=1 // pred_region
      %s6615 = ssub.s32 64, 64
      %6616 = vsyncadd [#allocation4], %s6615
      %s6618 = sshll.u32 [#allocation3], 4
      %s6619 = int_to_ptr.vmem [resolvable:$true] %s6618
      %6621 = dma.vmem_to_hbm [thread:$0]  %s6619, 64, %s3, [#allocation4]
    $region17: #{tpu_custom_call.1} parent=1 // pred_fallthru
      _
    // Predicated region
    $region18: #{tpu_custom_call.1} parent=1 // pred_check
      _
    $region19: #{tpu_custom_call.1} parent=1 // pred_check_branch
      %6623 = sbr.rel (0) target = $region21
    $region20: #{tpu_custom_call.1} parent=1 // pred_region
      %6624 = dma.done [#allocation4], 64
    $region21: #{tpu_custom_call.1} parent=1 // pred_fallthru
      _
    %6625 = vsyncpa [#allocation4], 1

</llo_original>
